<compile_context>
chip_gen: v7x
topology: tpu7x:2x2x1
jax: 0.10.0
libtpu: 0.0.40
codegen_flags: <defaults>
</compile_context>

<pallas_src>
import functools
import math

import jax
import jax.numpy as jnp
from jax import lax
from jax.experimental import pallas as pl
from jax.experimental.pallas import tpu as pltpu


# ----------------------------- fused kernel ----------------------------------

def _mlp_fused_kernel(x_ref, x_hbm, w1_ref, b1_ref, dw_ref, bdw_ref, w2_ref,
                      b2_ref, o_ref, halo_ref, hid_ref, sems, *, W, TH):
    b = pl.program_id(0)
    hs = pl.program_id(1)
    n_strips = pl.num_programs(1)

    M = TH * W                          # output tokens in this strip
    Chid = hid_ref.shape[-1]
    tok0 = pl.multiple_of(hs * M, W)    # first core token of this strip

    # ---- kick off the (tiny) halo DMAs; they hide behind the core fc1 ----
    def top_copy():
        return pltpu.make_async_copy(
            x_hbm.at[b, pl.ds(tok0 - W, W)], halo_ref.at[pl.ds(0, W)], sems.at[0])

    def bot_copy():
        return pltpu.make_async_copy(
            x_hbm.at[b, pl.ds(tok0 + M, W)], halo_ref.at[pl.ds(W, W)], sems.at[1])

    @pl.when(hs > 0)
    def _():
        top_copy().start()

    @pl.when(hs < n_strips - 1)
    def _():
        bot_copy().start()

    # ---- fc1 on the core strip (auto-pipelined VMEM block, MXU, f32 acc) ----
    w1 = w1_ref[...]
    b1 = b1_ref[...].astype(jnp.float32)
    hid_ref[pl.ds(W, M), :] = (
        jnp.dot(x_ref[0], w1, preferred_element_type=jnp.float32) + b1)

    # ---- halo rows: fc1 of the neighbouring image rows, zeros off-image ----
    @pl.when(hs > 0)
    def _():
        top_copy().wait()
        hid_ref[pl.ds(0, W), :] = (
            jnp.dot(halo_ref[pl.ds(0, W), :], w1,
                    preferred_element_type=jnp.float32) + b1)

    @pl.when(hs == 0)
    def _():
        hid_ref[pl.ds(0, W), :] = jnp.zeros((W, Chid), jnp.float32)

    @pl.when(hs < n_strips - 1)
    def _():
        bot_copy().wait()
        hid_ref[pl.ds(W + M, W), :] = (
            jnp.dot(halo_ref[pl.ds(W, W), :], w1,
                    preferred_element_type=jnp.float32) + b1)

    @pl.when(hs == n_strips - 1)
    def _():
        hid_ref[pl.ds(W + M, W), :] = jnp.zeros((W, Chid), jnp.float32)

    # ---- depthwise 3x3 conv: 9 taps fused into a single expression ----
    dw = dw_ref[...].astype(jnp.float32)                  # (9, Chid), (kh, kw) row-major
    col = lax.broadcasted_iota(jnp.int32, (M, 1), 0) % W  # image column of output token
    not_left_edge = col != 0                              # kw=0 taps valid
    not_right_edge = col != (W - 1)                       # kw=2 taps valid

    acc = None
    for kh in range(3):                                   # unrolled at trace time
        c_blk = hid_ref[pl.ds(kh * W, M), :]              # (M, Chid) f32
        # +-1 column shift == +-1 token shift; the single wrapped row of each
        # roll lands on a masked edge position, so numerics are exact.
        l_blk = jnp.where(not_left_edge, pltpu.roll(c_blk, 1, axis=0), 0.0)
        r_blk = jnp.where(not_right_edge, pltpu.roll(c_blk, M - 1, axis=0), 0.0)
        tap = (l_blk * dw[3 * kh:3 * kh + 1]
               + c_blk * dw[3 * kh + 1:3 * kh + 2]
               + r_blk * dw[3 * kh + 2:3 * kh + 3])
        acc = tap if acc is None else acc + tap
    a = acc + bdw_ref[...].astype(jnp.float32)

    # ---- exact GELU (erf, torch.nn.GELU default) + fc2 ----
    g = 0.5 * a * (1.0 + lax.erf(a * (1.0 / math.sqrt(2.0))))
    out = jnp.dot(g.astype(w2_ref.dtype), w2_ref[...],
                  preferred_element_type=jnp.float32)
    o_ref[0] = (out + b2_ref[...].astype(jnp.float32)).astype(o_ref.dtype)


# ----------------------------- tiling helpers ---------------------------------

def _strip_footprint(t, W, Cin, Chid, Cout, mm_bytes, out_bytes):
    """Rough per-step VMEM footprint (bytes) for a TH = t row strip."""
    M, L = t * W, (t + 2) * W
    return (2 * M * Cin * mm_bytes                      # pipelined x-core double buffer
            + 2 * M * Cout * out_bytes                  # pipelined output double buffer
            + 2 * W * Cin * mm_bytes                    # halo scratch
            + L * Chid * 4                              # f32 hidden strip (+halo)
            + 4 * M * Chid * 4                          # conv/GELU live values (temps)
            + 2 * (Cin * Chid + Chid * Cout) * mm_bytes  # weight buffers
            + 32 * (Chid + Cout) * 4)                   # biases + dw (tile-padded)


def _pick_row_tile(H, W, Cin, Chid, Cout, mm_bytes, out_bytes, B,
                   vmem_budget_bytes):
    """Largest TH dividing H that fits the VMEM budget (prefers M % 256 == 0)."""
    divisors = [t for t in range(1, H + 1) if H % t == 0]
    cands = [t for t in divisors if (t * W) % 8 == 0 or t == H]
    if B < 2:                       # keep >=2 grid steps so both v7x TCs get work
        multi = [t for t in cands if H // t >= 2]
        cands = multi or cands
    fits = [t for t in cands
            if _strip_footprint(t, W, Cin, Chid, Cout, mm_bytes,
                                out_bytes) <= vmem_budget_bytes]
    fits = fits or [min(cands)]
    best = max(fits)
    aligned = [t for t in fits if (t * W) % 256 == 0]    # MXU-friendly token count
    if aligned and 2 * max(aligned) >= best:
        best = max(aligned)
    return best


# ----------------------------- wrapper ----------------------------------------

def mlp_forward(x, params, H, W, *, row_tile=None, matmul_dtype=jnp.bfloat16,
                vmem_budget_bytes=40 << 20):
    """x: (B, N, Cin) with N = H*W.  Returns (B, N, Cout) in x's dtype."""
    B, N, Cin = x.shape
    assert N == H * W, (N, H, W)

    w1, b1 = params["fc1_w"], params["fc1_b"]
    dw, bdw = params["dw_w"], params["dw_b"]
    w2, b2 = params["fc2_w"], params["fc2_b"]
    Chid, Cout = w1.shape[1], w2.shape[1]

    out_dtype = x.dtype        # output stays in the caller's dtype (f32, like torch)
    if matmul_dtype is not None:
        # Narrow MXU operands (bf16 default); accumulation & elementwise stay f32.
        x = x.astype(matmul_dtype)
        w1 = w1.astype(matmul_dtype)
        w2 = w2.astype(matmul_dtype)
    mm_bytes = jnp.dtype(x.dtype).itemsize
    out_bytes = jnp.dtype(out_dtype).itemsize

    if row_tile is None:
        TH = _pick_row_tile(H, W, Cin, Chid, Cout, mm_bytes, out_bytes, B,
                            vmem_budget_bytes)
    else:
        TH = row_tile
    assert H % TH == 0, (H, TH)
    assert (TH * W) % 8 == 0 or TH == H, (TH, W)
    n_strips = H // TH
    M, L = TH * W, (TH + 2) * W

    footprint = _strip_footprint(TH, W, Cin, Chid, Cout, mm_bytes, out_bytes)
    # Explicit scoped-VMEM limit (defaults are only 16/32 MiB); the default
    # budget keeps this comfortably under v7x's 64 MiB physical VMEM.
    vmem_limit = int(max(32 << 20, footprint * 5 // 4))

    cost = pl.CostEstimate(
        flops=2 * B * N * (Cin * Chid + Chid * Cout) + 18 * B * N * Chid,
        transcendentals=B * N * Chid,
        bytes_accessed=(B * N * (Cin * mm_bytes + Cout * out_bytes)
                        + (Cin * Chid + Chid * Cout) * mm_bytes
                        + 11 * Chid * 4 + Cout * 4),
    )

    kernel = functools.partial(_mlp_fused_kernel, W=W, TH=TH)
    grid_spec = pltpu.PrefetchScalarGridSpec(
        num_scalar_prefetch=0,
        grid=(B, n_strips),
        in_specs=[
            pl.BlockSpec((1, M, Cin), lambda b, h: (b, h, 0)),   # core rows (pipelined)
            pl.BlockSpec(memory_space=pl.ANY),                   # HBM alias for halo DMAs
            pl.BlockSpec((Cin, Chid), lambda b, h: (0, 0)),      # VMEM-resident weights
            pl.BlockSpec((1, Chid), lambda b, h: (0, 0)),
            pl.BlockSpec((9, Chid), lambda b, h: (0, 0)),
            pl.BlockSpec((1, Chid), lambda b, h: (0, 0)),
            pl.BlockSpec((Chid, Cout), lambda b, h: (0, 0)),
            pl.BlockSpec((1, Cout), lambda b, h: (0, 0)),
        ],
        out_specs=pl.BlockSpec((1, M, Cout), lambda b, h: (b, h, 0)),
        scratch_shapes=[
            pltpu.VMEM((2 * W, Cin), x.dtype),      # top + bottom halo rows
            pltpu.VMEM((L, Chid), jnp.float32),     # f32 hidden strip (+halo)
            pltpu.SemaphoreType.DMA((2,)),
        ],
    )
    return pl.pallas_call(
        kernel,
        out_shape=jax.ShapeDtypeStruct((B, N, Cout), out_dtype),
        grid_spec=grid_spec,
        cost_estimate=cost,
        compiler_params=pltpu.CompilerParams(
            dimension_semantics=("parallel", "parallel"),
            vmem_limit_bytes=vmem_limit),
    )(x, x, w1, b1, dw, bdw, w2, b2)


# ----------------------------- pure-JAX reference -----------------------------

def mlp_reference(x, params, H, W):
    B, N, Cin = x.shape
    w1, b1, dw, bdw, w2, b2 = (params[k] for k in
                               ("fc1_w", "fc1_b", "dw_w", "dw_b", "fc2_w", "fc2_b"))
    Chid = w1.shape[1]
    h = x @ w1 + b1
    h_nchw = jnp.transpose(h, (0, 2, 1)).reshape(B, Chid, H, W)
    w_oihw = jnp.transpose(dw.reshape(3, 3, Chid), (2, 0, 1))[:, None, :, :]  # (C,1,3,3)
    conv = lax.conv_general_dilated(h_nchw, w_oihw, (1, 1), "SAME",
                                    feature_group_count=Chid)
    conv = conv + bdw.reshape(1, Chid, 1, 1)
    act = jax.nn.gelu(conv, approximate=False)
    act = act.reshape(B, Chid, N).transpose(0, 2, 1)
    return act @ w2 + b2


# ----------------------------- main -------------------------------------------

if __name__ == "__main__":
    B, H, W = 2, 16, 16
    N = H * W
    Cin, Chid, Cout = 128, 256, 128     # lane-dense channel counts (multiples of 128)

    key = jax.random.PRNGKey(0)
    kx, k1, kb1, kdw, kbdw, k2, kb2 = jax.random.split(key, 7)

    x = jax.random.normal(kx, (B, N, Cin), dtype=jnp.float32)
    # Shapes follow Mlp.__init__: fc1 Linear(Cin,Chid), dwconv Conv2d(Chid,Chid,3,groups=Chid),
    # fc2 Linear(Chid,Cout).  Non-zero biases to exercise every code path.
    params = {
        "fc1_w": 0.02 * jax.random.normal(k1, (Cin, Chid), dtype=jnp.float32),
        "fc1_b": 0.05 * jax.random.normal(kb1, (1, Chid), dtype=jnp.float32),
        "dw_w": math.sqrt(2.0 / 9.0) * jax.random.normal(kdw, (9, Chid), dtype=jnp.float32),
        "dw_b": 0.05 * jax.random.normal(kbdw, (1, Chid), dtype=jnp.float32),
        "fc2_w": 0.02 * jax.random.normal(k2, (Chid, Cout), dtype=jnp.float32),
        "fc2_b": 0.05 * jax.random.normal(kb2, (1, Cout), dtype=jnp.float32),
    }

    ref = mlp_reference(x, params, H, W)

    # Default path: bf16 MXU operands, auto row-tile (single strip here), f32 output.
    out = jax.block_until_ready(mlp_forward(x, params, H, W))
    assert out.shape == (B, N, Cout), out.shape
    assert out.dtype == jnp.float32, out.dtype
    err = float(jnp.max(jnp.abs(out - ref)))
    assert err < 2e-2, f"bf16-MXU path max abs err {err}"

    # f32 MXU operands + forced 4-row strips: exercises halo DMAs and boundary strips.
    out32 = jax.block_until_ready(
        mlp_forward(x, params, H, W, row_tile=4, matmul_dtype=None))
    err32 = float(jnp.max(jnp.abs(out32 - ref)))
    assert err32 < 5e-3, f"f32 path max abs err {err32}"

    print("KERNEL_OK")
</pallas_src>

<mosaic_0001>
module attributes {stable_mosaic.version = 11 : i64} {
  func.func @_mlp_fused_kernel(%arg0: i32, %arg1: i32, %arg2: memref<1x256x128xbf16, #tpu.memory_space<vmem>>, %arg3: memref<2x256x128xbf16, #tpu.memory_space<any>>, %arg4: memref<128x256xbf16, #tpu.memory_space<vmem>>, %arg5: memref<1x256xf32, #tpu.memory_space<vmem>>, %arg6: memref<9x256xf32, #tpu.memory_space<vmem>>, %arg7: memref<1x256xf32, #tpu.memory_space<vmem>>, %arg8: memref<256x128xbf16, #tpu.memory_space<vmem>>, %arg9: memref<1x128xf32, #tpu.memory_space<vmem>>, %arg10: memref<1x256x128xf32, #tpu.memory_space<vmem>>, %arg11: memref<32x128xbf16, #tpu.memory_space<vmem>>, %arg12: memref<288x256xf32, #tpu.memory_space<vmem>>, %arg13: memref<2x!tpu.dma_semaphore, #tpu.memory_space<semaphore_mem>>) attributes {dimension_semantics = [#tpu.dimension_semantics<parallel>, #tpu.dimension_semantics<parallel>], iteration_bounds = array<i64: 2, 1>, scalar_prefetch = 0 : i64, scratch_operands = 3 : i64, tpu.core_type = #tpu.core_type<tc>, window_params = [{transform_indices = @transform_0, window_bounds = array<i64: 1, 256, 128>}, {}, {pipeline_mode = #tpu.pipeline_mode<synchronous>, transform_indices = @transform_2, window_bounds = array<i64: 128, 256>}, {pipeline_mode = #tpu.pipeline_mode<synchronous>, transform_indices = @transform_3, window_bounds = array<i64: 1, 256>}, {pipeline_mode = #tpu.pipeline_mode<synchronous>, transform_indices = @transform_4, window_bounds = array<i64: 9, 256>}, {pipeline_mode = #tpu.pipeline_mode<synchronous>, transform_indices = @transform_5, window_bounds = array<i64: 1, 256>}, {pipeline_mode = #tpu.pipeline_mode<synchronous>, transform_indices = @transform_6, window_bounds = array<i64: 256, 128>}, {pipeline_mode = #tpu.pipeline_mode<synchronous>, transform_indices = @transform_7, window_bounds = array<i64: 1, 128>}, {transform_indices = @transform_8, window_bounds = array<i64: 1, 256, 128>}]} {
    %c256_i32 = arith.constant 256 : i32
    %0 = arith.muli %arg1, %c256_i32 : i32
    %1 = tpu.assume_multiple %0, 16 : i32
    %c0_i32 = arith.constant 0 : i32
    %2 = arith.cmpi sgt, %arg1, %c0_i32 : i32
    %3 = arith.extui %2 : i1 to i32
    %c0_i32_0 = arith.constant 0 : i32
    %4 = arith.cmpi ne, %3, %c0_i32_0 : i32
    scf.if %4 {
      %c16_i32_54 = arith.constant 16 : i32
      %138 = arith.subi %1, %c16_i32_54 : i32
      %c0_i32_55 = arith.constant 0 : i32
      %c0_i32_56 = arith.constant 0 : i32
      %139 = tpu.memref_slice %arg3[%arg0, %138, %c0_i32_56] : memref<2x256x128xbf16, #tpu.memory_space<any>> -> memref<1x16x128xbf16, #tpu.memory_space<any>>
      %140 = tpu.memref_squeeze %139 : memref<1x16x128xbf16, #tpu.memory_space<any>> -> memref<16x128xbf16, #tpu.memory_space<any>>
      %c0_i32_57 = arith.constant 0 : i32
      %c0_i32_58 = arith.constant 0 : i32
      %141 = tpu.memref_slice %arg11[%c0_i32_57, %c0_i32_58] : memref<32x128xbf16, #tpu.memory_space<vmem>> -> memref<16x128xbf16, #tpu.memory_space<vmem>>
      %142 = tpu.memref_slice %arg13[%c0_i32_55] : memref<2x!tpu.dma_semaphore, #tpu.memory_space<semaphore_mem>> -> memref<1x!tpu.dma_semaphore, #tpu.memory_space<semaphore_mem>>
      %143 = tpu.memref_squeeze %142 : memref<1x!tpu.dma_semaphore, #tpu.memory_space<semaphore_mem>> -> memref<!tpu.dma_semaphore, #tpu.memory_space<semaphore_mem>>
      tpu.enqueue_dma source(%140 : memref<16x128xbf16, #tpu.memory_space<any>>) target(%141 : memref<16x128xbf16, #tpu.memory_space<vmem>>) target_semaphore(%143 : memref<!tpu.dma_semaphore, #tpu.memory_space<semaphore_mem>>)
    } else {
    }
    %c0_i32_1 = arith.constant 0 : i32
    %5 = arith.cmpi slt, %arg1, %c0_i32_1 : i32
    %6 = arith.extui %5 : i1 to i32
    %c0_i32_2 = arith.constant 0 : i32
    %7 = arith.cmpi ne, %6, %c0_i32_2 : i32
    scf.if %7 {
      %c256_i32_54 = arith.constant 256 : i32
      %138 = arith.addi %1, %c256_i32_54 : i32
      %c1_i32_55 = arith.constant 1 : i32
      %c0_i32_56 = arith.constant 0 : i32
      %139 = tpu.memref_slice %arg3[%arg0, %138, %c0_i32_56] : memref<2x256x128xbf16, #tpu.memory_space<any>> -> memref<1x16x128xbf16, #tpu.memory_space<any>>
      %140 = tpu.memref_squeeze %139 : memref<1x16x128xbf16, #tpu.memory_space<any>> -> memref<16x128xbf16, #tpu.memory_space<any>>
      %c16_i32_57 = arith.constant 16 : i32
      %c0_i32_58 = arith.constant 0 : i32
      %141 = tpu.memref_slice %arg11[%c16_i32_57, %c0_i32_58] : memref<32x128xbf16, #tpu.memory_space<vmem>> -> memref<16x128xbf16, #tpu.memory_space<vmem>>
      %142 = tpu.memref_slice %arg13[%c1_i32_55] : memref<2x!tpu.dma_semaphore, #tpu.memory_space<semaphore_mem>> -> memref<1x!tpu.dma_semaphore, #tpu.memory_space<semaphore_mem>>
      %143 = tpu.memref_squeeze %142 : memref<1x!tpu.dma_semaphore, #tpu.memory_space<semaphore_mem>> -> memref<!tpu.dma_semaphore, #tpu.memory_space<semaphore_mem>>
      tpu.enqueue_dma source(%140 : memref<16x128xbf16, #tpu.memory_space<any>>) target(%141 : memref<16x128xbf16, #tpu.memory_space<vmem>>) target_semaphore(%143 : memref<!tpu.dma_semaphore, #tpu.memory_space<semaphore_mem>>)
    } else {
    }
    %c0 = arith.constant 0 : index
    %c0_3 = arith.constant 0 : index
    %8 = vector.load %arg4[%c0, %c0_3] : memref<128x256xbf16, #tpu.memory_space<vmem>>, vector<128x256xbf16>
    %c0_4 = arith.constant 0 : index
    %c0_5 = arith.constant 0 : index
    %9 = vector.load %arg5[%c0_4, %c0_5] : memref<1x256xf32, #tpu.memory_space<vmem>>, vector<1x256xf32>
    %c0_6 = arith.constant 0 : index
    %c0_7 = arith.constant 0 : index
    %c0_8 = arith.constant 0 : index
    %10 = vector.load %arg2[%c0_6, %c0_7, %c0_8] : memref<1x256x128xbf16, #tpu.memory_space<vmem>>, vector<1x256x128xbf16>
    %11 = vector.shape_cast %10 : vector<1x256x128xbf16> to vector<256x128xbf16>
    %cst = arith.constant dense<0.000000e+00> : vector<256x256xf32>
    %12 = tpu.matmul %11, %8, %cst {dimension_numbers = #tpu.dot_dimension_numbers<[1], [0], [0], [1], [0, 0, 1, 1], [], []>} : vector<256x128xbf16>, vector<128x256xbf16>, vector<256x256xf32> -> vector<256x256xf32>
    %13 = vector.broadcast %9 : vector<1x256xf32> to vector<256x256xf32>
    %14 = arith.addf %12, %13 : vector<256x256xf32>
    %c16 = arith.constant 16 : index
    %c0_9 = arith.constant 0 : index
    %15 = vector.load %arg12[%c16, %c0_9] : memref<288x256xf32, #tpu.memory_space<vmem>>, vector<256x256xf32>
    tpu.vector_store %arg12[%c16, %c0_9], %14 {strides = array<i32>} : memref<288x256xf32, #tpu.memory_space<vmem>>, vector<256x256xf32>,
    %c0_i32_10 = arith.constant 0 : i32
    %16 = arith.cmpi sgt, %arg1, %c0_i32_10 : i32
    %17 = arith.extui %16 : i1 to i32
    %c0_i32_11 = arith.constant 0 : i32
    %18 = arith.cmpi ne, %17, %c0_i32_11 : i32
    scf.if %18 {
      %c16_i32_54 = arith.constant 16 : i32
      %138 = arith.subi %1, %c16_i32_54 : i32
      %c0_i32_55 = arith.constant 0 : i32
      %c0_i32_56 = arith.constant 0 : i32
      %139 = tpu.memref_slice %arg3[%arg0, %138, %c0_i32_56] : memref<2x256x128xbf16, #tpu.memory_space<any>> -> memref<1x16x128xbf16, #tpu.memory_space<any>>
      %140 = tpu.memref_squeeze %139 : memref<1x16x128xbf16, #tpu.memory_space<any>> -> memref<16x128xbf16, #tpu.memory_space<any>>
      %c0_i32_57 = arith.constant 0 : i32
      %c0_i32_58 = arith.constant 0 : i32
      %141 = tpu.memref_slice %arg11[%c0_i32_57, %c0_i32_58] : memref<32x128xbf16, #tpu.memory_space<vmem>> -> memref<16x128xbf16, #tpu.memory_space<vmem>>
      %142 = tpu.memref_slice %arg13[%c0_i32_55] : memref<2x!tpu.dma_semaphore, #tpu.memory_space<semaphore_mem>> -> memref<1x!tpu.dma_semaphore, #tpu.memory_space<semaphore_mem>>
      %143 = tpu.memref_squeeze %142 : memref<1x!tpu.dma_semaphore, #tpu.memory_space<semaphore_mem>> -> memref<!tpu.dma_semaphore, #tpu.memory_space<semaphore_mem>>
      tpu.wait_dma2 semaphore(%143 : memref<!tpu.dma_semaphore, #tpu.memory_space<semaphore_mem>>) src(%140 : memref<16x128xbf16, #tpu.memory_space<any>>) dst(%141 : memref<16x128xbf16, #tpu.memory_space<vmem>>)
      %c0_59 = arith.constant 0 : index
      %c0_60 = arith.constant 0 : index
      %144 = vector.load %arg11[%c0_59, %c0_60] : memref<32x128xbf16, #tpu.memory_space<vmem>>, vector<16x128xbf16>
      %cst_61 = arith.constant dense<0.000000e+00> : vector<16x256xf32>
      %145 = tpu.matmul %144, %8, %cst_61 {dimension_numbers = #tpu.dot_dimension_numbers<[1], [0], [0], [1], [0, 0, 1, 1], [], []>} : vector<16x128xbf16>, vector<128x256xbf16>, vector<16x256xf32> -> vector<16x256xf32>
      %146 = vector.broadcast %9 : vector<1x256xf32> to vector<16x256xf32>
      %147 = arith.addf %145, %146 : vector<16x256xf32>
      %c0_62 = arith.constant 0 : index
      %c0_63 = arith.constant 0 : index
      %148 = vector.load %arg12[%c0_62, %c0_63] : memref<288x256xf32, #tpu.memory_space<vmem>>, vector<16x256xf32>
      tpu.vector_store %arg12[%c0_62, %c0_63], %147 {strides = array<i32>} : memref<288x256xf32, #tpu.memory_space<vmem>>, vector<16x256xf32>,
    } else {
    }
    %c0_i32_12 = arith.constant 0 : i32
    %19 = arith.cmpi eq, %arg1, %c0_i32_12 : i32
    %20 = arith.extui %19 : i1 to i32
    %c0_i32_13 = arith.constant 0 : i32
    %21 = arith.cmpi ne, %20, %c0_i32_13 : i32
    scf.if %21 {
      %cst_54 = arith.constant 0.000000e+00 : f32
      %138 = vector.broadcast %cst_54 : f32 to vector<16x256xf32>
      %c0_55 = arith.constant 0 : index
      %c0_56 = arith.constant 0 : index
      %139 = vector.load %arg12[%c0_55, %c0_56] : memref<288x256xf32, #tpu.memory_space<vmem>>, vector<16x256xf32>
      tpu.vector_store %arg12[%c0_55, %c0_56], %138 {strides = array<i32>} : memref<288x256xf32, #tpu.memory_space<vmem>>, vector<16x256xf32>,
    } else {
    }
    %c0_i32_14 = arith.constant 0 : i32
    %22 = arith.cmpi slt, %arg1, %c0_i32_14 : i32
    %23 = arith.extui %22 : i1 to i32
    %c0_i32_15 = arith.constant 0 : i32
    %24 = arith.cmpi ne, %23, %c0_i32_15 : i32
    scf.if %24 {
      %c256_i32_54 = arith.constant 256 : i32
      %138 = arith.addi %1, %c256_i32_54 : i32
      %c1_i32_55 = arith.constant 1 : i32
      %c0_i32_56 = arith.constant 0 : i32
      %139 = tpu.memref_slice %arg3[%arg0, %138, %c0_i32_56] : memref<2x256x128xbf16, #tpu.memory_space<any>> -> memref<1x16x128xbf16, #tpu.memory_space<any>>
      %140 = tpu.memref_squeeze %139 : memref<1x16x128xbf16, #tpu.memory_space<any>> -> memref<16x128xbf16, #tpu.memory_space<any>>
      %c16_i32_57 = arith.constant 16 : i32
      %c0_i32_58 = arith.constant 0 : i32
      %141 = tpu.memref_slice %arg11[%c16_i32_57, %c0_i32_58] : memref<32x128xbf16, #tpu.memory_space<vmem>> -> memref<16x128xbf16, #tpu.memory_space<vmem>>
      %142 = tpu.memref_slice %arg13[%c1_i32_55] : memref<2x!tpu.dma_semaphore, #tpu.memory_space<semaphore_mem>> -> memref<1x!tpu.dma_semaphore, #tpu.memory_space<semaphore_mem>>
      %143 = tpu.memref_squeeze %142 : memref<1x!tpu.dma_semaphore, #tpu.memory_space<semaphore_mem>> -> memref<!tpu.dma_semaphore, #tpu.memory_space<semaphore_mem>>
      tpu.wait_dma2 semaphore(%143 : memref<!tpu.dma_semaphore, #tpu.memory_space<semaphore_mem>>) src(%140 : memref<16x128xbf16, #tpu.memory_space<any>>) dst(%141 : memref<16x128xbf16, #tpu.memory_space<vmem>>)
      %c16_59 = arith.constant 16 : index
      %c0_60 = arith.constant 0 : index
      %144 = vector.load %arg11[%c16_59, %c0_60] : memref<32x128xbf16, #tpu.memory_space<vmem>>, vector<16x128xbf16>
      %cst_61 = arith.constant dense<0.000000e+00> : vector<16x256xf32>
      %145 = tpu.matmul %144, %8, %cst_61 {dimension_numbers = #tpu.dot_dimension_numbers<[1], [0], [0], [1], [0, 0, 1, 1], [], []>} : vector<16x128xbf16>, vector<128x256xbf16>, vector<16x256xf32> -> vector<16x256xf32>
      %146 = vector.broadcast %9 : vector<1x256xf32> to vector<16x256xf32>
      %147 = arith.addf %145, %146 : vector<16x256xf32>
      %c272 = arith.constant 272 : index
      %c0_62 = arith.constant 0 : index
      %148 = vector.load %arg12[%c272, %c0_62] : memref<288x256xf32, #tpu.memory_space<vmem>>, vector<16x256xf32>
      tpu.vector_store %arg12[%c272, %c0_62], %147 {strides = array<i32>} : memref<288x256xf32, #tpu.memory_space<vmem>>, vector<16x256xf32>,
    } else {
    }
    %c0_i32_16 = arith.constant 0 : i32
    %25 = arith.cmpi eq, %arg1, %c0_i32_16 : i32
    %26 = arith.extui %25 : i1 to i32
    %c0_i32_17 = arith.constant 0 : i32
    %27 = arith.cmpi ne, %26, %c0_i32_17 : i32
    scf.if %27 {
      %cst_54 = arith.constant 0.000000e+00 : f32
      %138 = vector.broadcast %cst_54 : f32 to vector<16x256xf32>
      %c272 = arith.constant 272 : index
      %c0_55 = arith.constant 0 : index
      %139 = vector.load %arg12[%c272, %c0_55] : memref<288x256xf32, #tpu.memory_space<vmem>>, vector<16x256xf32>
      tpu.vector_store %arg12[%c272, %c0_55], %138 {strides = array<i32>} : memref<288x256xf32, #tpu.memory_space<vmem>>, vector<16x256xf32>,
    } else {
    }
    %c0_18 = arith.constant 0 : index
    %c0_19 = arith.constant 0 : index
    %28 = vector.load %arg6[%c0_18, %c0_19] : memref<9x256xf32, #tpu.memory_space<vmem>>, vector<9x256xf32>
    %29 = tpu.iota {dimensions = array<i32: 0>} : vector<256x1xi32>
    %c16_i32 = arith.constant 16 : i32
    %c0_i32_20 = arith.constant 0 : i32
    %30 = arith.cmpi eq, %c16_i32, %c0_i32_20 : i32
    %c1_i32 = arith.constant 1 : i32
    %31 = arith.select %30, %c1_i32, %c16_i32 : i32
    %32 = vector.broadcast %31 : i32 to vector<256x1xi32>
    %33 = arith.remsi %29, %32 : vector<256x1xi32>
    %c0_i32_21 = arith.constant 0 : i32
    %34 = vector.broadcast %c0_i32_21 : i32 to vector<256x1xi32>
    %35 = arith.cmpi ne, %33, %34 : vector<256x1xi32>
    %c0_i32_22 = arith.constant 0 : i32
    %36 = vector.broadcast %c0_i32_22 : i32 to vector<256x1xi32>
    %37 = arith.cmpi slt, %33, %36 : vector<256x1xi32>
    %c0_i32_23 = arith.constant 0 : i32
    %38 = arith.cmpi slt, %31, %c0_i32_23 : i32
    %39 = vector.broadcast %38 : i1 to vector<256x1xi1>
    %40 = vector.broadcast %39 : vector<256x1xi1> to vector<256x1xi1>
    %41 = arith.xori %37, %40 : vector<256x1xi1>
    %42 = arith.andi %41, %35 : vector<256x1xi1>
    %43 = vector.broadcast %31 : i32 to vector<256x1xi32>
    %44 = arith.addi %33, %43 : vector<256x1xi32>
    %45 = arith.select %42, %44, %33 : vector<256x1xi1>, vector<256x1xi32>
    %c0_i32_24 = arith.constant 0 : i32
    %46 = vector.broadcast %c0_i32_24 : i32 to vector<256x1xi32>
    %47 = arith.cmpi ne, %45, %46 : vector<256x1xi32>
    %c15_i32 = arith.constant 15 : i32
    %48 = vector.broadcast %c15_i32 : i32 to vector<256x1xi32>
    %49 = arith.cmpi ne, %45, %48 : vector<256x1xi32>
    %c0_25 = arith.constant 0 : index
    %c0_26 = arith.constant 0 : index
    %50 = vector.load %arg12[%c0_25, %c0_26] : memref<288x256xf32, #tpu.memory_space<vmem>>, vector<256x256xf32>
    %c1_i32_27 = arith.constant 1 : i32
    %51 = tpu.dynamic_rotate %50 by %c1_i32_27 dim 0 : vector<256x256xf32>, i32 -> vector<256x256xf32>
    %cst_28 = arith.constant 0.000000e+00 : f32
    %52 = vector.shape_cast %47 : vector<256x1xi1> to vector<256x1xi1>
    %53 = vector.broadcast %52 : vector<256x1xi1> to vector<256x256xi1>
    %54 = vector.broadcast %cst_28 : f32 to vector<256x256xf32>
    %55 = arith.select %53, %51, %54 : vector<256x256xi1>, vector<256x256xf32>
    %c255_i32 = arith.constant 255 : i32
    %56 = tpu.dynamic_rotate %50 by %c255_i32 dim 0 : vector<256x256xf32>, i32 -> vector<256x256xf32>
    %cst_29 = arith.constant 0.000000e+00 : f32
    %57 = vector.shape_cast %49 : vector<256x1xi1> to vector<256x1xi1>
    %58 = vector.broadcast %57 : vector<256x1xi1> to vector<256x256xi1>
    %59 = vector.broadcast %cst_29 : f32 to vector<256x256xf32>
    %60 = arith.select %58, %56, %59 : vector<256x256xi1>, vector<256x256xf32>
    %61 = vector.extract_strided_slice %28 {offsets = [0, 0], sizes = [1, 256], strides = [1, 1]} : vector<9x256xf32> to vector<1x256xf32>
    %62 = vector.broadcast %61 : vector<1x256xf32> to vector<256x256xf32>
    %63 = arith.mulf %55, %62 : vector<256x256xf32>
    %64 = vector.extract_strided_slice %28 {offsets = [1, 0], sizes = [1, 256], strides = [1, 1]} : vector<9x256xf32> to vector<1x256xf32>
    %65 = vector.broadcast %64 : vector<1x256xf32> to vector<256x256xf32>
    %66 = arith.mulf %50, %65 : vector<256x256xf32>
    %67 = arith.addf %63, %66 : vector<256x256xf32>
    %68 = vector.extract_strided_slice %28 {offsets = [2, 0], sizes = [1, 256], strides = [1, 1]} : vector<9x256xf32> to vector<1x256xf32>
    %69 = vector.broadcast %68 : vector<1x256xf32> to vector<256x256xf32>
    %70 = arith.mulf %60, %69 : vector<256x256xf32>
    %71 = arith.addf %67, %70 : vector<256x256xf32>
    %c16_30 = arith.constant 16 : index
    %c0_31 = arith.constant 0 : index
    %72 = vector.load %arg12[%c16_30, %c0_31] : memref<288x256xf32, #tpu.memory_space<vmem>>, vector<256x256xf32>
    %c1_i32_32 = arith.constant 1 : i32
    %73 = tpu.dynamic_rotate %72 by %c1_i32_32 dim 0 : vector<256x256xf32>, i32 -> vector<256x256xf32>
    %cst_33 = arith.constant 0.000000e+00 : f32
    %74 = vector.shape_cast %47 : vector<256x1xi1> to vector<256x1xi1>
    %75 = vector.broadcast %74 : vector<256x1xi1> to vector<256x256xi1>
    %76 = vector.broadcast %cst_33 : f32 to vector<256x256xf32>
    %77 = arith.select %75, %73, %76 : vector<256x256xi1>, vector<256x256xf32>
    %c255_i32_34 = arith.constant 255 : i32
    %78 = tpu.dynamic_rotate %72 by %c255_i32_34 dim 0 : vector<256x256xf32>, i32 -> vector<256x256xf32>
    %cst_35 = arith.constant 0.000000e+00 : f32
    %79 = vector.shape_cast %49 : vector<256x1xi1> to vector<256x1xi1>
    %80 = vector.broadcast %79 : vector<256x1xi1> to vector<256x256xi1>
    %81 = vector.broadcast %cst_35 : f32 to vector<256x256xf32>
    %82 = arith.select %80, %78, %81 : vector<256x256xi1>, vector<256x256xf32>
    %83 = vector.extract_strided_slice %28 {offsets = [3, 0], sizes = [1, 256], strides = [1, 1]} : vector<9x256xf32> to vector<1x256xf32>
    %84 = vector.broadcast %83 : vector<1x256xf32> to vector<256x256xf32>
    %85 = arith.mulf %77, %84 : vector<256x256xf32>
    %86 = vector.extract_strided_slice %28 {offsets = [4, 0], sizes = [1, 256], strides = [1, 1]} : vector<9x256xf32> to vector<1x256xf32>
    %87 = vector.broadcast %86 : vector<1x256xf32> to vector<256x256xf32>
    %88 = arith.mulf %72, %87 : vector<256x256xf32>
    %89 = arith.addf %85, %88 : vector<256x256xf32>
    %90 = vector.extract_strided_slice %28 {offsets = [5, 0], sizes = [1, 256], strides = [1, 1]} : vector<9x256xf32> to vector<1x256xf32>
    %91 = vector.broadcast %90 : vector<1x256xf32> to vector<256x256xf32>
    %92 = arith.mulf %82, %91 : vector<256x256xf32>
    %93 = arith.addf %89, %92 : vector<256x256xf32>
    %94 = arith.addf %71, %93 : vector<256x256xf32>
    %c32 = arith.constant 32 : index
    %c0_36 = arith.constant 0 : index
    %95 = vector.load %arg12[%c32, %c0_36] : memref<288x256xf32, #tpu.memory_space<vmem>>, vector<256x256xf32>
    %c1_i32_37 = arith.constant 1 : i32
    %96 = tpu.dynamic_rotate %95 by %c1_i32_37 dim 0 : vector<256x256xf32>, i32 -> vector<256x256xf32>
    %cst_38 = arith.constant 0.000000e+00 : f32
    %97 = vector.shape_cast %47 : vector<256x1xi1> to vector<256x1xi1>
    %98 = vector.broadcast %97 : vector<256x1xi1> to vector<256x256xi1>
    %99 = vector.broadcast %cst_38 : f32 to vector<256x256xf32>
    %100 = arith.select %98, %96, %99 : vector<256x256xi1>, vector<256x256xf32>
    %c255_i32_39 = arith.constant 255 : i32
    %101 = tpu.dynamic_rotate %95 by %c255_i32_39 dim 0 : vector<256x256xf32>, i32 -> vector<256x256xf32>
    %cst_40 = arith.constant 0.000000e+00 : f32
    %102 = vector.shape_cast %49 : vector<256x1xi1> to vector<256x1xi1>
    %103 = vector.broadcast %102 : vector<256x1xi1> to vector<256x256xi1>
    %104 = vector.broadcast %cst_40 : f32 to vector<256x256xf32>
    %105 = arith.select %103, %101, %104 : vector<256x256xi1>, vector<256x256xf32>
    %106 = vector.extract_strided_slice %28 {offsets = [6, 0], sizes = [1, 256], strides = [1, 1]} : vector<9x256xf32> to vector<1x256xf32>
    %107 = vector.broadcast %106 : vector<1x256xf32> to vector<256x256xf32>
    %108 = arith.mulf %100, %107 : vector<256x256xf32>
    %109 = vector.extract_strided_slice %28 {offsets = [7, 0], sizes = [1, 256], strides = [1, 1]} : vector<9x256xf32> to vector<1x256xf32>
    %110 = vector.broadcast %109 : vector<1x256xf32> to vector<256x256xf32>
    %111 = arith.mulf %95, %110 : vector<256x256xf32>
    %112 = arith.addf %108, %111 : vector<256x256xf32>
    %113 = vector.extract_strided_slice %28 {offsets = [8, 0], sizes = [1, 256], strides = [1, 1]} : vector<9x256xf32> to vector<1x256xf32>
    %114 = vector.broadcast %113 : vector<1x256xf32> to vector<256x256xf32>
    %115 = arith.mulf %105, %114 : vector<256x256xf32>
    %116 = arith.addf %112, %115 : vector<256x256xf32>
    %117 = arith.addf %94, %116 : vector<256x256xf32>
    %c0_41 = arith.constant 0 : index
    %c0_42 = arith.constant 0 : index
    %118 = vector.load %arg7[%c0_41, %c0_42] : memref<1x256xf32, #tpu.memory_space<vmem>>, vector<1x256xf32>
    %119 = vector.broadcast %118 : vector<1x256xf32> to vector<256x256xf32>
    %120 = arith.addf %117, %119 : vector<256x256xf32>
    %cst_43 = arith.constant 5.000000e-01 : f32
    %121 = vector.broadcast %cst_43 : f32 to vector<256x256xf32>
    %122 = arith.mulf %121, %120 : vector<256x256xf32>
    %cst_44 = arith.constant 0.707106769 : f32
    %123 = vector.broadcast %cst_44 : f32 to vector<256x256xf32>
    %124 = arith.mulf %120, %123 : vector<256x256xf32>
    %125 = math.erf %124 : vector<256x256xf32>
    %cst_45 = arith.constant 1.000000e+00 : f32
    %126 = vector.broadcast %cst_45 : f32 to vector<256x256xf32>
    %127 = arith.addf %126, %125 : vector<256x256xf32>
    %128 = arith.mulf %122, %127 : vector<256x256xf32>
    %129 = arith.truncf %128 : vector<256x256xf32> to vector<256x256xbf16>
    %c0_46 = arith.constant 0 : index
    %c0_47 = arith.constant 0 : index
    %130 = vector.load %arg8[%c0_46, %c0_47] : memref<256x128xbf16, #tpu.memory_space<vmem>>, vector<256x128xbf16>
    %cst_48 = arith.constant dense<0.000000e+00> : vector<256x128xf32>
    %131 = tpu.matmul %129, %130, %cst_48 {dimension_numbers = #tpu.dot_dimension_numbers<[1], [0], [0], [1], [0, 0, 1, 1], [], []>} : vector<256x256xbf16>, vector<256x128xbf16>, vector<256x128xf32> -> vector<256x128xf32>
    %c0_49 = arith.constant 0 : index
    %c0_50 = arith.constant 0 : index
    %132 = vector.load %arg9[%c0_49, %c0_50] : memref<1x128xf32, #tpu.memory_space<vmem>>, vector<1x128xf32>
    %133 = vector.broadcast %132 : vector<1x128xf32> to vector<256x128xf32>
    %134 = arith.addf %131, %133 : vector<256x128xf32>
    %c0_51 = arith.constant 0 : index
    %c0_52 = arith.constant 0 : index
    %c0_53 = arith.constant 0 : index
    %135 = vector.load %arg10[%c0_51, %c0_52, %c0_53] : memref<1x256x128xf32, #tpu.memory_space<vmem>>, vector<1x256x128xf32>
    %136 = vector.shape_cast %135 : vector<1x256x128xf32> to vector<256x128xf32>
    %137 = vector.shape_cast %134 : vector<256x128xf32> to vector<1x256x128xf32>
    tpu.vector_store %arg10[%c0_51, %c0_52, %c0_53], %137 {strides = array<i32>} : memref<1x256x128xf32, #tpu.memory_space<vmem>>, vector<1x256x128xf32>,
    return
  }
  func.func @transform_0(%arg0: i32, %arg1: i32) -> (i32, i32, i32) {
    %c0_i32 = arith.constant 0 : i32
    %c0_i32_0 = arith.constant 0 : i32
    return %arg0, %arg1, %c0_i32 : i32, i32, i32
  }
  func.func @transform_2(%arg0: i32, %arg1: i32) -> (i32, i32) {
    %c0_i32 = arith.constant 0 : i32
    %c0_i32_0 = arith.constant 0 : i32
    %c0_i32_1 = arith.constant 0 : i32
    return %c0_i32, %c0_i32_0 : i32, i32
  }
  func.func @transform_3(%arg0: i32, %arg1: i32) -> (i32, i32) {
    %c0_i32 = arith.constant 0 : i32
    %c0_i32_0 = arith.constant 0 : i32
    %c0_i32_1 = arith.constant 0 : i32
    return %c0_i32, %c0_i32_0 : i32, i32
  }
  func.func @transform_4(%arg0: i32, %arg1: i32) -> (i32, i32) {
    %c0_i32 = arith.constant 0 : i32
    %c0_i32_0 = arith.constant 0 : i32
    %c0_i32_1 = arith.constant 0 : i32
    return %c0_i32, %c0_i32_0 : i32, i32
  }
  func.func @transform_5(%arg0: i32, %arg1: i32) -> (i32, i32) {
    %c0_i32 = arith.constant 0 : i32
    %c0_i32_0 = arith.constant 0 : i32
    %c0_i32_1 = arith.constant 0 : i32
    return %c0_i32, %c0_i32_0 : i32, i32
  }
  func.func @transform_6(%arg0: i32, %arg1: i32) -> (i32, i32) {
    %c0_i32 = arith.constant 0 : i32
    %c0_i32_0 = arith.constant 0 : i32
    %c0_i32_1 = arith.constant 0 : i32
    return %c0_i32, %c0_i32_0 : i32, i32
  }
  func.func @transform_7(%arg0: i32, %arg1: i32) -> (i32, i32) {
    %c0_i32 = arith.constant 0 : i32
    %c0_i32_0 = arith.constant 0 : i32
    %c0_i32_1 = arith.constant 0 : i32
    return %c0_i32, %c0_i32_0 : i32, i32
  }
  func.func @transform_8(%arg0: i32, %arg1: i32) -> (i32, i32, i32) {
    %c0_i32 = arith.constant 0 : i32
    %c0_i32_0 = arith.constant 0 : i32
    return %arg0, %arg1, %c0_i32 : i32, i32, i32
  }
}

</mosaic_0001>

<llo_original>
// kernel: tpu_custom_call.1
$region0: #{tpu_custom_call.1}
  #allocation0 [shape = 'u32[]', space=smem, size = 0x4, offset = 0x4, fixed_abs, tag = 'smem constant byte address 0x4 - core index']
  #allocation1 [shape = 'u32[144,128]{1,0:T(1,128)}', space=vmem, size = 0x12000, scoped, tag = 'internal scratch']
  #allocation2 [shape = 'bf16[32,128]{1,0:T(16,128)(2,1)}', space=vmem, size = 0x2000, scoped, tag = 'scratch operand']
  #allocation3 [shape = 'f32[288,256]{1,0:T(8,128)}', space=vmem, size = 0x48000, scoped, tag = 'scratch operand']
  #allocation4 [shape = 's32[2]{0}', space=sflag, size = 0x8, scoped, tag = 'scratch operand']
  #allocation14 [shape = 's32[]', space=sflag, size = 0x4, offset = 0, fixed_abs, tag = 'sflag constant byte address 0x0 - dummy sync flag']
  #allocation15 [shape = 's32[]', space=sflag, size = 0x4, offset = 0, fixed_abs, tag = 'sflag constant byte address 0x0 - dummy sync flag']
  #allocation16 [shape = 'u32[]', space=smem, size = 0x4, offset = 0x44, fixed_abs, tag = 'smem constant byte address 0x44 - assertion arg 0']
  #allocation17 [shape = 'u32[]', space=smem, size = 0x4, offset = 0x48, fixed_abs, tag = 'smem constant byte address 0x48 - assertion arg 1']
  #allocation18 [shape = 's32[]', space=sflag, size = 0x4, offset = 0, fixed_abs, tag = 'sflag constant byte address 0x0 - dummy sync flag']
  #allocation19 [shape = 's32[]', space=sflag, size = 0x4, offset = 0, fixed_abs, tag = 'sflag constant byte address 0x0 - dummy sync flag']
  %s0 = inlined_call_operand.hbm [shape: bf16[2,256,128], index: 0, kind: input, shape index: {}]
  %s1 = inlined_call_operand.hbm [shape: bf16[2,256,128], index: 1, kind: input, shape index: {}]
  %s2 = inlined_call_operand.hbm [shape: bf16[128,256], index: 2, kind: input, shape index: {}]
  %s3 = inlined_call_operand.vmem [shape: f32[1,256], index: 3, kind: input, shape index: {}]
  %s4 = inlined_call_operand.hbm [shape: f32[9,256], index: 4, kind: input, shape index: {}]
  %s5 = inlined_call_operand.vmem [shape: f32[1,256], index: 5, kind: input, shape index: {}]
  %s6 = inlined_call_operand.hbm [shape: bf16[256,128], index: 6, kind: input, shape index: {}]
  %s7 = inlined_call_operand.vmem [shape: f32[1,128], index: 7, kind: input, shape index: {}]
  %s8 = inlined_call_operand.hbm [shape: f32[2,256,128], index: 8, kind: output, shape index: {}]
  %s9 = sld [smem:[#allocation0]]
  $region109: #{tpu_custom_call.1} parent=0
    _
  %s11 = ssub.s32 1, %s9
  %s12 = scalar_select 0, %s11, %s9
  $region1: #{tpu_custom_call.1} parent=0
    #allocation5 [shape = 'u8[131072]{0}', space=vmem, size = 0x20000, scoped, tag = 'input window, operand 0']
    #allocation6 [shape = 's32[2]{0}', space=sflag, size = 0x8, scoped, tag = 'scoped memory for tpu_custom_call.1']
    #allocation7 [shape = 's32[2]{0}', space=sflag, size = 0x8, scoped, tag = 'scoped memory for tpu_custom_call.1']
    #allocation8 [shape = 'u8[65536]{0}', space=vmem, size = 0x10000, scoped, tag = 'input window, operand 2, single buffered']
    #allocation9 [shape = 's32[1]{0}', space=sflag, size = 0x4, scoped, tag = 'scoped memory for tpu_custom_call.1']
    #allocation10 [shape = 'u8[16384]{0}', space=vmem, size = 0x4000, scoped, tag = 'input window, operand 4, single buffered']
    #allocation11 [shape = 'u8[65536]{0}', space=vmem, size = 0x10000, scoped, tag = 'input window, operand 6, single buffered']
    #allocation12 [shape = 's32[1]{0}', space=sflag, size = 0x4, scoped, tag = 'scoped memory for tpu_custom_call.1']
    #allocation13 [shape = 'u8[262144]{0}', space=vmem, size = 0x40000, scoped, tag = 'output window, operand 0']
    %13 = vsyncpa [#allocation6], 0
    %s14 = scalar_lea.sflag [#allocation6], 1
    %15 = vsyncpa %s14, 0
    %16 = vsyncpa [#allocation9], 0
    %17 = vsyncpa [#allocation12], 0
    %18 = vsyncpa [#allocation7], 0
    %s19 = scalar_lea.sflag [#allocation7], 1
    %20 = vsyncpa %s19, 0
    loop: start=0, step=1, limit=4
    $region2: #{tpu_custom_call.1} parent=1 // loop_pre_header
      _
    $region3: #{tpu_custom_call.1} parent=1 // loop_header
      %s22 = sphi 0, %s26
      %p23 = scmp.ge.s32.totalorder %s22, 4
      %s29 = sphi 0, %s41
      %s30 = sphi 0, %s37
      %s31 = sphi 0, %s29
      %s32 = sphi 0, %s30
      %s33 = sphi 0, %s31
      %s34 = sphi 0, %s32
      %s46 = sphi 0, %s48
      %s49 = sphi 0, %s46
      %s50 = sphi 0, %s49
      %s66 = sphi 0, %s50
      %s70 = sphi 0, %s70
      %s72 = sphi 0, %s70
      %s73 = sphi 0, %s72
      %s87 = sphi 0, %s73
      %s91 = sphi 0, %s91
      %s93 = sphi 0, %s91
      %s94 = sphi 0, %s93
      %s108 = sphi 0, %s94
      %s112 = sphi 0, %s112
      %s114 = sphi 0, %s112
      %s115 = sphi 0, %s114
      %s129 = sphi 0, %s115
      %s133 = sphi 0, %s133
      %s135 = sphi 0, %s133
      %s136 = sphi 0, %s135
      %s150 = sphi 0, %s136
      %s154 = sphi 0, %s154
      %s156 = sphi 0, %s154
      %s157 = sphi 0, %s156
      %s171 = sphi 0, %s157
      %s175 = sphi 0, %s175
      %s177 = sphi 0, %s175
      %s178 = sphi 0, %s177
      %s192 = sphi 0, %s178
      %s200 = sphi 0, %s202
      %s203 = sphi 0, %s200
      %s204 = sphi 0, %s203
      %s220 = sphi 0, %s204
    $region4: #{tpu_custom_call.1} parent=1 // loop_header_branch
      %25 = sbr.rel (%p23) target = $region8
    $region5: #{tpu_custom_call.1} parent=1 // loop_body
      %s27 = ssub.s32 %s22, 1
      %s28 = ssub.s32 %s22, 2
      %s35 = sadd.s32 1, %s30
      %p36 = scmp.ge.s32.totalorder %s35, 1
      %s37 = scalar_select %p36, 0, %s35
      %s38 = sadd.s32 1, %s29
      %s39 = scalar_select %p36, %s38, %s29
      %p40 = scmp.ge.s32.totalorder %s39, 2
      %s41 = scalar_select %p40, 0, %s39
      %s42 = ssub.s32 %s29, %s41
      %s43 = ssub.s32 %s30, %s37
      %s44 = sor.u32 %s42, %s43
      %p45 = scmp.eq.s32.totalorder %s44, 0
      %s47 = sadd.s32 %s46, 1
      %s48 = scalar_select %p45, %s46, %s47
      %p51 = pneg %p45
      %p52 = scmp.eq.s32.totalorder %s22, 1
      %p53 = por %p51, %p52
      %p54 = scmp.ne.s32.totalorder %s46, %s49
      %p55 = scmp.eq.s32.totalorder %s22, 0
      %p56 = por %p54, %p55
      %p57 = scmp.ne.s32.totalorder %s46, %s49
      %p58 = scmp.eq.s32.totalorder %s27, 1
      %p59 = por %p57, %p58
      %p60 = scmp.ne.s32.totalorder %s49, %s50
      %p61 = scmp.eq.s32.totalorder %s27, 0
      %p62 = por %p60, %p61
      %p63 = scmp.ne.s32.totalorder %s49, %s50
      %p64 = scmp.eq.s32.totalorder %s28, 1
      %p65 = por %p63, %p64
      %p67 = scmp.ne.s32.totalorder %s50, %s66
      %p68 = scmp.eq.s32.totalorder %s28, 0
      %p69 = por %p67, %p68
      %s71 = sadd.s32 %s70, 1
      %p74 = scmp.eq.s32.totalorder %s22, 1
      %p75 = scmp.ne.s32.totalorder %s70, %s72
      %p76 = scmp.eq.s32.totalorder %s22, 0
      %p77 = por %p75, %p76
      %p78 = scmp.ne.s32.totalorder %s70, %s72
      %p79 = scmp.eq.s32.totalorder %s27, 1
      %p80 = por %p78, %p79
      %p81 = scmp.ne.s32.totalorder %s72, %s73
      %p82 = scmp.eq.s32.totalorder %s27, 0
      %p83 = por %p81, %p82
      %p84 = scmp.ne.s32.totalorder %s72, %s73
      %p85 = scmp.eq.s32.totalorder %s28, 1
      %p86 = por %p84, %p85
      %p88 = scmp.ne.s32.totalorder %s73, %s87
      %p89 = scmp.eq.s32.totalorder %s28, 0
      %p90 = por %p88, %p89
      %s92 = sadd.s32 %s91, 1
      %p95 = scmp.eq.s32.totalorder %s22, 1
      %p96 = scmp.ne.s32.totalorder %s91, %s93
      %p97 = scmp.eq.s32.totalorder %s22, 0
      %p98 = por %p96, %p97
      %p99 = scmp.ne.s32.totalorder %s91, %s93
      %p100 = scmp.eq.s32.totalorder %s27, 1
      %p101 = por %p99, %p100
      %p102 = scmp.ne.s32.totalorder %s93, %s94
      %p103 = scmp.eq.s32.totalorder %s27, 0
      %p104 = por %p102, %p103
      %p105 = scmp.ne.s32.totalorder %s93, %s94
      %p106 = scmp.eq.s32.totalorder %s28, 1
      %p107 = por %p105, %p106
      %p109 = scmp.ne.s32.totalorder %s94, %s108
      %p110 = scmp.eq.s32.totalorder %s28, 0
      %p111 = por %p109, %p110
      %s113 = sadd.s32 %s112, 1
      %p116 = scmp.eq.s32.totalorder %s22, 1
      %p117 = scmp.ne.s32.totalorder %s112, %s114
      %p118 = scmp.eq.s32.totalorder %s22, 0
      %p119 = por %p117, %p118
      %p120 = scmp.ne.s32.totalorder %s112, %s114
      %p121 = scmp.eq.s32.totalorder %s27, 1
      %p122 = por %p120, %p121
      %p123 = scmp.ne.s32.totalorder %s114, %s115
      %p124 = scmp.eq.s32.totalorder %s27, 0
      %p125 = por %p123, %p124
      %p126 = scmp.ne.s32.totalorder %s114, %s115
      %p127 = scmp.eq.s32.totalorder %s28, 1
      %p128 = por %p126, %p127
      %p130 = scmp.ne.s32.totalorder %s115, %s129
      %p131 = scmp.eq.s32.totalorder %s28, 0
      %p132 = por %p130, %p131
      %s134 = sadd.s32 %s133, 1
      %p137 = scmp.eq.s32.totalorder %s22, 1
      %p138 = scmp.ne.s32.totalorder %s133, %s135
      %p139 = scmp.eq.s32.totalorder %s22, 0
      %p140 = por %p138, %p139
      %p141 = scmp.ne.s32.totalorder %s133, %s135
      %p142 = scmp.eq.s32.totalorder %s27, 1
      %p143 = por %p141, %p142
      %p144 = scmp.ne.s32.totalorder %s135, %s136
      %p145 = scmp.eq.s32.totalorder %s27, 0
      %p146 = por %p144, %p145
      %p147 = scmp.ne.s32.totalorder %s135, %s136
      %p148 = scmp.eq.s32.totalorder %s28, 1
      %p149 = por %p147, %p148
      %p151 = scmp.ne.s32.totalorder %s136, %s150
      %p152 = scmp.eq.s32.totalorder %s28, 0
      %p153 = por %p151, %p152
      %s155 = sadd.s32 %s154, 1
      %p158 = scmp.eq.s32.totalorder %s22, 1
      %p159 = scmp.ne.s32.totalorder %s154, %s156
      %p160 = scmp.eq.s32.totalorder %s22, 0
      %p161 = por %p159, %p160
      %p162 = scmp.ne.s32.totalorder %s154, %s156
      %p163 = scmp.eq.s32.totalorder %s27, 1
      %p164 = por %p162, %p163
      %p165 = scmp.ne.s32.totalorder %s156, %s157
      %p166 = scmp.eq.s32.totalorder %s27, 0
      %p167 = por %p165, %p166
      %p168 = scmp.ne.s32.totalorder %s156, %s157
      %p169 = scmp.eq.s32.totalorder %s28, 1
      %p170 = por %p168, %p169
      %p172 = scmp.ne.s32.totalorder %s157, %s171
      %p173 = scmp.eq.s32.totalorder %s28, 0
      %p174 = por %p172, %p173
      %s176 = sadd.s32 %s175, 1
      %p179 = scmp.eq.s32.totalorder %s22, 1
      %p180 = scmp.ne.s32.totalorder %s175, %s177
      %p181 = scmp.eq.s32.totalorder %s22, 0
      %p182 = por %p180, %p181
      %p183 = scmp.ne.s32.totalorder %s175, %s177
      %p184 = scmp.eq.s32.totalorder %s27, 1
      %p185 = por %p183, %p184
      %p186 = scmp.ne.s32.totalorder %s177, %s178
      %p187 = scmp.eq.s32.totalorder %s27, 0
      %p188 = por %p186, %p187
      %p189 = scmp.ne.s32.totalorder %s177, %s178
      %p190 = scmp.eq.s32.totalorder %s28, 1
      %p191 = por %p189, %p190
      %p193 = scmp.ne.s32.totalorder %s178, %s192
      %p194 = scmp.eq.s32.totalorder %s28, 0
      %p195 = por %p193, %p194
      %s196 = ssub.s32 %s29, %s41
      %s197 = ssub.s32 %s30, %s37
      %s198 = sor.u32 %s196, %s197
      %p199 = scmp.eq.s32.totalorder %s198, 0
      %s201 = sadd.s32 %s200, 1
      %s202 = scalar_select %p199, %s200, %s201
      %p205 = pneg %p199
      %p206 = scmp.eq.s32.totalorder %s22, 1
      %p207 = por %p205, %p206
      %p208 = scmp.ne.s32.totalorder %s200, %s203
      %p209 = scmp.eq.s32.totalorder %s22, 0
      %p210 = por %p208, %p209
      %p211 = scmp.ne.s32.totalorder %s200, %s203
      %p212 = scmp.eq.s32.totalorder %s27, 1
      %p213 = por %p211, %p212
      %p214 = scmp.ne.s32.totalorder %s203, %s204
      %p215 = scmp.eq.s32.totalorder %s27, 0
      %p216 = por %p214, %p215
      %p217 = scmp.ne.s32.totalorder %s203, %s204
      %p218 = scmp.eq.s32.totalorder %s28, 1
      %p219 = por %p217, %p218
      %p221 = scmp.ne.s32.totalorder %s204, %s220
      %p222 = scmp.eq.s32.totalorder %s28, 0
      %p223 = por %p221, %p222
      %p224 = scmp.le.s32.totalorder 1, %s22
      %p225 = scmp.lt.s32.totalorder %s22, 3
      %p226 = pnand %p224, %p225
      %p227 = pneg %p226
      // Predicated region
      $region9: #{tpu_custom_call.1} parent=5 // pred_check
        _
      $region10: #{tpu_custom_call.1} parent=5 // pred_check_branch
        %229 = sbr.rel (%p226) target = $region12
      $region11: #{tpu_custom_call.1} parent=5 // pred_region
        %s230 = ssub.s32 %s22, 1
        // Predicated region
        $region13: #{tpu_custom_call.1} parent=11 // pred_check
          %p231 = pneg %p83
        $region14: #{tpu_custom_call.1} parent=11 // pred_check_branch
          %233 = sbr.rel (%p231) target = $region16
        $region15: #{tpu_custom_call.1} parent=11 // pred_region
          %s235 = ssub.s32 2048, 2048
          %236 = vsyncadd [#allocation9], %s235
          %s237 = sshll.u32 [#allocation8], 4
          %s238 = int_to_ptr.vmem [resolvable:$true] %s237
          %243 = dma.hbm_to_vmem [thread:$0]  %s2, 2048, %s238, [#allocation9], 128, 128, 8
        $region16: #{tpu_custom_call.1} parent=11 // pred_fallthru
          _
        // Predicated region
        $region17: #{tpu_custom_call.1} parent=11 // pred_check
          %p244 = pneg %p104
        $region18: #{tpu_custom_call.1} parent=11 // pred_check_branch
          %246 = sbr.rel (%p244) target = $region20
        $region19: #{tpu_custom_call.1} parent=11 // pred_region
          _
        $region20: #{tpu_custom_call.1} parent=11 // pred_fallthru
          _
        // Predicated region
        $region21: #{tpu_custom_call.1} parent=11 // pred_check
          %p247 = pneg %p125
        $region22: #{tpu_custom_call.1} parent=11 // pred_check_branch
          %249 = sbr.rel (%p247) target = $region24
        $region23: #{tpu_custom_call.1} parent=11 // pred_region
          %s251 = ssub.s32 512, 512
          %252 = vsyncadd [#allocation9], %s251
          %s253 = sshll.u32 [#allocation10], 4
          %s254 = int_to_ptr.vmem [resolvable:$true] %s253
          %259 = dma.hbm_to_vmem [thread:$0]  %s4, 512, %s254, [#allocation9], 256, 256, 16
        $region24: #{tpu_custom_call.1} parent=11 // pred_fallthru
          _
        // Predicated region
        $region25: #{tpu_custom_call.1} parent=11 // pred_check
          %p260 = pneg %p146
        $region26: #{tpu_custom_call.1} parent=11 // pred_check_branch
          %262 = sbr.rel (%p260) target = $region28
        $region27: #{tpu_custom_call.1} parent=11 // pred_region
          _
        $region28: #{tpu_custom_call.1} parent=11 // pred_fallthru
          _
        // Predicated region
        $region29: #{tpu_custom_call.1} parent=11 // pred_check
          %p263 = pneg %p167
        $region30: #{tpu_custom_call.1} parent=11 // pred_check_branch
          %265 = sbr.rel (%p263) target = $region32
        $region31: #{tpu_custom_call.1} parent=11 // pred_region
          %s267 = ssub.s32 2048, 2048
          %268 = vsyncadd [#allocation12], %s267
          %s269 = sshll.u32 [#allocation11], 4
          %s270 = int_to_ptr.vmem [resolvable:$true] %s269
          %275 = dma.hbm_to_vmem [thread:$0]  %s6, 2048, %s270, [#allocation12], 64, 64, 4
        $region32: #{tpu_custom_call.1} parent=11 // pred_fallthru
          _
        // Predicated region
        $region33: #{tpu_custom_call.1} parent=11 // pred_check
          %p276 = pneg %p188
        $region34: #{tpu_custom_call.1} parent=11 // pred_check_branch
          %278 = sbr.rel (%p276) target = $region36
        $region35: #{tpu_custom_call.1} parent=11 // pred_region
          _
        $region36: #{tpu_custom_call.1} parent=11 // pred_fallthru
          _
      $region12: #{tpu_custom_call.1} parent=5 // pred_fallthru
        _
      %p279 = scmp.lt.s32.totalorder %s22, 2
      // Predicated region
      $region37: #{tpu_custom_call.1} parent=5 // pred_check
        %p280 = pneg %p279
      $region38: #{tpu_custom_call.1} parent=5 // pred_check_branch
        %282 = sbr.rel (%p280) target = $region40
      $region39: #{tpu_custom_call.1} parent=5 // pred_region
        // Predicated region
        $region41: #{tpu_custom_call.1} parent=39 // pred_check
          %p283 = pneg %p56
        $region42: #{tpu_custom_call.1} parent=39 // pred_check_branch
          %285 = sbr.rel (%p283) target = $region44
        $region43: #{tpu_custom_call.1} parent=39 // pred_region
          %s286 = sand.u32 %s46, 1
          %s287 = scalar_lea.sflag [#allocation6], %s286
          %s288 = sand.u32 %s46, 1
          %s289 = smul.addr %s288, 128
          %s290 = scalar_lea.vmem [#allocation5], %s289
          %s291 = smul.u32 32, %s30
          %s293 = ssub.s32 2048, 2048
          %294 = vsyncadd %s287, %s293
          %s295 = smul.addr %s29, 32
          %s296 = sadd.s32 %s291, %s295
          %s297 = smul.addr %s296, 64
          %s298 = scalar_lea.hbm %s0, %s297
          %s299 = sshll.u32 %s290, 4
          %s300 = int_to_ptr.vmem [resolvable:$true] %s299
          %305 = dma.hbm_to_vmem [thread:$0]  %s298, 2048, %s300, %s287, 64, 64, 4
        $region44: #{tpu_custom_call.1} parent=39 // pred_fallthru
          _
      $region40: #{tpu_custom_call.1} parent=5 // pred_fallthru
        _
      %p306 = scmp.le.s32.totalorder 1, %s22
      %p307 = scmp.lt.s32.totalorder %s22, 3
      %p308 = pnand %p306, %p307
      %p309 = pneg %p308
      // Predicated region
      $region45: #{tpu_custom_call.1} parent=5 // pred_check
        _
      $region46: #{tpu_custom_call.1} parent=5 // pred_check_branch
        %311 = sbr.rel (%p308) target = $region48
      $region47: #{tpu_custom_call.1} parent=5 // pred_region
        %s312 = ssub.s32 %s22, 1
        %s313 = sand.u32 %s49, 1
        %s314 = scalar_lea.sflag [#allocation6], %s313
        %s315 = sand.u32 %s49, 1
        %s316 = smul.addr %s315, 128
        %s317 = scalar_lea.vmem [#allocation5], %s316
        // Predicated region
        $region49: #{tpu_custom_call.1} parent=47 // pred_check
          %p318 = pneg %p62
        $region50: #{tpu_custom_call.1} parent=47 // pred_check_branch
          %320 = sbr.rel (%p318) target = $region52
        $region51: #{tpu_custom_call.1} parent=47 // pred_region
          %321 = dma.done %s314, 2048
        $region52: #{tpu_custom_call.1} parent=47 // pred_fallthru
          _
        // Predicated region
        $region53: #{tpu_custom_call.1} parent=47 // pred_check
          %p322 = pneg %p83
        $region54: #{tpu_custom_call.1} parent=47 // pred_check_branch
          %324 = sbr.rel (%p322) target = $region56
        $region55: #{tpu_custom_call.1} parent=47 // pred_region
          %325 = dma.done [#allocation9], 2048
        $region56: #{tpu_custom_call.1} parent=47 // pred_fallthru
          _
        // Predicated region
        $region57: #{tpu_custom_call.1} parent=47 // pred_check
          %p326 = pneg %p125
        $region58: #{tpu_custom_call.1} parent=47 // pred_check_branch
          %328 = sbr.rel (%p326) target = $region60
        $region59: #{tpu_custom_call.1} parent=47 // pred_region
          %329 = dma.done [#allocation9], 512
        $region60: #{tpu_custom_call.1} parent=47 // pred_fallthru
          _
        // Predicated region
        $region61: #{tpu_custom_call.1} parent=47 // pred_check
          %p330 = pneg %p167
        $region62: #{tpu_custom_call.1} parent=47 // pred_check_branch
          %332 = sbr.rel (%p330) target = $region64
        $region63: #{tpu_custom_call.1} parent=47 // pred_region
          %333 = dma.done [#allocation12], 2048
        $region64: #{tpu_custom_call.1} parent=47 // pred_fallthru
          _
        %s334 = sand.u32 %s49, 1
        %s335 = scalar_lea.sflag [#allocation6], %s334
        %s336 = sand.u32 %s49, 1
        %s337 = smul.addr %s336, 128
        %s338 = scalar_lea.vmem [#allocation5], %s337
        %p339 = pneg %p62
        %p340 = pneg %p59
        %p341 = pneg %p83
        %p342 = pneg %p80
        %p343 = pneg %p104
        %p344 = pneg %p101
        %p345 = pneg %p125
        %p346 = pneg %p122
        %p347 = pneg %p146
        %p348 = pneg %p143
        %p349 = pneg %p167
        %p350 = pneg %p164
        %p351 = pneg %p188
        %p352 = pneg %p185
        %p353 = pneg %p216
        %p354 = pneg %p213
        %s355 = sand.u32 %s203, 1
        %s356 = scalar_lea.sflag [#allocation7], %s355
        %s357 = sand.u32 %s203, 1
        %s358 = smul.addr %s357, 256
        %s359 = scalar_lea.vmem [#allocation13], %s358
        %s360 = smul.u32 32, %s32
        %s361 = smul.u32 32, %s32
        %s363 = smul.u32 %s32, 256
        %p364 = scmp.gt.s32.totalorder %s32, 0
        // Predicated region
        $region65: #{tpu_custom_call.1} parent=47 // pred_check
          %p365 = pneg %p364
        $region66: #{tpu_custom_call.1} parent=47 // pred_check_branch
          %367 = sbr.rel (%p365) target = $region68
        $region67: #{tpu_custom_call.1} parent=47 // pred_region
          %s368 = ssub.s32 %s363, 16
          %s369 = sshra.s32 %s368, 3
          %s370 = sand.u32 %s368, 7
          %s371 = smul.u32 %s31, 32
          %s372 = sadd.s32 %s369, %s371
          %s373 = smul.addr %s372, 64
          %s374 = scalar_lea.hbm %s1, %s373
          // Predicated region
          $region69: #{tpu_custom_call.1} parent=67 // pred_check
            _
          $region70: #{tpu_custom_call.1} parent=67 // pred_check_branch
            %376 = sbr.rel target = $region72
          $region71: #{tpu_custom_call.1} parent=67 // pred_region
            %377 = sst [smem:[#allocation16]] [#allocation15]
            %378 = sst [smem:[#allocation17]] [#allocation14]
          $region72: #{tpu_custom_call.1} parent=67 // pred_fallthru
            _
          %380 = shalt.err (0)
          %s382 = sshll.u32 [#allocation2], 4
          %s383 = int_to_ptr.vmem [resolvable:$true] %s382
          %385 = dma.hbm_to_vmem [thread:$0]  %s374, 128, %s383, [#allocation4]
        $region68: #{tpu_custom_call.1} parent=47 // pred_fallthru
          _
        %p386 = scmp.lt.s32.totalorder %s32, 0
        // Predicated region
        $region73: #{tpu_custom_call.1} parent=47 // pred_check
          %p387 = pneg %p386
        $region74: #{tpu_custom_call.1} parent=47 // pred_check_branch
          %389 = sbr.rel (%p387) target = $region76
        $region75: #{tpu_custom_call.1} parent=47 // pred_region
          %s390 = sadd.s32 %s363, 256
          %s391 = sshra.s32 %s390, 3
          %s392 = sand.u32 %s390, 7
          %s393 = smul.u32 %s31, 32
          %s394 = sadd.s32 %s391, %s393
          %s395 = smul.addr %s394, 64
          %s396 = scalar_lea.hbm %s1, %s395
          %s397 = scalar_lea.vmem [#allocation2], 8
          %s398 = scalar_lea.sflag [#allocation4], 1
          // Predicated region
          $region77: #{tpu_custom_call.1} parent=75 // pred_check
            _
          $region78: #{tpu_custom_call.1} parent=75 // pred_check_branch
            %400 = sbr.rel target = $region80
          $region79: #{tpu_custom_call.1} parent=75 // pred_region
            %401 = sst [smem:[#allocation16]] [#allocation19]
            %402 = sst [smem:[#allocation17]] [#allocation18]
          $region80: #{tpu_custom_call.1} parent=75 // pred_fallthru
            _
          %404 = shalt.err (0)
          %s406 = sshll.u32 %s397, 4
          %s407 = int_to_ptr.vmem [resolvable:$true] %s406
          %409 = dma.hbm_to_vmem [thread:$0]  %s396, 128, %s407, %s398
        $region76: #{tpu_custom_call.1} parent=47 // pred_fallthru
          _
        %v410 = vld [vmem:[#allocation8] sm:$0xff]
        %v411 = vld [vmem:[#allocation8 + $0x8] sm:$0xff]
        %v412 = vld [vmem:[#allocation8 + $0x10] sm:$0xff]
        %v413 = vld [vmem:[#allocation8 + $0x18] sm:$0xff]
        %v414 = vld [vmem:[#allocation8 + $0x20] sm:$0xff]
        %v415 = vld [vmem:[#allocation8 + $0x28] sm:$0xff]
        %v416 = vld [vmem:[#allocation8 + $0x30] sm:$0xff]
        %v417 = vld [vmem:[#allocation8 + $0x38] sm:$0xff]
        %v418 = vld [vmem:[#allocation8 + $0x40] sm:$0xff]
        %v419 = vld [vmem:[#allocation8 + $0x48] sm:$0xff]
        %v420 = vld [vmem:[#allocation8 + $0x50] sm:$0xff]
        %v421 = vld [vmem:[#allocation8 + $0x58] sm:$0xff]
        %v422 = vld [vmem:[#allocation8 + $0x60] sm:$0xff]
        %v423 = vld [vmem:[#allocation8 + $0x68] sm:$0xff]
        %v424 = vld [vmem:[#allocation8 + $0x70] sm:$0xff]
        %v425 = vld [vmem:[#allocation8 + $0x78] sm:$0xff]
        %v426 = vld [vmem:[%s3] sm:$0x3]
        %v427 = vld [vmem:[%s317] sm:$0xf]
        %v428 = vld [vmem:[%s317 + $0x4] sm:$0xf]
        %v429 = vld [vmem:[%s317 + $0x8] sm:$0xf]
        %v430 = vld [vmem:[%s317 + $0xc] sm:$0xf]
        %v431 = vld [vmem:[%s317 + $0x10] sm:$0xf]
        %v432 = vld [vmem:[%s317 + $0x14] sm:$0xf]
        %v433 = vld [vmem:[%s317 + $0x18] sm:$0xf]
        %v434 = vld [vmem:[%s317 + $0x1c] sm:$0xf]
        %v435 = vld [vmem:[%s317 + $0x20] sm:$0xf]
        %v436 = vld [vmem:[%s317 + $0x24] sm:$0xf]
        %v437 = vld [vmem:[%s317 + $0x28] sm:$0xf]
        %v438 = vld [vmem:[%s317 + $0x2c] sm:$0xf]
        %v439 = vld [vmem:[%s317 + $0x30] sm:$0xf]
        %v440 = vld [vmem:[%s317 + $0x34] sm:$0xf]
        %v441 = vld [vmem:[%s317 + $0x38] sm:$0xf]
        %v442 = vld [vmem:[%s317 + $0x3c] sm:$0xf]
        %v443 = vld [vmem:[%s317 + $0x40] sm:$0xf]
        %v444 = vld [vmem:[%s317 + $0x44] sm:$0xf]
        %v445 = vld [vmem:[%s317 + $0x48] sm:$0xf]
        %v446 = vld [vmem:[%s317 + $0x4c] sm:$0xf]
        %v447 = vld [vmem:[%s317 + $0x50] sm:$0xf]
        %v448 = vld [vmem:[%s317 + $0x54] sm:$0xf]
        %v449 = vld [vmem:[%s317 + $0x58] sm:$0xf]
        %v450 = vld [vmem:[%s317 + $0x5c] sm:$0xf]
        %v451 = vld [vmem:[%s317 + $0x60] sm:$0xf]
        %v452 = vld [vmem:[%s317 + $0x64] sm:$0xf]
        %v453 = vld [vmem:[%s317 + $0x68] sm:$0xf]
        %v454 = vld [vmem:[%s317 + $0x6c] sm:$0xf]
        %v455 = vld [vmem:[%s317 + $0x70] sm:$0xf]
        %v456 = vld [vmem:[%s317 + $0x74] sm:$0xf]
        %v457 = vld [vmem:[%s317 + $0x78] sm:$0xf]
        %v458 = vld [vmem:[%s317 + $0x7c] sm:$0xf]
        %v460 = vlaneseq
        %v461 = vshrl.u32 %v460, 7
        %v462 = vsub.s32 0, %v461
        %v463 = vrot.slane %v426, %v462
        %v464 = vlaneseq
        %v465 = vshrl.u32 %v464, 7
        %v466 = vsub.s32 1, %v465
        %v467 = vrot.slane %v426, %v466
        %v502 = vunpack.c.l.b16 %v427
        %v503 = vunpack.c.l.b16 %v428
        %v504 = vunpack.c.l.b16 %v429
        %v505 = vunpack.c.l.b16 %v430
        %v506 = vunpack.c.l.b16 %v431
        %v507 = vunpack.c.l.b16 %v432
        %v508 = vunpack.c.l.b16 %v433
        %v509 = vunpack.c.l.b16 %v434
        %v510 = vunpack.c.l.b16 %v435
        %v511 = vunpack.c.l.b16 %v436
        %v512 = vunpack.c.l.b16 %v437
        %v513 = vunpack.c.l.b16 %v438
        %v514 = vunpack.c.l.b16 %v439
        %v515 = vunpack.c.l.b16 %v440
        %v516 = vunpack.c.l.b16 %v441
        %v517 = vunpack.c.l.b16 %v442
        %v518 = vunpack.c.l.b16 %v443
        %v519 = vunpack.c.l.b16 %v444
        %v520 = vunpack.c.l.b16 %v445
        %v521 = vunpack.c.l.b16 %v446
        %v522 = vunpack.c.l.b16 %v447
        %v523 = vunpack.c.l.b16 %v448
        %v524 = vunpack.c.l.b16 %v449
        %v525 = vunpack.c.l.b16 %v450
        %v526 = vunpack.c.l.b16 %v451
        %v527 = vunpack.c.l.b16 %v452
        %v528 = vunpack.c.l.b16 %v453
        %v529 = vunpack.c.l.b16 %v454
        %v530 = vunpack.c.l.b16 %v455
        %v531 = vunpack.c.l.b16 %v456
        %v532 = vunpack.c.l.b16 %v457
        %v533 = vunpack.c.l.b16 %v458
        %v534 = vpack.c.b16 %v503, %v502
        %v535 = vpack.c.b16 %v505, %v504
        %v536 = vpack.c.b16 %v507, %v506
        %v537 = vpack.c.b16 %v509, %v508
        %v538 = vpack.c.b16 %v511, %v510
        %v539 = vpack.c.b16 %v513, %v512
        %v540 = vpack.c.b16 %v515, %v514
        %v541 = vpack.c.b16 %v517, %v516
        %v542 = vpack.c.b16 %v519, %v518
        %v543 = vpack.c.b16 %v521, %v520
        %v544 = vpack.c.b16 %v523, %v522
        %v545 = vpack.c.b16 %v525, %v524
        %v546 = vpack.c.b16 %v527, %v526
        %v547 = vpack.c.b16 %v529, %v528
        %v548 = vpack.c.b16 %v531, %v530
        %v549 = vpack.c.b16 %v533, %v532
        %v582 = vunpack.c.l.b16 %v410
        %v583 = vunpack.c.h.b16 %v410
        %v584 = vunpack.c.l.b16 %v411
        %v585 = vunpack.c.h.b16 %v411
        %v586 = vunpack.c.l.b16 %v412
        %v587 = vunpack.c.h.b16 %v412
        %v588 = vunpack.c.l.b16 %v413
        %v589 = vunpack.c.h.b16 %v413
        %v590 = vunpack.c.l.b16 %v414
        %v591 = vunpack.c.h.b16 %v414
        %v592 = vunpack.c.l.b16 %v415
        %v593 = vunpack.c.h.b16 %v415
        %v594 = vunpack.c.l.b16 %v416
        %v595 = vunpack.c.h.b16 %v416
        %v596 = vunpack.c.l.b16 %v417
        %v597 = vunpack.c.h.b16 %v417
        %v598 = vunpack.c.l.b16 %v418
        %v599 = vunpack.c.h.b16 %v418
        %v600 = vunpack.c.l.b16 %v419
        %v601 = vunpack.c.h.b16 %v419
        %v602 = vunpack.c.l.b16 %v420
        %v603 = vunpack.c.h.b16 %v420
        %v604 = vunpack.c.l.b16 %v421
        %v605 = vunpack.c.h.b16 %v421
        %v606 = vunpack.c.l.b16 %v422
        %v607 = vunpack.c.h.b16 %v422
        %v608 = vunpack.c.l.b16 %v423
        %v609 = vunpack.c.h.b16 %v423
        %v610 = vunpack.c.l.b16 %v424
        %v611 = vunpack.c.h.b16 %v424
        %v612 = vunpack.c.l.b16 %v425
        %v613 = vunpack.c.h.b16 %v425
        %v614 = vpack.c.b16 %v584, %v582
        %v615 = vpack.c.b16 %v585, %v583
        %v616 = vpack.c.b16 %v588, %v586
        %v617 = vpack.c.b16 %v589, %v587
        %v618 = vpack.c.b16 %v592, %v590
        %v619 = vpack.c.b16 %v593, %v591
        %v620 = vpack.c.b16 %v596, %v594
        %v621 = vpack.c.b16 %v597, %v595
        %v622 = vpack.c.b16 %v600, %v598
        %v623 = vpack.c.b16 %v601, %v599
        %v624 = vpack.c.b16 %v604, %v602
        %v625 = vpack.c.b16 %v605, %v603
        %v626 = vpack.c.b16 %v608, %v606
        %v627 = vpack.c.b16 %v609, %v607
        %v628 = vpack.c.b16 %v612, %v610
        %v629 = vpack.c.b16 %v613, %v611
        %646 = vmatprep.subr.bf16.mxu0 %v615
        %647 = vmatpush1.bf16.msra.mxu0 %v614
        %648 = vmatprep.subr.bf16.mxu0 %v617
        %649 = vmatpush1.bf16.msra.mxu0 %v616
        %650 = vmatprep.subr.bf16.mxu0 %v619
        %651 = vmatpush1.bf16.msra.mxu0 %v618
        %652 = vmatprep.subr.bf16.mxu0 %v621
        %653 = vmatpush1.bf16.msra.mxu0 %v620
        %654 = vmatprep.subr.bf16.mxu0 %v623
        %655 = vmatpush1.bf16.msra.mxu0 %v622
        %656 = vmatprep.subr.bf16.mxu0 %v625
        %657 = vmatpush1.bf16.msra.mxu0 %v624
        %658 = vmatprep.subr.bf16.mxu0 %v627
        %659 = vmatpush1.bf16.msra.mxu0 %v626
        %660 = vmatprep.subr.bf16.mxu0 %v629
        %661 = vmatpush1.bf16.msra.mxu0 %v628
        %662 = vmatprep.subr.bf16.mxu0 0
        %663 = vmatpush1.bf16.msra.mxu0 0
        %664 = vmatprep.subr.bf16.mxu0 0
        %665 = vmatpush1.bf16.msra.mxu0 0
        %666 = vmatprep.subr.bf16.mxu0 0
        %667 = vmatpush1.bf16.msra.mxu0 0
        %668 = vmatprep.subr.bf16.mxu0 0
        %669 = vmatpush1.bf16.msra.mxu0 0
        %670 = vmatprep.subr.bf16.mxu0 0
        %671 = vmatpush1.bf16.msra.mxu0 0
        %672 = vmatprep.subr.bf16.mxu0 0
        %673 = vmatpush1.bf16.msra.mxu0 0
        %674 = vmatprep.subr.bf16.mxu0 0
        %675 = vmatpush1.bf16.msra.mxu0 0
        %676 = vmatprep.subr.bf16.mxu0 0
        %677 = vmatpush1.bf16.msra.mxu0 0
        %678 = vmatprep.mubr.bf16.mxu0 0
        %679 = vmatmul.mubr.bf16.gmra.mrb[0].mxu0 %v534
        %v680 = vpop.f32.mrb[0].mxu0
        %v681 = vadd.f32 %v463, %v680
        %v682 = vpop.f32.mrb[0].mxu0
        %v683 = vadd.f32 %v467, %v682
        %v684 = vpop.f32.mrb[0].mxu0
        %v685 = vadd.f32 %v463, %v684
        %v686 = vpop.f32.mrb[0].mxu0
        %v687 = vadd.f32 %v467, %v686
        %688 = vmatprep.mubr.bf16.mxu0 0
        %689 = vmatmul.mubr.bf16.gmra.mrb[0].mxu0 %v535
        %v690 = vpop.f32.mrb[0].mxu0
        %v691 = vadd.f32 %v463, %v690
        %v692 = vpop.f32.mrb[0].mxu0
        %v693 = vadd.f32 %v467, %v692
        %v694 = vpop.f32.mrb[0].mxu0
        %v695 = vadd.f32 %v463, %v694
        %v696 = vpop.f32.mrb[0].mxu0
        %v697 = vadd.f32 %v467, %v696
        %698 = vmatprep.mubr.bf16.mxu0 0
        %699 = vmatmul.mubr.bf16.gmra.mrb[0].mxu0 %v536
        %v700 = vpop.f32.mrb[0].mxu0
        %v701 = vadd.f32 %v463, %v700
        %v702 = vpop.f32.mrb[0].mxu0
        %v703 = vadd.f32 %v467, %v702
        %v704 = vpop.f32.mrb[0].mxu0
        %v705 = vadd.f32 %v463, %v704
        %v706 = vpop.f32.mrb[0].mxu0
        %v707 = vadd.f32 %v467, %v706
        %708 = vmatprep.mubr.bf16.mxu0 0
        %709 = vmatmul.mubr.bf16.gmra.mrb[0].mxu0 %v537
        %v710 = vpop.f32.mrb[0].mxu0
        %v711 = vadd.f32 %v463, %v710
        %v712 = vpop.f32.mrb[0].mxu0
        %v713 = vadd.f32 %v467, %v712
        %v714 = vpop.f32.mrb[0].mxu0
        %v715 = vadd.f32 %v463, %v714
        %v716 = vpop.f32.mrb[0].mxu0
        %v717 = vadd.f32 %v467, %v716
        %718 = vmatprep.mubr.bf16.mxu0 0
        %719 = vmatmul.mubr.bf16.gmra.mrb[0].mxu0 %v538
        %v720 = vpop.f32.mrb[0].mxu0
        %v721 = vadd.f32 %v463, %v720
        %v722 = vpop.f32.mrb[0].mxu0
        %v723 = vadd.f32 %v467, %v722
        %v724 = vpop.f32.mrb[0].mxu0
        %v725 = vadd.f32 %v463, %v724
        %v726 = vpop.f32.mrb[0].mxu0
        %v727 = vadd.f32 %v467, %v726
        %728 = vmatprep.mubr.bf16.mxu0 0
        %729 = vmatmul.mubr.bf16.gmra.mrb[0].mxu0 %v539
        %v730 = vpop.f32.mrb[0].mxu0
        %v731 = vadd.f32 %v463, %v730
        %v732 = vpop.f32.mrb[0].mxu0
        %v733 = vadd.f32 %v467, %v732
        %v734 = vpop.f32.mrb[0].mxu0
        %v735 = vadd.f32 %v463, %v734
        %v736 = vpop.f32.mrb[0].mxu0
        %v737 = vadd.f32 %v467, %v736
        %738 = vmatprep.mubr.bf16.mxu0 0
        %739 = vmatmul.mubr.bf16.gmra.mrb[0].mxu0 %v540
        %v740 = vpop.f32.mrb[0].mxu0
        %v741 = vadd.f32 %v463, %v740
        %v742 = vpop.f32.mrb[0].mxu0
        %v743 = vadd.f32 %v467, %v742
        %v744 = vpop.f32.mrb[0].mxu0
        %v745 = vadd.f32 %v463, %v744
        %v746 = vpop.f32.mrb[0].mxu0
        %v747 = vadd.f32 %v467, %v746
        %748 = vmatprep.mubr.bf16.mxu0 0
        %749 = vmatmul.mubr.bf16.gmra.mrb[0].mxu0 %v541
        %v750 = vpop.f32.mrb[0].mxu0
        %v751 = vadd.f32 %v463, %v750
        %v752 = vpop.f32.mrb[0].mxu0
        %v753 = vadd.f32 %v467, %v752
        %v754 = vpop.f32.mrb[0].mxu0
        %v755 = vadd.f32 %v463, %v754
        %v756 = vpop.f32.mrb[0].mxu0
        %v757 = vadd.f32 %v467, %v756
        %758 = vmatprep.mubr.bf16.mxu0 0
        %759 = vmatmul.mubr.bf16.gmra.mrb[0].mxu0 %v542
        %v760 = vpop.f32.mrb[0].mxu0
        %v761 = vadd.f32 %v463, %v760
        %v762 = vpop.f32.mrb[0].mxu0
        %v763 = vadd.f32 %v467, %v762
        %v764 = vpop.f32.mrb[0].mxu0
        %v765 = vadd.f32 %v463, %v764
        %v766 = vpop.f32.mrb[0].mxu0
        %v767 = vadd.f32 %v467, %v766
        %768 = vmatprep.mubr.bf16.mxu0 0
        %769 = vmatmul.mubr.bf16.gmra.mrb[0].mxu0 %v543
        %v770 = vpop.f32.mrb[0].mxu0
        %v771 = vadd.f32 %v463, %v770
        %v772 = vpop.f32.mrb[0].mxu0
        %v773 = vadd.f32 %v467, %v772
        %v774 = vpop.f32.mrb[0].mxu0
        %v775 = vadd.f32 %v463, %v774
        %v776 = vpop.f32.mrb[0].mxu0
        %v777 = vadd.f32 %v467, %v776
        %778 = vmatprep.mubr.bf16.mxu0 0
        %779 = vmatmul.mubr.bf16.gmra.mrb[0].mxu0 %v544
        %v780 = vpop.f32.mrb[0].mxu0
        %v781 = vadd.f32 %v463, %v780
        %v782 = vpop.f32.mrb[0].mxu0
        %v783 = vadd.f32 %v467, %v782
        %v784 = vpop.f32.mrb[0].mxu0
        %v785 = vadd.f32 %v463, %v784
        %v786 = vpop.f32.mrb[0].mxu0
        %v787 = vadd.f32 %v467, %v786
        %788 = vmatprep.mubr.bf16.mxu0 0
        %789 = vmatmul.mubr.bf16.gmra.mrb[0].mxu0 %v545
        %v790 = vpop.f32.mrb[0].mxu0
        %v791 = vadd.f32 %v463, %v790
        %v792 = vpop.f32.mrb[0].mxu0
        %v793 = vadd.f32 %v467, %v792
        %v794 = vpop.f32.mrb[0].mxu0
        %v795 = vadd.f32 %v463, %v794
        %v796 = vpop.f32.mrb[0].mxu0
        %v797 = vadd.f32 %v467, %v796
        %798 = vmatprep.mubr.bf16.mxu0 0
        %799 = vmatmul.mubr.bf16.gmra.mrb[0].mxu0 %v546
        %v800 = vpop.f32.mrb[0].mxu0
        %v801 = vadd.f32 %v463, %v800
        %v802 = vpop.f32.mrb[0].mxu0
        %v803 = vadd.f32 %v467, %v802
        %v804 = vpop.f32.mrb[0].mxu0
        %v805 = vadd.f32 %v463, %v804
        %v806 = vpop.f32.mrb[0].mxu0
        %v807 = vadd.f32 %v467, %v806
        %808 = vmatprep.mubr.bf16.mxu0 0
        %809 = vmatmul.mubr.bf16.gmra.mrb[0].mxu0 %v547
        %v810 = vpop.f32.mrb[0].mxu0
        %v811 = vadd.f32 %v463, %v810
        %v812 = vpop.f32.mrb[0].mxu0
        %v813 = vadd.f32 %v467, %v812
        %v814 = vpop.f32.mrb[0].mxu0
        %v815 = vadd.f32 %v463, %v814
        %v816 = vpop.f32.mrb[0].mxu0
        %v817 = vadd.f32 %v467, %v816
        %818 = vmatprep.mubr.bf16.mxu0 0
        %819 = vmatmul.mubr.bf16.gmra.mrb[0].mxu0 %v548
        %v820 = vpop.f32.mrb[0].mxu0
        %v821 = vadd.f32 %v463, %v820
        %v822 = vpop.f32.mrb[0].mxu0
        %v823 = vadd.f32 %v467, %v822
        %v824 = vpop.f32.mrb[0].mxu0
        %v825 = vadd.f32 %v463, %v824
        %v826 = vpop.f32.mrb[0].mxu0
        %v827 = vadd.f32 %v467, %v826
        %828 = vmatprep.mubr.bf16.mxu0 0
        %829 = vmatmul.mubr.bf16.gmra.mrb[0].mxu0 %v549
        %v830 = vpop.f32.mrb[0].mxu0
        %v831 = vadd.f32 %v463, %v830
        %v832 = vpop.f32.mrb[0].mxu0
        %v833 = vadd.f32 %v467, %v832
        %v834 = vpop.f32.mrb[0].mxu0
        %v835 = vadd.f32 %v463, %v834
        %v836 = vpop.f32.mrb[0].mxu0
        %v837 = vadd.f32 %v467, %v836
        %838 = vdwg.mxu0
        %839 = vst [vmem:[#allocation3 + $0x20] sm:$0xff] %v681
        %840 = vst [vmem:[#allocation3 + $0x28] sm:$0xff] %v683
        %841 = vst [vmem:[#allocation3 + $0x30] sm:$0xff] %v685
        %842 = vst [vmem:[#allocation3 + $0x38] sm:$0xff] %v687
        %843 = vst [vmem:[#allocation3 + $0x40] sm:$0xff] %v691
        %844 = vst [vmem:[#allocation3 + $0x48] sm:$0xff] %v693
        %845 = vst [vmem:[#allocation3 + $0x50] sm:$0xff] %v695
        %846 = vst [vmem:[#allocation3 + $0x58] sm:$0xff] %v697
        %847 = vst [vmem:[#allocation3 + $0x60] sm:$0xff] %v701
        %848 = vst [vmem:[#allocation3 + $0x68] sm:$0xff] %v703
        %849 = vst [vmem:[#allocation3 + $0x70] sm:$0xff] %v705
        %850 = vst [vmem:[#allocation3 + $0x78] sm:$0xff] %v707
        %851 = vst [vmem:[#allocation3 + $0x80] sm:$0xff] %v711
        %852 = vst [vmem:[#allocation3 + $0x88] sm:$0xff] %v713
        %853 = vst [vmem:[#allocation3 + $0x90] sm:$0xff] %v715
        %854 = vst [vmem:[#allocation3 + $0x98] sm:$0xff] %v717
        %855 = vst [vmem:[#allocation3 + $0xa0] sm:$0xff] %v721
        %856 = vst [vmem:[#allocation3 + $0xa8] sm:$0xff] %v723
        %857 = vst [vmem:[#allocation3 + $0xb0] sm:$0xff] %v725
        %858 = vst [vmem:[#allocation3 + $0xb8] sm:$0xff] %v727
        %859 = vst [vmem:[#allocation3 + $0xc0] sm:$0xff] %v731
        %860 = vst [vmem:[#allocation3 + $0xc8] sm:$0xff] %v733
        %861 = vst [vmem:[#allocation3 + $0xd0] sm:$0xff] %v735
        %862 = vst [vmem:[#allocation3 + $0xd8] sm:$0xff] %v737
        %863 = vst [vmem:[#allocation3 + $0xe0] sm:$0xff] %v741
        %864 = vst [vmem:[#allocation3 + $0xe8] sm:$0xff] %v743
        %865 = vst [vmem:[#allocation3 + $0xf0] sm:$0xff] %v745
        %866 = vst [vmem:[#allocation3 + $0xf8] sm:$0xff] %v747
        %867 = vst [vmem:[#allocation3 + $0x100] sm:$0xff] %v751
        %868 = vst [vmem:[#allocation3 + $0x108] sm:$0xff] %v753
        %869 = vst [vmem:[#allocation3 + $0x110] sm:$0xff] %v755
        %870 = vst [vmem:[#allocation3 + $0x118] sm:$0xff] %v757
        %871 = vst [vmem:[#allocation3 + $0x120] sm:$0xff] %v761
        %872 = vst [vmem:[#allocation3 + $0x128] sm:$0xff] %v763
        %873 = vst [vmem:[#allocation3 + $0x130] sm:$0xff] %v765
        %874 = vst [vmem:[#allocation3 + $0x138] sm:$0xff] %v767
        %875 = vst [vmem:[#allocation3 + $0x140] sm:$0xff] %v771
        %876 = vst [vmem:[#allocation3 + $0x148] sm:$0xff] %v773
        %877 = vst [vmem:[#allocation3 + $0x150] sm:$0xff] %v775
        %878 = vst [vmem:[#allocation3 + $0x158] sm:$0xff] %v777
        %879 = vst [vmem:[#allocation3 + $0x160] sm:$0xff] %v781
        %880 = vst [vmem:[#allocation3 + $0x168] sm:$0xff] %v783
        %881 = vst [vmem:[#allocation3 + $0x170] sm:$0xff] %v785
        %882 = vst [vmem:[#allocation3 + $0x178] sm:$0xff] %v787
        %883 = vst [vmem:[#allocation3 + $0x180] sm:$0xff] %v791
        %884 = vst [vmem:[#allocation3 + $0x188] sm:$0xff] %v793
        %885 = vst [vmem:[#allocation3 + $0x190] sm:$0xff] %v795
        %886 = vst [vmem:[#allocation3 + $0x198] sm:$0xff] %v797
        %887 = vst [vmem:[#allocation3 + $0x1a0] sm:$0xff] %v801
        %888 = vst [vmem:[#allocation3 + $0x1a8] sm:$0xff] %v803
        %889 = vst [vmem:[#allocation3 + $0x1b0] sm:$0xff] %v805
        %890 = vst [vmem:[#allocation3 + $0x1b8] sm:$0xff] %v807
        %891 = vst [vmem:[#allocation3 + $0x1c0] sm:$0xff] %v811
        %892 = vst [vmem:[#allocation3 + $0x1c8] sm:$0xff] %v813
        %893 = vst [vmem:[#allocation3 + $0x1d0] sm:$0xff] %v815
        %894 = vst [vmem:[#allocation3 + $0x1d8] sm:$0xff] %v817
        %895 = vst [vmem:[#allocation3 + $0x1e0] sm:$0xff] %v821
        %896 = vst [vmem:[#allocation3 + $0x1e8] sm:$0xff] %v823
        %897 = vst [vmem:[#allocation3 + $0x1f0] sm:$0xff] %v825
        %898 = vst [vmem:[#allocation3 + $0x1f8] sm:$0xff] %v827
        %899 = vst [vmem:[#allocation3 + $0x200] sm:$0xff] %v831
        %900 = vst [vmem:[#allocation3 + $0x208] sm:$0xff] %v833
        %901 = vst [vmem:[#allocation3 + $0x210] sm:$0xff] %v835
        %902 = vst [vmem:[#allocation3 + $0x218] sm:$0xff] %v837
        // Predicated region
        $region81: #{tpu_custom_call.1} parent=47 // pred_check
          %p903 = pneg %p364
        $region82: #{tpu_custom_call.1} parent=47 // pred_check_branch
          %905 = sbr.rel (%p903) target = $region84
        $region83: #{tpu_custom_call.1} parent=47 // pred_region
          %s906 = smul.u32 4, 2
          %s907 = smul.u32 %s906, 1
          %s908 = sshll.u32 %s907, 4
          %909 = dma.done [#allocation4], %s908
          %v910 = vld [vmem:[#allocation2] sm:$0xff]
          %911 = vmatprep.subr.bf16.mxu0 %v615
          %912 = vmatpush1.bf16.msra.mxu0 %v614
          %913 = vmatprep.subr.bf16.mxu0 %v617
          %914 = vmatpush1.bf16.msra.mxu0 %v616
          %915 = vmatprep.subr.bf16.mxu0 %v619
          %916 = vmatpush1.bf16.msra.mxu0 %v618
          %917 = vmatprep.subr.bf16.mxu0 %v621
          %918 = vmatpush1.bf16.msra.mxu0 %v620
          %919 = vmatprep.subr.bf16.mxu0 %v623
          %920 = vmatpush1.bf16.msra.mxu0 %v622
          %921 = vmatprep.subr.bf16.mxu0 %v625
          %922 = vmatpush1.bf16.msra.mxu0 %v624
          %923 = vmatprep.subr.bf16.mxu0 %v627
          %924 = vmatpush1.bf16.msra.mxu0 %v626
          %925 = vmatprep.subr.bf16.mxu0 %v629
          %926 = vmatpush1.bf16.msra.mxu0 %v628
          %927 = vmatprep.subr.bf16.mxu0 0
          %928 = vmatpush1.bf16.msra.mxu0 0
          %929 = vmatprep.subr.bf16.mxu0 0
          %930 = vmatpush1.bf16.msra.mxu0 0
          %931 = vmatprep.subr.bf16.mxu0 0
          %932 = vmatpush1.bf16.msra.mxu0 0
          %933 = vmatprep.subr.bf16.mxu0 0
          %934 = vmatpush1.bf16.msra.mxu0 0
          %935 = vmatprep.subr.bf16.mxu0 0
          %936 = vmatpush1.bf16.msra.mxu0 0
          %937 = vmatprep.subr.bf16.mxu0 0
          %938 = vmatpush1.bf16.msra.mxu0 0
          %939 = vmatprep.subr.bf16.mxu0 0
          %940 = vmatpush1.bf16.msra.mxu0 0
          %941 = vmatprep.subr.bf16.mxu0 0
          %942 = vmatpush1.bf16.msra.mxu0 0
          %943 = vmatprep.mubr.bf16.mxu0 0
          %944 = vmatmul.mubr.bf16.gmra.mrb[0].mxu0 %v910
          %v945 = vpop.f32.mrb[0].mxu0
          %v946 = vadd.f32 %v463, %v945
          %v947 = vpop.f32.mrb[0].mxu0
          %v948 = vadd.f32 %v467, %v947
          %v949 = vpop.f32.mrb[0].mxu0
          %v950 = vadd.f32 %v463, %v949
          %v951 = vpop.f32.mrb[0].mxu0
          %v952 = vadd.f32 %v467, %v951
          %953 = vdwg.mxu0
          %954 = vst [vmem:[#allocation3] sm:$0xff] %v946
          %955 = vst [vmem:[#allocation3 + $0x8] sm:$0xff] %v948
          %956 = vst [vmem:[#allocation3 + $0x10] sm:$0xff] %v950
          %957 = vst [vmem:[#allocation3 + $0x18] sm:$0xff] %v952
        $region84: #{tpu_custom_call.1} parent=47 // pred_fallthru
          _
        %p958 = scmp.eq.s32.totalorder %s32, 0
        // Predicated region
        $region85: #{tpu_custom_call.1} parent=47 // pred_check
          %p959 = pneg %p958
        $region86: #{tpu_custom_call.1} parent=47 // pred_check_branch
          %961 = sbr.rel (%p959) target = $region88
        $region87: #{tpu_custom_call.1} parent=47 // pred_region
          %962 = vst [vmem:[#allocation3] sm:$0xff] 0.0
          %963 = vst [vmem:[#allocation3 + $0x8] sm:$0xff] 0.0
          %964 = vst [vmem:[#allocation3 + $0x10] sm:$0xff] 0.0
          %965 = vst [vmem:[#allocation3 + $0x18] sm:$0xff] 0.0
        $region88: #{tpu_custom_call.1} parent=47 // pred_fallthru
          _
        // Predicated region
        $region89: #{tpu_custom_call.1} parent=47 // pred_check
          %p966 = pneg %p386
        $region90: #{tpu_custom_call.1} parent=47 // pred_check_branch
          %968 = sbr.rel (%p966) target = $region92
        $region91: #{tpu_custom_call.1} parent=47 // pred_region
          %s969 = scalar_lea.sflag [#allocation4], 1
          %s970 = smul.u32 4, 2
          %s971 = smul.u32 %s970, 1
          %s972 = sshll.u32 %s971, 4
          %973 = dma.done %s969, %s972
          %v974 = vld [vmem:[#allocation2 + $0x8] sm:$0xff]
          %975 = vmatprep.subr.bf16.mxu0 %v615
          %976 = vmatpush1.bf16.msra.mxu0 %v614
          %977 = vmatprep.subr.bf16.mxu0 %v617
          %978 = vmatpush1.bf16.msra.mxu0 %v616
          %979 = vmatprep.subr.bf16.mxu0 %v619
          %980 = vmatpush1.bf16.msra.mxu0 %v618
          %981 = vmatprep.subr.bf16.mxu0 %v621
          %982 = vmatpush1.bf16.msra.mxu0 %v620
          %983 = vmatprep.subr.bf16.mxu0 %v623
          %984 = vmatpush1.bf16.msra.mxu0 %v622
          %985 = vmatprep.subr.bf16.mxu0 %v625
          %986 = vmatpush1.bf16.msra.mxu0 %v624
          %987 = vmatprep.subr.bf16.mxu0 %v627
          %988 = vmatpush1.bf16.msra.mxu0 %v626
          %989 = vmatprep.subr.bf16.mxu0 %v629
          %990 = vmatpush1.bf16.msra.mxu0 %v628
          %991 = vmatprep.subr.bf16.mxu0 0
          %992 = vmatpush1.bf16.msra.mxu0 0
          %993 = vmatprep.subr.bf16.mxu0 0
          %994 = vmatpush1.bf16.msra.mxu0 0
          %995 = vmatprep.subr.bf16.mxu0 0
          %996 = vmatpush1.bf16.msra.mxu0 0
          %997 = vmatprep.subr.bf16.mxu0 0
          %998 = vmatpush1.bf16.msra.mxu0 0
          %999 = vmatprep.subr.bf16.mxu0 0
          %1000 = vmatpush1.bf16.msra.mxu0 0
          %1001 = vmatprep.subr.bf16.mxu0 0
          %1002 = vmatpush1.bf16.msra.mxu0 0
          %1003 = vmatprep.subr.bf16.mxu0 0
          %1004 = vmatpush1.bf16.msra.mxu0 0
          %1005 = vmatprep.subr.bf16.mxu0 0
          %1006 = vmatpush1.bf16.msra.mxu0 0
          %1007 = vmatprep.mubr.bf16.mxu0 0
          %1008 = vmatmul.mubr.bf16.gmra.mrb[0].mxu0 %v974
          %v1009 = vpop.f32.mrb[0].mxu0
          %v1010 = vadd.f32 %v463, %v1009
          %v1011 = vpop.f32.mrb[0].mxu0
          %v1012 = vadd.f32 %v467, %v1011
          %v1013 = vpop.f32.mrb[0].mxu0
          %v1014 = vadd.f32 %v463, %v1013
          %v1015 = vpop.f32.mrb[0].mxu0
          %v1016 = vadd.f32 %v467, %v1015
          %1017 = vdwg.mxu0
          %1018 = vst [vmem:[#allocation3 + $0x220] sm:$0xff] %v1010
          %1019 = vst [vmem:[#allocation3 + $0x228] sm:$0xff] %v1012
          %1020 = vst [vmem:[#allocation3 + $0x230] sm:$0xff] %v1014
          %1021 = vst [vmem:[#allocation3 + $0x238] sm:$0xff] %v1016
        $region92: #{tpu_custom_call.1} parent=47 // pred_fallthru
          _
        // Predicated region
        $region93: #{tpu_custom_call.1} parent=47 // pred_check
          %p1022 = pneg %p958
        $region94: #{tpu_custom_call.1} parent=47 // pred_check_branch
          %1024 = sbr.rel (%p1022) target = $region96
        $region95: #{tpu_custom_call.1} parent=47 // pred_region
          %1025 = vst [vmem:[#allocation3 + $0x220] sm:$0xff] 0.0
          %1026 = vst [vmem:[#allocation3 + $0x228] sm:$0xff] 0.0
          %1027 = vst [vmem:[#allocation3 + $0x230] sm:$0xff] 0.0
          %1028 = vst [vmem:[#allocation3 + $0x238] sm:$0xff] 0.0
        $region96: #{tpu_custom_call.1} parent=47 // pred_fallthru
          _
        %v1029 = vld [vmem:[#allocation10] sm:$0xff]
        %v1030 = vld [vmem:[#allocation10 + $0x8] sm:$0xff]
        %v1031 = vld [vmem:[#allocation10 + $0x10] sm:$0x1]
        %v1032 = vld [vmem:[#allocation10 + $0x18] sm:$0x1]
        %v1033 = vlaneseq
        %v1034 = vshrl.u32 %v1033, 7
        %v1035 = vadd.s32 %v1034, 8
        %v1036 = vadd.s32 %v1034, 16
        %v1037 = vadd.s32 %v1034, 24
        %v1038 = vadd.s32 %v1034, 32
        %v1039 = vadd.s32 %v1034, 40
        %v1040 = vadd.s32 %v1034, 48
        %v1041 = vadd.s32 %v1034, 56
        %v1042 = vadd.s32 %v1034, 64
        %v1043 = vadd.s32 %v1034, 72
        %v1044 = vadd.s32 %v1034, 80
        %v1045 = vadd.s32 %v1034, 88
        %v1046 = vadd.s32 %v1034, 96
        %v1047 = vadd.s32 %v1034, 104
        %v1048 = vadd.s32 %v1034, 112
        %v1049 = vadd.s32 %v1034, 120
        %v1050 = vadd.s32 %v1034, 128
        %v1051 = vadd.s32 %v1034, 136
        %v1052 = vadd.s32 %v1034, 144
        %v1053 = vadd.s32 %v1034, 152
        %v1054 = vadd.s32 %v1034, 160
        %v1055 = vadd.s32 %v1034, 168
        %v1056 = vadd.s32 %v1034, 176
        %v1057 = vadd.s32 %v1034, 184
        %v1058 = vadd.s32 %v1034, 192
        %v1059 = vadd.s32 %v1034, 200
        %v1060 = vadd.s32 %v1034, 208
        %v1061 = vadd.s32 %v1034, 216
        %v1062 = vadd.s32 %v1034, 224
        %v1063 = vadd.s32 %v1034, 232
        %v1064 = vadd.s32 %v1034, 240
        %v1065 = vadd.s32 %v1034, 248
        %vm1066 = vcmp.lt.s32.totalorder %v1034, 0
        %v1067 = vsub.s32 0, %v1034
        %v1068 = vsel %vm1066, %v1067, %v1034
        %v1069 = vshrl.u32 %v1068, 4
        %v1070 = vand.u32 %v1068, 15
        %v1071 = vsub.s32 0, %v1070
        %v1072 = vsel %vm1066, %v1071, %v1070
        %vm1073 = vcmp.lt.s32.totalorder %v1035, 0
        %v1074 = vsub.s32 0, %v1035
        %v1075 = vsel %vm1073, %v1074, %v1035
        %v1076 = vshrl.u32 %v1075, 4
        %v1077 = vand.u32 %v1075, 15
        %v1078 = vsub.s32 0, %v1077
        %v1079 = vsel %vm1073, %v1078, %v1077
        %vm1080 = vcmp.lt.s32.totalorder %v1036, 0
        %v1081 = vsub.s32 0, %v1036
        %v1082 = vsel %vm1080, %v1081, %v1036
        %v1083 = vshrl.u32 %v1082, 4
        %v1084 = vand.u32 %v1082, 15
        %v1085 = vsub.s32 0, %v1084
        %v1086 = vsel %vm1080, %v1085, %v1084
        %vm1087 = vcmp.lt.s32.totalorder %v1037, 0
        %v1088 = vsub.s32 0, %v1037
        %v1089 = vsel %vm1087, %v1088, %v1037
        %v1090 = vshrl.u32 %v1089, 4
        %v1091 = vand.u32 %v1089, 15
        %v1092 = vsub.s32 0, %v1091
        %v1093 = vsel %vm1087, %v1092, %v1091
        %vm1094 = vcmp.lt.s32.totalorder %v1038, 0
        %v1095 = vsub.s32 0, %v1038
        %v1096 = vsel %vm1094, %v1095, %v1038
        %v1097 = vshrl.u32 %v1096, 4
        %v1098 = vand.u32 %v1096, 15
        %v1099 = vsub.s32 0, %v1098
        %v1100 = vsel %vm1094, %v1099, %v1098
        %vm1101 = vcmp.lt.s32.totalorder %v1039, 0
        %v1102 = vsub.s32 0, %v1039
        %v1103 = vsel %vm1101, %v1102, %v1039
        %v1104 = vshrl.u32 %v1103, 4
        %v1105 = vand.u32 %v1103, 15
        %v1106 = vsub.s32 0, %v1105
        %v1107 = vsel %vm1101, %v1106, %v1105
        %vm1108 = vcmp.lt.s32.totalorder %v1040, 0
        %v1109 = vsub.s32 0, %v1040
        %v1110 = vsel %vm1108, %v1109, %v1040
        %v1111 = vshrl.u32 %v1110, 4
        %v1112 = vand.u32 %v1110, 15
        %v1113 = vsub.s32 0, %v1112
        %v1114 = vsel %vm1108, %v1113, %v1112
        %vm1115 = vcmp.lt.s32.totalorder %v1041, 0
        %v1116 = vsub.s32 0, %v1041
        %v1117 = vsel %vm1115, %v1116, %v1041
        %v1118 = vshrl.u32 %v1117, 4
        %v1119 = vand.u32 %v1117, 15
        %v1120 = vsub.s32 0, %v1119
        %v1121 = vsel %vm1115, %v1120, %v1119
        %vm1122 = vcmp.lt.s32.totalorder %v1042, 0
        %v1123 = vsub.s32 0, %v1042
        %v1124 = vsel %vm1122, %v1123, %v1042
        %v1125 = vshrl.u32 %v1124, 4
        %v1126 = vand.u32 %v1124, 15
        %v1127 = vsub.s32 0, %v1126
        %v1128 = vsel %vm1122, %v1127, %v1126
        %vm1129 = vcmp.lt.s32.totalorder %v1043, 0
        %v1130 = vsub.s32 0, %v1043
        %v1131 = vsel %vm1129, %v1130, %v1043
        %v1132 = vshrl.u32 %v1131, 4
        %v1133 = vand.u32 %v1131, 15
        %v1134 = vsub.s32 0, %v1133
        %v1135 = vsel %vm1129, %v1134, %v1133
        %vm1136 = vcmp.lt.s32.totalorder %v1044, 0
        %v1137 = vsub.s32 0, %v1044
        %v1138 = vsel %vm1136, %v1137, %v1044
        %v1139 = vshrl.u32 %v1138, 4
        %v1140 = vand.u32 %v1138, 15
        %v1141 = vsub.s32 0, %v1140
        %v1142 = vsel %vm1136, %v1141, %v1140
        %vm1143 = vcmp.lt.s32.totalorder %v1045, 0
        %v1144 = vsub.s32 0, %v1045
        %v1145 = vsel %vm1143, %v1144, %v1045
        %v1146 = vshrl.u32 %v1145, 4
        %v1147 = vand.u32 %v1145, 15
        %v1148 = vsub.s32 0, %v1147
        %v1149 = vsel %vm1143, %v1148, %v1147
        %vm1150 = vcmp.lt.s32.totalorder %v1046, 0
        %v1151 = vsub.s32 0, %v1046
        %v1152 = vsel %vm1150, %v1151, %v1046
        %v1153 = vshrl.u32 %v1152, 4
        %v1154 = vand.u32 %v1152, 15
        %v1155 = vsub.s32 0, %v1154
        %v1156 = vsel %vm1150, %v1155, %v1154
        %vm1157 = vcmp.lt.s32.totalorder %v1047, 0
        %v1158 = vsub.s32 0, %v1047
        %v1159 = vsel %vm1157, %v1158, %v1047
        %v1160 = vshrl.u32 %v1159, 4
        %v1161 = vand.u32 %v1159, 15
        %v1162 = vsub.s32 0, %v1161
        %v1163 = vsel %vm1157, %v1162, %v1161
        %vm1164 = vcmp.lt.s32.totalorder %v1048, 0
        %v1165 = vsub.s32 0, %v1048
        %v1166 = vsel %vm1164, %v1165, %v1048
        %v1167 = vshrl.u32 %v1166, 4
        %v1168 = vand.u32 %v1166, 15
        %v1169 = vsub.s32 0, %v1168
        %v1170 = vsel %vm1164, %v1169, %v1168
        %vm1171 = vcmp.lt.s32.totalorder %v1049, 0
        %v1172 = vsub.s32 0, %v1049
        %v1173 = vsel %vm1171, %v1172, %v1049
        %v1174 = vshrl.u32 %v1173, 4
        %v1175 = vand.u32 %v1173, 15
        %v1176 = vsub.s32 0, %v1175
        %v1177 = vsel %vm1171, %v1176, %v1175
        %vm1178 = vcmp.lt.s32.totalorder %v1050, 0
        %v1179 = vsub.s32 0, %v1050
        %v1180 = vsel %vm1178, %v1179, %v1050
        %v1181 = vshrl.u32 %v1180, 4
        %v1182 = vand.u32 %v1180, 15
        %v1183 = vsub.s32 0, %v1182
        %v1184 = vsel %vm1178, %v1183, %v1182
        %vm1185 = vcmp.lt.s32.totalorder %v1051, 0
        %v1186 = vsub.s32 0, %v1051
        %v1187 = vsel %vm1185, %v1186, %v1051
        %v1188 = vshrl.u32 %v1187, 4
        %v1189 = vand.u32 %v1187, 15
        %v1190 = vsub.s32 0, %v1189
        %v1191 = vsel %vm1185, %v1190, %v1189
        %vm1192 = vcmp.lt.s32.totalorder %v1052, 0
        %v1193 = vsub.s32 0, %v1052
        %v1194 = vsel %vm1192, %v1193, %v1052
        %v1195 = vshrl.u32 %v1194, 4
        %v1196 = vand.u32 %v1194, 15
        %v1197 = vsub.s32 0, %v1196
        %v1198 = vsel %vm1192, %v1197, %v1196
        %vm1199 = vcmp.lt.s32.totalorder %v1053, 0
        %v1200 = vsub.s32 0, %v1053
        %v1201 = vsel %vm1199, %v1200, %v1053
        %v1202 = vshrl.u32 %v1201, 4
        %v1203 = vand.u32 %v1201, 15
        %v1204 = vsub.s32 0, %v1203
        %v1205 = vsel %vm1199, %v1204, %v1203
        %vm1206 = vcmp.lt.s32.totalorder %v1054, 0
        %v1207 = vsub.s32 0, %v1054
        %v1208 = vsel %vm1206, %v1207, %v1054
        %v1209 = vshrl.u32 %v1208, 4
        %v1210 = vand.u32 %v1208, 15
        %v1211 = vsub.s32 0, %v1210
        %v1212 = vsel %vm1206, %v1211, %v1210
        %vm1213 = vcmp.lt.s32.totalorder %v1055, 0
        %v1214 = vsub.s32 0, %v1055
        %v1215 = vsel %vm1213, %v1214, %v1055
        %v1216 = vshrl.u32 %v1215, 4
        %v1217 = vand.u32 %v1215, 15
        %v1218 = vsub.s32 0, %v1217
        %v1219 = vsel %vm1213, %v1218, %v1217
        %vm1220 = vcmp.lt.s32.totalorder %v1056, 0
        %v1221 = vsub.s32 0, %v1056
        %v1222 = vsel %vm1220, %v1221, %v1056
        %v1223 = vshrl.u32 %v1222, 4
        %v1224 = vand.u32 %v1222, 15
        %v1225 = vsub.s32 0, %v1224
        %v1226 = vsel %vm1220, %v1225, %v1224
        %vm1227 = vcmp.lt.s32.totalorder %v1057, 0
        %v1228 = vsub.s32 0, %v1057
        %v1229 = vsel %vm1227, %v1228, %v1057
        %v1230 = vshrl.u32 %v1229, 4
        %v1231 = vand.u32 %v1229, 15
        %v1232 = vsub.s32 0, %v1231
        %v1233 = vsel %vm1227, %v1232, %v1231
        %vm1234 = vcmp.lt.s32.totalorder %v1058, 0
        %v1235 = vsub.s32 0, %v1058
        %v1236 = vsel %vm1234, %v1235, %v1058
        %v1237 = vshrl.u32 %v1236, 4
        %v1238 = vand.u32 %v1236, 15
        %v1239 = vsub.s32 0, %v1238
        %v1240 = vsel %vm1234, %v1239, %v1238
        %vm1241 = vcmp.lt.s32.totalorder %v1059, 0
        %v1242 = vsub.s32 0, %v1059
        %v1243 = vsel %vm1241, %v1242, %v1059
        %v1244 = vshrl.u32 %v1243, 4
        %v1245 = vand.u32 %v1243, 15
        %v1246 = vsub.s32 0, %v1245
        %v1247 = vsel %vm1241, %v1246, %v1245
        %vm1248 = vcmp.lt.s32.totalorder %v1060, 0
        %v1249 = vsub.s32 0, %v1060
        %v1250 = vsel %vm1248, %v1249, %v1060
        %v1251 = vshrl.u32 %v1250, 4
        %v1252 = vand.u32 %v1250, 15
        %v1253 = vsub.s32 0, %v1252
        %v1254 = vsel %vm1248, %v1253, %v1252
        %vm1255 = vcmp.lt.s32.totalorder %v1061, 0
        %v1256 = vsub.s32 0, %v1061
        %v1257 = vsel %vm1255, %v1256, %v1061
        %v1258 = vshrl.u32 %v1257, 4
        %v1259 = vand.u32 %v1257, 15
        %v1260 = vsub.s32 0, %v1259
        %v1261 = vsel %vm1255, %v1260, %v1259
        %vm1262 = vcmp.lt.s32.totalorder %v1062, 0
        %v1263 = vsub.s32 0, %v1062
        %v1264 = vsel %vm1262, %v1263, %v1062
        %v1265 = vshrl.u32 %v1264, 4
        %v1266 = vand.u32 %v1264, 15
        %v1267 = vsub.s32 0, %v1266
        %v1268 = vsel %vm1262, %v1267, %v1266
        %vm1269 = vcmp.lt.s32.totalorder %v1063, 0
        %v1270 = vsub.s32 0, %v1063
        %v1271 = vsel %vm1269, %v1270, %v1063
        %v1272 = vshrl.u32 %v1271, 4
        %v1273 = vand.u32 %v1271, 15
        %v1274 = vsub.s32 0, %v1273
        %v1275 = vsel %vm1269, %v1274, %v1273
        %vm1276 = vcmp.lt.s32.totalorder %v1064, 0
        %v1277 = vsub.s32 0, %v1064
        %v1278 = vsel %vm1276, %v1277, %v1064
        %v1279 = vshrl.u32 %v1278, 4
        %v1280 = vand.u32 %v1278, 15
        %v1281 = vsub.s32 0, %v1280
        %v1282 = vsel %vm1276, %v1281, %v1280
        %vm1283 = vcmp.lt.s32.totalorder %v1065, 0
        %v1284 = vsub.s32 0, %v1065
        %v1285 = vsel %vm1283, %v1284, %v1065
        %v1286 = vshrl.u32 %v1285, 4
        %v1287 = vand.u32 %v1285, 15
        %v1288 = vsub.s32 0, %v1287
        %v1289 = vsel %vm1283, %v1288, %v1287
        %vm1290 = vcmp.ne.s32.totalorder %v1072, 0
        %vm1291 = vcmp.ne.s32.totalorder %v1079, 0
        %vm1292 = vcmp.ne.s32.totalorder %v1086, 0
        %vm1293 = vcmp.ne.s32.totalorder %v1093, 0
        %vm1294 = vcmp.ne.s32.totalorder %v1100, 0
        %vm1295 = vcmp.ne.s32.totalorder %v1107, 0
        %vm1296 = vcmp.ne.s32.totalorder %v1114, 0
        %vm1297 = vcmp.ne.s32.totalorder %v1121, 0
        %vm1298 = vcmp.ne.s32.totalorder %v1128, 0
        %vm1299 = vcmp.ne.s32.totalorder %v1135, 0
        %vm1300 = vcmp.ne.s32.totalorder %v1142, 0
        %vm1301 = vcmp.ne.s32.totalorder %v1149, 0
        %vm1302 = vcmp.ne.s32.totalorder %v1156, 0
        %vm1303 = vcmp.ne.s32.totalorder %v1163, 0
        %vm1304 = vcmp.ne.s32.totalorder %v1170, 0
        %vm1305 = vcmp.ne.s32.totalorder %v1177, 0
        %vm1306 = vcmp.ne.s32.totalorder %v1184, 0
        %vm1307 = vcmp.ne.s32.totalorder %v1191, 0
        %vm1308 = vcmp.ne.s32.totalorder %v1198, 0
        %vm1309 = vcmp.ne.s32.totalorder %v1205, 0
        %vm1310 = vcmp.ne.s32.totalorder %v1212, 0
        %vm1311 = vcmp.ne.s32.totalorder %v1219, 0
        %vm1312 = vcmp.ne.s32.totalorder %v1226, 0
        %vm1313 = vcmp.ne.s32.totalorder %v1233, 0
        %vm1314 = vcmp.ne.s32.totalorder %v1240, 0
        %vm1315 = vcmp.ne.s32.totalorder %v1247, 0
        %vm1316 = vcmp.ne.s32.totalorder %v1254, 0
        %vm1317 = vcmp.ne.s32.totalorder %v1261, 0
        %vm1318 = vcmp.ne.s32.totalorder %v1268, 0
        %vm1319 = vcmp.ne.s32.totalorder %v1275, 0
        %vm1320 = vcmp.ne.s32.totalorder %v1282, 0
        %vm1321 = vcmp.ne.s32.totalorder %v1289, 0
        %vm1322 = vcmp.lt.s32.totalorder %v1072, 0
        %vm1323 = vcmp.lt.s32.totalorder %v1079, 0
        %vm1324 = vcmp.lt.s32.totalorder %v1086, 0
        %vm1325 = vcmp.lt.s32.totalorder %v1093, 0
        %vm1326 = vcmp.lt.s32.totalorder %v1100, 0
        %vm1327 = vcmp.lt.s32.totalorder %v1107, 0
        %vm1328 = vcmp.lt.s32.totalorder %v1114, 0
        %vm1329 = vcmp.lt.s32.totalorder %v1121, 0
        %vm1330 = vcmp.lt.s32.totalorder %v1128, 0
        %vm1331 = vcmp.lt.s32.totalorder %v1135, 0
        %vm1332 = vcmp.lt.s32.totalorder %v1142, 0
        %vm1333 = vcmp.lt.s32.totalorder %v1149, 0
        %vm1334 = vcmp.lt.s32.totalorder %v1156, 0
        %vm1335 = vcmp.lt.s32.totalorder %v1163, 0
        %vm1336 = vcmp.lt.s32.totalorder %v1170, 0
        %vm1337 = vcmp.lt.s32.totalorder %v1177, 0
        %vm1338 = vcmp.lt.s32.totalorder %v1184, 0
        %vm1339 = vcmp.lt.s32.totalorder %v1191, 0
        %vm1340 = vcmp.lt.s32.totalorder %v1198, 0
        %vm1341 = vcmp.lt.s32.totalorder %v1205, 0
        %vm1342 = vcmp.lt.s32.totalorder %v1212, 0
        %vm1343 = vcmp.lt.s32.totalorder %v1219, 0
        %vm1344 = vcmp.lt.s32.totalorder %v1226, 0
        %vm1345 = vcmp.lt.s32.totalorder %v1233, 0
        %vm1346 = vcmp.lt.s32.totalorder %v1240, 0
        %vm1347 = vcmp.lt.s32.totalorder %v1247, 0
        %vm1348 = vcmp.lt.s32.totalorder %v1254, 0
        %vm1349 = vcmp.lt.s32.totalorder %v1261, 0
        %vm1350 = vcmp.lt.s32.totalorder %v1268, 0
        %vm1351 = vcmp.lt.s32.totalorder %v1275, 0
        %vm1352 = vcmp.lt.s32.totalorder %v1282, 0
        %vm1353 = vcmp.lt.s32.totalorder %v1289, 0
        %vm1354 = vmand %vm1322, %vm1290
        %vm1355 = vmand %vm1323, %vm1291
        %vm1356 = vmand %vm1324, %vm1292
        %vm1357 = vmand %vm1325, %vm1293
        %vm1358 = vmand %vm1326, %vm1294
        %vm1359 = vmand %vm1327, %vm1295
        %vm1360 = vmand %vm1328, %vm1296
        %vm1361 = vmand %vm1329, %vm1297
        %vm1362 = vmand %vm1330, %vm1298
        %vm1363 = vmand %vm1331, %vm1299
        %vm1364 = vmand %vm1332, %vm1300
        %vm1365 = vmand %vm1333, %vm1301
        %vm1366 = vmand %vm1334, %vm1302
        %vm1367 = vmand %vm1335, %vm1303
        %vm1368 = vmand %vm1336, %vm1304
        %vm1369 = vmand %vm1337, %vm1305
        %vm1370 = vmand %vm1338, %vm1306
        %vm1371 = vmand %vm1339, %vm1307
        %vm1372 = vmand %vm1340, %vm1308
        %vm1373 = vmand %vm1341, %vm1309
        %vm1374 = vmand %vm1342, %vm1310
        %vm1375 = vmand %vm1343, %vm1311
        %vm1376 = vmand %vm1344, %vm1312
        %vm1377 = vmand %vm1345, %vm1313
        %vm1378 = vmand %vm1346, %vm1314
        %vm1379 = vmand %vm1347, %vm1315
        %vm1380 = vmand %vm1348, %vm1316
        %vm1381 = vmand %vm1349, %vm1317
        %vm1382 = vmand %vm1350, %vm1318
        %vm1383 = vmand %vm1351, %vm1319
        %vm1384 = vmand %vm1352, %vm1320
        %vm1385 = vmand %vm1353, %vm1321
        %v1386 = vadd.s32 %v1072, 16
        %v1387 = vadd.s32 %v1079, 16
        %v1388 = vadd.s32 %v1086, 16
        %v1389 = vadd.s32 %v1093, 16
        %v1390 = vadd.s32 %v1100, 16
        %v1391 = vadd.s32 %v1107, 16
        %v1392 = vadd.s32 %v1114, 16
        %v1393 = vadd.s32 %v1121, 16
        %v1394 = vadd.s32 %v1128, 16
        %v1395 = vadd.s32 %v1135, 16
        %v1396 = vadd.s32 %v1142, 16
        %v1397 = vadd.s32 %v1149, 16
        %v1398 = vadd.s32 %v1156, 16
        %v1399 = vadd.s32 %v1163, 16
        %v1400 = vadd.s32 %v1170, 16
        %v1401 = vadd.s32 %v1177, 16
        %v1402 = vadd.s32 %v1184, 16
        %v1403 = vadd.s32 %v1191, 16
        %v1404 = vadd.s32 %v1198, 16
        %v1405 = vadd.s32 %v1205, 16
        %v1406 = vadd.s32 %v1212, 16
        %v1407 = vadd.s32 %v1219, 16
        %v1408 = vadd.s32 %v1226, 16
        %v1409 = vadd.s32 %v1233, 16
        %v1410 = vadd.s32 %v1240, 16
        %v1411 = vadd.s32 %v1247, 16
        %v1412 = vadd.s32 %v1254, 16
        %v1413 = vadd.s32 %v1261, 16
        %v1414 = vadd.s32 %v1268, 16
        %v1415 = vadd.s32 %v1275, 16
        %v1416 = vadd.s32 %v1282, 16
        %v1417 = vadd.s32 %v1289, 16
        %v1418 = vsel %vm1354, %v1386, %v1072
        %v1419 = vsel %vm1355, %v1387, %v1079
        %v1420 = vsel %vm1356, %v1388, %v1086
        %v1421 = vsel %vm1357, %v1389, %v1093
        %v1422 = vsel %vm1358, %v1390, %v1100
        %v1423 = vsel %vm1359, %v1391, %v1107
        %v1424 = vsel %vm1360, %v1392, %v1114
        %v1425 = vsel %vm1361, %v1393, %v1121
        %v1426 = vsel %vm1362, %v1394, %v1128
        %v1427 = vsel %vm1363, %v1395, %v1135
        %v1428 = vsel %vm1364, %v1396, %v1142
        %v1429 = vsel %vm1365, %v1397, %v1149
        %v1430 = vsel %vm1366, %v1398, %v1156
        %v1431 = vsel %vm1367, %v1399, %v1163
        %v1432 = vsel %vm1368, %v1400, %v1170
        %v1433 = vsel %vm1369, %v1401, %v1177
        %v1434 = vsel %vm1370, %v1402, %v1184
        %v1435 = vsel %vm1371, %v1403, %v1191
        %v1436 = vsel %vm1372, %v1404, %v1198
        %v1437 = vsel %vm1373, %v1405, %v1205
        %v1438 = vsel %vm1374, %v1406, %v1212
        %v1439 = vsel %vm1375, %v1407, %v1219
        %v1440 = vsel %vm1376, %v1408, %v1226
        %v1441 = vsel %vm1377, %v1409, %v1233
        %v1442 = vsel %vm1378, %v1410, %v1240
        %v1443 = vsel %vm1379, %v1411, %v1247
        %v1444 = vsel %vm1380, %v1412, %v1254
        %v1445 = vsel %vm1381, %v1413, %v1261
        %v1446 = vsel %vm1382, %v1414, %v1268
        %v1447 = vsel %vm1383, %v1415, %v1275
        %v1448 = vsel %vm1384, %v1416, %v1282
        %v1449 = vsel %vm1385, %v1417, %v1289
        %vm1450 = vcmp.ne.s32.totalorder %v1418, 0
        %vm1451 = vcmp.ne.s32.totalorder %v1419, 0
        %vm1452 = vcmp.ne.s32.totalorder %v1420, 0
        %vm1453 = vcmp.ne.s32.totalorder %v1421, 0
        %vm1454 = vcmp.ne.s32.totalorder %v1422, 0
        %vm1455 = vcmp.ne.s32.totalorder %v1423, 0
        %vm1456 = vcmp.ne.s32.totalorder %v1424, 0
        %vm1457 = vcmp.ne.s32.totalorder %v1425, 0
        %vm1458 = vcmp.ne.s32.totalorder %v1426, 0
        %vm1459 = vcmp.ne.s32.totalorder %v1427, 0
        %vm1460 = vcmp.ne.s32.totalorder %v1428, 0
        %vm1461 = vcmp.ne.s32.totalorder %v1429, 0
        %vm1462 = vcmp.ne.s32.totalorder %v1430, 0
        %vm1463 = vcmp.ne.s32.totalorder %v1431, 0
        %vm1464 = vcmp.ne.s32.totalorder %v1432, 0
        %vm1465 = vcmp.ne.s32.totalorder %v1433, 0
        %vm1466 = vcmp.ne.s32.totalorder %v1434, 0
        %vm1467 = vcmp.ne.s32.totalorder %v1435, 0
        %vm1468 = vcmp.ne.s32.totalorder %v1436, 0
        %vm1469 = vcmp.ne.s32.totalorder %v1437, 0
        %vm1470 = vcmp.ne.s32.totalorder %v1438, 0
        %vm1471 = vcmp.ne.s32.totalorder %v1439, 0
        %vm1472 = vcmp.ne.s32.totalorder %v1440, 0
        %vm1473 = vcmp.ne.s32.totalorder %v1441, 0
        %vm1474 = vcmp.ne.s32.totalorder %v1442, 0
        %vm1475 = vcmp.ne.s32.totalorder %v1443, 0
        %vm1476 = vcmp.ne.s32.totalorder %v1444, 0
        %vm1477 = vcmp.ne.s32.totalorder %v1445, 0
        %vm1478 = vcmp.ne.s32.totalorder %v1446, 0
        %vm1479 = vcmp.ne.s32.totalorder %v1447, 0
        %vm1480 = vcmp.ne.s32.totalorder %v1448, 0
        %vm1481 = vcmp.ne.s32.totalorder %v1449, 0
        %vm1482 = vcmp.ne.s32.totalorder %v1418, 15
        %vm1483 = vcmp.ne.s32.totalorder %v1419, 15
        %vm1484 = vcmp.ne.s32.totalorder %v1420, 15
        %vm1485 = vcmp.ne.s32.totalorder %v1421, 15
        %vm1486 = vcmp.ne.s32.totalorder %v1422, 15
        %vm1487 = vcmp.ne.s32.totalorder %v1423, 15
        %vm1488 = vcmp.ne.s32.totalorder %v1424, 15
        %vm1489 = vcmp.ne.s32.totalorder %v1425, 15
        %vm1490 = vcmp.ne.s32.totalorder %v1426, 15
        %vm1491 = vcmp.ne.s32.totalorder %v1427, 15
        %vm1492 = vcmp.ne.s32.totalorder %v1428, 15
        %vm1493 = vcmp.ne.s32.totalorder %v1429, 15
        %vm1494 = vcmp.ne.s32.totalorder %v1430, 15
        %vm1495 = vcmp.ne.s32.totalorder %v1431, 15
        %vm1496 = vcmp.ne.s32.totalorder %v1432, 15
        %vm1497 = vcmp.ne.s32.totalorder %v1433, 15
        %vm1498 = vcmp.ne.s32.totalorder %v1434, 15
        %vm1499 = vcmp.ne.s32.totalorder %v1435, 15
        %vm1500 = vcmp.ne.s32.totalorder %v1436, 15
        %vm1501 = vcmp.ne.s32.totalorder %v1437, 15
        %vm1502 = vcmp.ne.s32.totalorder %v1438, 15
        %vm1503 = vcmp.ne.s32.totalorder %v1439, 15
        %vm1504 = vcmp.ne.s32.totalorder %v1440, 15
        %vm1505 = vcmp.ne.s32.totalorder %v1441, 15
        %vm1506 = vcmp.ne.s32.totalorder %v1442, 15
        %vm1507 = vcmp.ne.s32.totalorder %v1443, 15
        %vm1508 = vcmp.ne.s32.totalorder %v1444, 15
        %vm1509 = vcmp.ne.s32.totalorder %v1445, 15
        %vm1510 = vcmp.ne.s32.totalorder %v1446, 15
        %vm1511 = vcmp.ne.s32.totalorder %v1447, 15
        %vm1512 = vcmp.ne.s32.totalorder %v1448, 15
        %vm1513 = vcmp.ne.s32.totalorder %v1449, 15
        %v1514 = vld [vmem:[#allocation3] sm:$0xff]
        %v1515 = vld [vmem:[#allocation3 + $0x8] sm:$0xff]
        %v1516 = vld [vmem:[#allocation3 + $0x10] sm:$0xff]
        %v1517 = vld [vmem:[#allocation3 + $0x18] sm:$0xff]
        %v1518 = vld [vmem:[#allocation3 + $0x20] sm:$0xff]
        %v1519 = vld [vmem:[#allocation3 + $0x28] sm:$0xff]
        %v1520 = vld [vmem:[#allocation3 + $0x30] sm:$0xff]
        %v1521 = vld [vmem:[#allocation3 + $0x38] sm:$0xff]
        %v1522 = vld [vmem:[#allocation3 + $0x40] sm:$0xff]
        %v1523 = vld [vmem:[#allocation3 + $0x48] sm:$0xff]
        %v1524 = vld [vmem:[#allocation3 + $0x50] sm:$0xff]
        %v1525 = vld [vmem:[#allocation3 + $0x58] sm:$0xff]
        %v1526 = vld [vmem:[#allocation3 + $0x60] sm:$0xff]
        %v1527 = vld [vmem:[#allocation3 + $0x68] sm:$0xff]
        %v1528 = vld [vmem:[#allocation3 + $0x70] sm:$0xff]
        %v1529 = vld [vmem:[#allocation3 + $0x78] sm:$0xff]
        %v1530 = vld [vmem:[#allocation3 + $0x80] sm:$0xff]
        %v1531 = vld [vmem:[#allocation3 + $0x88] sm:$0xff]
        %v1532 = vld [vmem:[#allocation3 + $0x90] sm:$0xff]
        %v1533 = vld [vmem:[#allocation3 + $0x98] sm:$0xff]
        %v1534 = vld [vmem:[#allocation3 + $0xa0] sm:$0xff]
        %v1535 = vld [vmem:[#allocation3 + $0xa8] sm:$0xff]
        %v1536 = vld [vmem:[#allocation3 + $0xb0] sm:$0xff]
        %v1537 = vld [vmem:[#allocation3 + $0xb8] sm:$0xff]
        %v1538 = vld [vmem:[#allocation3 + $0xc0] sm:$0xff]
        %v1539 = vld [vmem:[#allocation3 + $0xc8] sm:$0xff]
        %v1540 = vld [vmem:[#allocation3 + $0xd0] sm:$0xff]
        %v1541 = vld [vmem:[#allocation3 + $0xd8] sm:$0xff]
        %v1542 = vld [vmem:[#allocation3 + $0xe0] sm:$0xff]
        %v1543 = vld [vmem:[#allocation3 + $0xe8] sm:$0xff]
        %v1544 = vld [vmem:[#allocation3 + $0xf0] sm:$0xff]
        %v1545 = vld [vmem:[#allocation3 + $0xf8] sm:$0xff]
        %v1546 = vld [vmem:[#allocation3 + $0x100] sm:$0xff]
        %v1547 = vld [vmem:[#allocation3 + $0x108] sm:$0xff]
        %v1548 = vld [vmem:[#allocation3 + $0x110] sm:$0xff]
        %v1549 = vld [vmem:[#allocation3 + $0x118] sm:$0xff]
        %v1550 = vld [vmem:[#allocation3 + $0x120] sm:$0xff]
        %v1551 = vld [vmem:[#allocation3 + $0x128] sm:$0xff]
        %v1552 = vld [vmem:[#allocation3 + $0x130] sm:$0xff]
        %v1553 = vld [vmem:[#allocation3 + $0x138] sm:$0xff]
        %v1554 = vld [vmem:[#allocation3 + $0x140] sm:$0xff]
        %v1555 = vld [vmem:[#allocation3 + $0x148] sm:$0xff]
        %v1556 = vld [vmem:[#allocation3 + $0x150] sm:$0xff]
        %v1557 = vld [vmem:[#allocation3 + $0x158] sm:$0xff]
        %v1558 = vld [vmem:[#allocation3 + $0x160] sm:$0xff]
        %v1559 = vld [vmem:[#allocation3 + $0x168] sm:$0xff]
        %v1560 = vld [vmem:[#allocation3 + $0x170] sm:$0xff]
        %v1561 = vld [vmem:[#allocation3 + $0x178] sm:$0xff]
        %v1562 = vld [vmem:[#allocation3 + $0x180] sm:$0xff]
        %v1563 = vld [vmem:[#allocation3 + $0x188] sm:$0xff]
        %v1564 = vld [vmem:[#allocation3 + $0x190] sm:$0xff]
        %v1565 = vld [vmem:[#allocation3 + $0x198] sm:$0xff]
        %v1566 = vld [vmem:[#allocation3 + $0x1a0] sm:$0xff]
        %v1567 = vld [vmem:[#allocation3 + $0x1a8] sm:$0xff]
        %v1568 = vld [vmem:[#allocation3 + $0x1b0] sm:$0xff]
        %v1569 = vld [vmem:[#allocation3 + $0x1b8] sm:$0xff]
        %v1570 = vld [vmem:[#allocation3 + $0x1c0] sm:$0xff]
        %v1571 = vld [vmem:[#allocation3 + $0x1c8] sm:$0xff]
        %v1572 = vld [vmem:[#allocation3 + $0x1d0] sm:$0xff]
        %v1573 = vld [vmem:[#allocation3 + $0x1d8] sm:$0xff]
        %v1574 = vld [vmem:[#allocation3 + $0x1e0] sm:$0xff]
        %v1575 = vld [vmem:[#allocation3 + $0x1e8] sm:$0xff]
        %v1576 = vld [vmem:[#allocation3 + $0x1f0] sm:$0xff]
        %v1577 = vld [vmem:[#allocation3 + $0x1f8] sm:$0xff]
        %v1578 = vrot.slane %v1514, 7
        %v1579 = vrot.slane %v1515, 7
        %v1580 = vrot.slane %v1516, 7
        %v1581 = vrot.slane %v1517, 7
        %v1582 = vrot.slane %v1518, 7
        %v1583 = vrot.slane %v1519, 7
        %v1584 = vrot.slane %v1520, 7
        %v1585 = vrot.slane %v1521, 7
        %v1586 = vrot.slane %v1522, 7
        %v1587 = vrot.slane %v1523, 7
        %v1588 = vrot.slane %v1524, 7
        %v1589 = vrot.slane %v1525, 7
        %v1590 = vrot.slane %v1526, 7
        %v1591 = vrot.slane %v1527, 7
        %v1592 = vrot.slane %v1528, 7
        %v1593 = vrot.slane %v1529, 7
        %v1594 = vrot.slane %v1530, 7
        %v1595 = vrot.slane %v1531, 7
        %v1596 = vrot.slane %v1532, 7
        %v1597 = vrot.slane %v1533, 7
        %v1598 = vrot.slane %v1534, 7
        %v1599 = vrot.slane %v1535, 7
        %v1600 = vrot.slane %v1536, 7
        %v1601 = vrot.slane %v1537, 7
        %v1602 = vrot.slane %v1538, 7
        %v1603 = vrot.slane %v1539, 7
        %v1604 = vrot.slane %v1540, 7
        %v1605 = vrot.slane %v1541, 7
        %v1606 = vrot.slane %v1542, 7
        %v1607 = vrot.slane %v1543, 7
        %v1608 = vrot.slane %v1544, 7
        %v1609 = vrot.slane %v1545, 7
        %v1610 = vrot.slane %v1546, 7
        %v1611 = vrot.slane %v1547, 7
        %v1612 = vrot.slane %v1548, 7
        %v1613 = vrot.slane %v1549, 7
        %v1614 = vrot.slane %v1550, 7
        %v1615 = vrot.slane %v1551, 7
        %v1616 = vrot.slane %v1552, 7
        %v1617 = vrot.slane %v1553, 7
        %v1618 = vrot.slane %v1554, 7
        %v1619 = vrot.slane %v1555, 7
        %v1620 = vrot.slane %v1556, 7
        %v1621 = vrot.slane %v1557, 7
        %v1622 = vrot.slane %v1558, 7
        %v1623 = vrot.slane %v1559, 7
        %v1624 = vrot.slane %v1560, 7
        %v1625 = vrot.slane %v1561, 7
        %v1626 = vrot.slane %v1562, 7
        %v1627 = vrot.slane %v1563, 7
        %v1628 = vrot.slane %v1564, 7
        %v1629 = vrot.slane %v1565, 7
        %v1630 = vrot.slane %v1566, 7
        %v1631 = vrot.slane %v1567, 7
        %v1632 = vrot.slane %v1568, 7
        %v1633 = vrot.slane %v1569, 7
        %v1634 = vrot.slane %v1570, 7
        %v1635 = vrot.slane %v1571, 7
        %v1636 = vrot.slane %v1572, 7
        %v1637 = vrot.slane %v1573, 7
        %v1638 = vrot.slane %v1574, 7
        %v1639 = vrot.slane %v1575, 7
        %v1640 = vrot.slane %v1576, 7
        %v1641 = vrot.slane %v1577, 7
        %vm1642 = vcmp.lt.s32.totalorder %v1034, 1
        %v1643 = vsel %vm1642, %v1638, %v1640
        %v1644 = vsel %vm1642, %v1639, %v1641
        %v1645 = vsel %vm1642, %v1636, %v1638
        %v1646 = vsel %vm1642, %v1637, %v1639
        %v1647 = vsel %vm1642, %v1634, %v1636
        %v1648 = vsel %vm1642, %v1635, %v1637
        %v1649 = vsel %vm1642, %v1632, %v1634
        %v1650 = vsel %vm1642, %v1633, %v1635
        %v1651 = vsel %vm1642, %v1630, %v1632
        %v1652 = vsel %vm1642, %v1631, %v1633
        %v1653 = vsel %vm1642, %v1628, %v1630
        %v1654 = vsel %vm1642, %v1629, %v1631
        %v1655 = vsel %vm1642, %v1626, %v1628
        %v1656 = vsel %vm1642, %v1627, %v1629
        %v1657 = vsel %vm1642, %v1624, %v1626
        %v1658 = vsel %vm1642, %v1625, %v1627
        %v1659 = vsel %vm1642, %v1622, %v1624
        %v1660 = vsel %vm1642, %v1623, %v1625
        %v1661 = vsel %vm1642, %v1620, %v1622
        %v1662 = vsel %vm1642, %v1621, %v1623
        %v1663 = vsel %vm1642, %v1618, %v1620
        %v1664 = vsel %vm1642, %v1619, %v1621
        %v1665 = vsel %vm1642, %v1616, %v1618
        %v1666 = vsel %vm1642, %v1617, %v1619
        %v1667 = vsel %vm1642, %v1614, %v1616
        %v1668 = vsel %vm1642, %v1615, %v1617
        %v1669 = vsel %vm1642, %v1612, %v1614
        %v1670 = vsel %vm1642, %v1613, %v1615
        %v1671 = vsel %vm1642, %v1610, %v1612
        %v1672 = vsel %vm1642, %v1611, %v1613
        %v1673 = vsel %vm1642, %v1608, %v1610
        %v1674 = vsel %vm1642, %v1609, %v1611
        %v1675 = vsel %vm1642, %v1606, %v1608
        %v1676 = vsel %vm1642, %v1607, %v1609
        %v1677 = vsel %vm1642, %v1604, %v1606
        %v1678 = vsel %vm1642, %v1605, %v1607
        %v1679 = vsel %vm1642, %v1602, %v1604
        %v1680 = vsel %vm1642, %v1603, %v1605
        %v1681 = vsel %vm1642, %v1600, %v1602
        %v1682 = vsel %vm1642, %v1601, %v1603
        %v1683 = vsel %vm1642, %v1598, %v1600
        %v1684 = vsel %vm1642, %v1599, %v1601
        %v1685 = vsel %vm1642, %v1596, %v1598
        %v1686 = vsel %vm1642, %v1597, %v1599
        %v1687 = vsel %vm1642, %v1594, %v1596
        %v1688 = vsel %vm1642, %v1595, %v1597
        %v1689 = vsel %vm1642, %v1592, %v1594
        %v1690 = vsel %vm1642, %v1593, %v1595
        %v1691 = vsel %vm1642, %v1590, %v1592
        %v1692 = vsel %vm1642, %v1591, %v1593
        %v1693 = vsel %vm1642, %v1588, %v1590
        %v1694 = vsel %vm1642, %v1589, %v1591
        %v1695 = vsel %vm1642, %v1586, %v1588
        %v1696 = vsel %vm1642, %v1587, %v1589
        %v1697 = vsel %vm1642, %v1584, %v1586
        %v1698 = vsel %vm1642, %v1585, %v1587
        %v1699 = vsel %vm1642, %v1582, %v1584
        %v1700 = vsel %vm1642, %v1583, %v1585
        %v1701 = vsel %vm1642, %v1580, %v1582
        %v1702 = vsel %vm1642, %v1581, %v1583
        %v1703 = vsel %vm1642, %v1578, %v1580
        %v1704 = vsel %vm1642, %v1579, %v1581
        %v1705 = vsel %vm1642, %v1640, %v1578
        %v1706 = vsel %vm1642, %v1641, %v1579
        %v1707 = vsel %vm1450, 1, 0
        %v1708 = vsel %vm1451, 1, 0
        %v1709 = vsel %vm1452, 1, 0
        %v1710 = vsel %vm1453, 1, 0
        %v1711 = vsel %vm1454, 1, 0
        %v1712 = vsel %vm1455, 1, 0
        %v1713 = vsel %vm1456, 1, 0
        %v1714 = vsel %vm1457, 1, 0
        %v1715 = vsel %vm1458, 1, 0
        %v1716 = vsel %vm1459, 1, 0
        %v1717 = vsel %vm1460, 1, 0
        %v1718 = vsel %vm1461, 1, 0
        %v1719 = vsel %vm1462, 1, 0
        %v1720 = vsel %vm1463, 1, 0
        %v1721 = vsel %vm1464, 1, 0
        %v1722 = vsel %vm1465, 1, 0
        %v1723 = vsel %vm1466, 1, 0
        %v1724 = vsel %vm1467, 1, 0
        %v1725 = vsel %vm1468, 1, 0
        %v1726 = vsel %vm1469, 1, 0
        %v1727 = vsel %vm1470, 1, 0
        %v1728 = vsel %vm1471, 1, 0
        %v1729 = vsel %vm1472, 1, 0
        %v1730 = vsel %vm1473, 1, 0
        %v1731 = vsel %vm1474, 1, 0
        %v1732 = vsel %vm1475, 1, 0
        %v1733 = vsel %vm1476, 1, 0
        %v1734 = vsel %vm1477, 1, 0
        %v1735 = vsel %vm1478, 1, 0
        %v1736 = vsel %vm1479, 1, 0
        %v1737 = vsel %vm1480, 1, 0
        %v1738 = vsel %vm1481, 1, 0
        %vm1739 = vcmp.eq.s32.totalorder %v1707, 1
        %vm1740 = vcmp.eq.s32.totalorder %v1708, 1
        %vm1741 = vcmp.eq.s32.totalorder %v1709, 1
        %vm1742 = vcmp.eq.s32.totalorder %v1710, 1
        %vm1743 = vcmp.eq.s32.totalorder %v1711, 1
        %vm1744 = vcmp.eq.s32.totalorder %v1712, 1
        %vm1745 = vcmp.eq.s32.totalorder %v1713, 1
        %vm1746 = vcmp.eq.s32.totalorder %v1714, 1
        %vm1747 = vcmp.eq.s32.totalorder %v1715, 1
        %vm1748 = vcmp.eq.s32.totalorder %v1716, 1
        %vm1749 = vcmp.eq.s32.totalorder %v1717, 1
        %vm1750 = vcmp.eq.s32.totalorder %v1718, 1
        %vm1751 = vcmp.eq.s32.totalorder %v1719, 1
        %vm1752 = vcmp.eq.s32.totalorder %v1720, 1
        %vm1753 = vcmp.eq.s32.totalorder %v1721, 1
        %vm1754 = vcmp.eq.s32.totalorder %v1722, 1
        %vm1755 = vcmp.eq.s32.totalorder %v1723, 1
        %vm1756 = vcmp.eq.s32.totalorder %v1724, 1
        %vm1757 = vcmp.eq.s32.totalorder %v1725, 1
        %vm1758 = vcmp.eq.s32.totalorder %v1726, 1
        %vm1759 = vcmp.eq.s32.totalorder %v1727, 1
        %vm1760 = vcmp.eq.s32.totalorder %v1728, 1
        %vm1761 = vcmp.eq.s32.totalorder %v1729, 1
        %vm1762 = vcmp.eq.s32.totalorder %v1730, 1
        %vm1763 = vcmp.eq.s32.totalorder %v1731, 1
        %vm1764 = vcmp.eq.s32.totalorder %v1732, 1
        %vm1765 = vcmp.eq.s32.totalorder %v1733, 1
        %vm1766 = vcmp.eq.s32.totalorder %v1734, 1
        %vm1767 = vcmp.eq.s32.totalorder %v1735, 1
        %vm1768 = vcmp.eq.s32.totalorder %v1736, 1
        %vm1769 = vcmp.eq.s32.totalorder %v1737, 1
        %vm1770 = vcmp.eq.s32.totalorder %v1738, 1
        %v1771 = vsel %vm1739, %v1705, 0.0
        %v1772 = vsel %vm1739, %v1706, 0.0
        %v1773 = vsel %vm1740, %v1703, 0.0
        %v1774 = vsel %vm1740, %v1704, 0.0
        %v1775 = vsel %vm1741, %v1701, 0.0
        %v1776 = vsel %vm1741, %v1702, 0.0
        %v1777 = vsel %vm1742, %v1699, 0.0
        %v1778 = vsel %vm1742, %v1700, 0.0
        %v1779 = vsel %vm1743, %v1697, 0.0
        %v1780 = vsel %vm1743, %v1698, 0.0
        %v1781 = vsel %vm1744, %v1695, 0.0
        %v1782 = vsel %vm1744, %v1696, 0.0
        %v1783 = vsel %vm1745, %v1693, 0.0
        %v1784 = vsel %vm1745, %v1694, 0.0
        %v1785 = vsel %vm1746, %v1691, 0.0
        %v1786 = vsel %vm1746, %v1692, 0.0
        %v1787 = vsel %vm1747, %v1689, 0.0
        %v1788 = vsel %vm1747, %v1690, 0.0
        %v1789 = vsel %vm1748, %v1687, 0.0
        %v1790 = vsel %vm1748, %v1688, 0.0
        %v1791 = vsel %vm1749, %v1685, 0.0
        %v1792 = vsel %vm1749, %v1686, 0.0
        %v1793 = vsel %vm1750, %v1683, 0.0
        %v1794 = vsel %vm1750, %v1684, 0.0
        %v1795 = vsel %vm1751, %v1681, 0.0
        %v1796 = vsel %vm1751, %v1682, 0.0
        %v1797 = vsel %vm1752, %v1679, 0.0
        %v1798 = vsel %vm1752, %v1680, 0.0
        %v1799 = vsel %vm1753, %v1677, 0.0
        %v1800 = vsel %vm1753, %v1678, 0.0
        %v1801 = vsel %vm1754, %v1675, 0.0
        %v1802 = vsel %vm1754, %v1676, 0.0
        %v1803 = vsel %vm1755, %v1673, 0.0
        %v1804 = vsel %vm1755, %v1674, 0.0
        %v1805 = vsel %vm1756, %v1671, 0.0
        %v1806 = vsel %vm1756, %v1672, 0.0
        %v1807 = vsel %vm1757, %v1669, 0.0
        %v1808 = vsel %vm1757, %v1670, 0.0
        %v1809 = vsel %vm1758, %v1667, 0.0
        %v1810 = vsel %vm1758, %v1668, 0.0
        %v1811 = vsel %vm1759, %v1665, 0.0
        %v1812 = vsel %vm1759, %v1666, 0.0
        %v1813 = vsel %vm1760, %v1663, 0.0
        %v1814 = vsel %vm1760, %v1664, 0.0
        %v1815 = vsel %vm1761, %v1661, 0.0
        %v1816 = vsel %vm1761, %v1662, 0.0
        %v1817 = vsel %vm1762, %v1659, 0.0
        %v1818 = vsel %vm1762, %v1660, 0.0
        %v1819 = vsel %vm1763, %v1657, 0.0
        %v1820 = vsel %vm1763, %v1658, 0.0
        %v1821 = vsel %vm1764, %v1655, 0.0
        %v1822 = vsel %vm1764, %v1656, 0.0
        %v1823 = vsel %vm1765, %v1653, 0.0
        %v1824 = vsel %vm1765, %v1654, 0.0
        %v1825 = vsel %vm1766, %v1651, 0.0
        %v1826 = vsel %vm1766, %v1652, 0.0
        %v1827 = vsel %vm1767, %v1649, 0.0
        %v1828 = vsel %vm1767, %v1650, 0.0
        %v1829 = vsel %vm1768, %v1647, 0.0
        %v1830 = vsel %vm1768, %v1648, 0.0
        %v1831 = vsel %vm1769, %v1645, 0.0
        %v1832 = vsel %vm1769, %v1646, 0.0
        %v1833 = vsel %vm1770, %v1643, 0.0
        %v1834 = vsel %vm1770, %v1644, 0.0
        %v1835 = vrot.slane %v1514, 1
        %v1836 = vrot.slane %v1515, 1
        %v1837 = vrot.slane %v1516, 1
        %v1838 = vrot.slane %v1517, 1
        %v1839 = vrot.slane %v1518, 1
        %v1840 = vrot.slane %v1519, 1
        %v1841 = vrot.slane %v1520, 1
        %v1842 = vrot.slane %v1521, 1
        %v1843 = vrot.slane %v1522, 1
        %v1844 = vrot.slane %v1523, 1
        %v1845 = vrot.slane %v1524, 1
        %v1846 = vrot.slane %v1525, 1
        %v1847 = vrot.slane %v1526, 1
        %v1848 = vrot.slane %v1527, 1
        %v1849 = vrot.slane %v1528, 1
        %v1850 = vrot.slane %v1529, 1
        %v1851 = vrot.slane %v1530, 1
        %v1852 = vrot.slane %v1531, 1
        %v1853 = vrot.slane %v1532, 1
        %v1854 = vrot.slane %v1533, 1
        %v1855 = vrot.slane %v1534, 1
        %v1856 = vrot.slane %v1535, 1
        %v1857 = vrot.slane %v1536, 1
        %v1858 = vrot.slane %v1537, 1
        %v1859 = vrot.slane %v1538, 1
        %v1860 = vrot.slane %v1539, 1
        %v1861 = vrot.slane %v1540, 1
        %v1862 = vrot.slane %v1541, 1
        %v1863 = vrot.slane %v1542, 1
        %v1864 = vrot.slane %v1543, 1
        %v1865 = vrot.slane %v1544, 1
        %v1866 = vrot.slane %v1545, 1
        %v1867 = vrot.slane %v1546, 1
        %v1868 = vrot.slane %v1547, 1
        %v1869 = vrot.slane %v1548, 1
        %v1870 = vrot.slane %v1549, 1
        %v1871 = vrot.slane %v1550, 1
        %v1872 = vrot.slane %v1551, 1
        %v1873 = vrot.slane %v1552, 1
        %v1874 = vrot.slane %v1553, 1
        %v1875 = vrot.slane %v1554, 1
        %v1876 = vrot.slane %v1555, 1
        %v1877 = vrot.slane %v1556, 1
        %v1878 = vrot.slane %v1557, 1
        %v1879 = vrot.slane %v1558, 1
        %v1880 = vrot.slane %v1559, 1
        %v1881 = vrot.slane %v1560, 1
        %v1882 = vrot.slane %v1561, 1
        %v1883 = vrot.slane %v1562, 1
        %v1884 = vrot.slane %v1563, 1
        %v1885 = vrot.slane %v1564, 1
        %v1886 = vrot.slane %v1565, 1
        %v1887 = vrot.slane %v1566, 1
        %v1888 = vrot.slane %v1567, 1
        %v1889 = vrot.slane %v1568, 1
        %v1890 = vrot.slane %v1569, 1
        %v1891 = vrot.slane %v1570, 1
        %v1892 = vrot.slane %v1571, 1
        %v1893 = vrot.slane %v1572, 1
        %v1894 = vrot.slane %v1573, 1
        %v1895 = vrot.slane %v1574, 1
        %v1896 = vrot.slane %v1575, 1
        %v1897 = vrot.slane %v1576, 1
        %v1898 = vrot.slane %v1577, 1
        %vm1899 = vcmp.lt.s32.totalorder %v1034, 7
        %v1900 = vsel %vm1899, %v1895, %v1897
        %v1901 = vsel %vm1899, %v1896, %v1898
        %v1902 = vsel %vm1899, %v1893, %v1895
        %v1903 = vsel %vm1899, %v1894, %v1896
        %v1904 = vsel %vm1899, %v1891, %v1893
        %v1905 = vsel %vm1899, %v1892, %v1894
        %v1906 = vsel %vm1899, %v1889, %v1891
        %v1907 = vsel %vm1899, %v1890, %v1892
        %v1908 = vsel %vm1899, %v1887, %v1889
        %v1909 = vsel %vm1899, %v1888, %v1890
        %v1910 = vsel %vm1899, %v1885, %v1887
        %v1911 = vsel %vm1899, %v1886, %v1888
        %v1912 = vsel %vm1899, %v1883, %v1885
        %v1913 = vsel %vm1899, %v1884, %v1886
        %v1914 = vsel %vm1899, %v1881, %v1883
        %v1915 = vsel %vm1899, %v1882, %v1884
        %v1916 = vsel %vm1899, %v1879, %v1881
        %v1917 = vsel %vm1899, %v1880, %v1882
        %v1918 = vsel %vm1899, %v1877, %v1879
        %v1919 = vsel %vm1899, %v1878, %v1880
        %v1920 = vsel %vm1899, %v1875, %v1877
        %v1921 = vsel %vm1899, %v1876, %v1878
        %v1922 = vsel %vm1899, %v1873, %v1875
        %v1923 = vsel %vm1899, %v1874, %v1876
        %v1924 = vsel %vm1899, %v1871, %v1873
        %v1925 = vsel %vm1899, %v1872, %v1874
        %v1926 = vsel %vm1899, %v1869, %v1871
        %v1927 = vsel %vm1899, %v1870, %v1872
        %v1928 = vsel %vm1899, %v1867, %v1869
        %v1929 = vsel %vm1899, %v1868, %v1870
        %v1930 = vsel %vm1899, %v1865, %v1867
        %v1931 = vsel %vm1899, %v1866, %v1868
        %v1932 = vsel %vm1899, %v1863, %v1865
        %v1933 = vsel %vm1899, %v1864, %v1866
        %v1934 = vsel %vm1899, %v1861, %v1863
        %v1935 = vsel %vm1899, %v1862, %v1864
        %v1936 = vsel %vm1899, %v1859, %v1861
        %v1937 = vsel %vm1899, %v1860, %v1862
        %v1938 = vsel %vm1899, %v1857, %v1859
        %v1939 = vsel %vm1899, %v1858, %v1860
        %v1940 = vsel %vm1899, %v1855, %v1857
        %v1941 = vsel %vm1899, %v1856, %v1858
        %v1942 = vsel %vm1899, %v1853, %v1855
        %v1943 = vsel %vm1899, %v1854, %v1856
        %v1944 = vsel %vm1899, %v1851, %v1853
        %v1945 = vsel %vm1899, %v1852, %v1854
        %v1946 = vsel %vm1899, %v1849, %v1851
        %v1947 = vsel %vm1899, %v1850, %v1852
        %v1948 = vsel %vm1899, %v1847, %v1849
        %v1949 = vsel %vm1899, %v1848, %v1850
        %v1950 = vsel %vm1899, %v1845, %v1847
        %v1951 = vsel %vm1899, %v1846, %v1848
        %v1952 = vsel %vm1899, %v1843, %v1845
        %v1953 = vsel %vm1899, %v1844, %v1846
        %v1954 = vsel %vm1899, %v1841, %v1843
        %v1955 = vsel %vm1899, %v1842, %v1844
        %v1956 = vsel %vm1899, %v1839, %v1841
        %v1957 = vsel %vm1899, %v1840, %v1842
        %v1958 = vsel %vm1899, %v1837, %v1839
        %v1959 = vsel %vm1899, %v1838, %v1840
        %v1960 = vsel %vm1899, %v1835, %v1837
        %v1961 = vsel %vm1899, %v1836, %v1838
        %v1962 = vsel %vm1899, %v1897, %v1835
        %v1963 = vsel %vm1899, %v1898, %v1836
        %v1964 = vsel %vm1482, 1, 0
        %v1965 = vsel %vm1483, 1, 0
        %v1966 = vsel %vm1484, 1, 0
        %v1967 = vsel %vm1485, 1, 0
        %v1968 = vsel %vm1486, 1, 0
        %v1969 = vsel %vm1487, 1, 0
        %v1970 = vsel %vm1488, 1, 0
        %v1971 = vsel %vm1489, 1, 0
        %v1972 = vsel %vm1490, 1, 0
        %v1973 = vsel %vm1491, 1, 0
        %v1974 = vsel %vm1492, 1, 0
        %v1975 = vsel %vm1493, 1, 0
        %v1976 = vsel %vm1494, 1, 0
        %v1977 = vsel %vm1495, 1, 0
        %v1978 = vsel %vm1496, 1, 0
        %v1979 = vsel %vm1497, 1, 0
        %v1980 = vsel %vm1498, 1, 0
        %v1981 = vsel %vm1499, 1, 0
        %v1982 = vsel %vm1500, 1, 0
        %v1983 = vsel %vm1501, 1, 0
        %v1984 = vsel %vm1502, 1, 0
        %v1985 = vsel %vm1503, 1, 0
        %v1986 = vsel %vm1504, 1, 0
        %v1987 = vsel %vm1505, 1, 0
        %v1988 = vsel %vm1506, 1, 0
        %v1989 = vsel %vm1507, 1, 0
        %v1990 = vsel %vm1508, 1, 0
        %v1991 = vsel %vm1509, 1, 0
        %v1992 = vsel %vm1510, 1, 0
        %v1993 = vsel %vm1511, 1, 0
        %v1994 = vsel %vm1512, 1, 0
        %v1995 = vsel %vm1513, 1, 0
        %vm1996 = vcmp.eq.s32.totalorder %v1964, 1
        %vm1997 = vcmp.eq.s32.totalorder %v1965, 1
        %vm1998 = vcmp.eq.s32.totalorder %v1966, 1
        %vm1999 = vcmp.eq.s32.totalorder %v1967, 1
        %vm2000 = vcmp.eq.s32.totalorder %v1968, 1
        %vm2001 = vcmp.eq.s32.totalorder %v1969, 1
        %vm2002 = vcmp.eq.s32.totalorder %v1970, 1
        %vm2003 = vcmp.eq.s32.totalorder %v1971, 1
        %vm2004 = vcmp.eq.s32.totalorder %v1972, 1
        %vm2005 = vcmp.eq.s32.totalorder %v1973, 1
        %vm2006 = vcmp.eq.s32.totalorder %v1974, 1
        %vm2007 = vcmp.eq.s32.totalorder %v1975, 1
        %vm2008 = vcmp.eq.s32.totalorder %v1976, 1
        %vm2009 = vcmp.eq.s32.totalorder %v1977, 1
        %vm2010 = vcmp.eq.s32.totalorder %v1978, 1
        %vm2011 = vcmp.eq.s32.totalorder %v1979, 1
        %vm2012 = vcmp.eq.s32.totalorder %v1980, 1
        %vm2013 = vcmp.eq.s32.totalorder %v1981, 1
        %vm2014 = vcmp.eq.s32.totalorder %v1982, 1
        %vm2015 = vcmp.eq.s32.totalorder %v1983, 1
        %vm2016 = vcmp.eq.s32.totalorder %v1984, 1
        %vm2017 = vcmp.eq.s32.totalorder %v1985, 1
        %vm2018 = vcmp.eq.s32.totalorder %v1986, 1
        %vm2019 = vcmp.eq.s32.totalorder %v1987, 1
        %vm2020 = vcmp.eq.s32.totalorder %v1988, 1
        %vm2021 = vcmp.eq.s32.totalorder %v1989, 1
        %vm2022 = vcmp.eq.s32.totalorder %v1990, 1
        %vm2023 = vcmp.eq.s32.totalorder %v1991, 1
        %vm2024 = vcmp.eq.s32.totalorder %v1992, 1
        %vm2025 = vcmp.eq.s32.totalorder %v1993, 1
        %vm2026 = vcmp.eq.s32.totalorder %v1994, 1
        %vm2027 = vcmp.eq.s32.totalorder %v1995, 1
        %v2028 = vsel %vm1996, %v1960, 0.0
        %v2029 = vsel %vm1996, %v1961, 0.0
        %v2030 = vsel %vm1997, %v1958, 0.0
        %v2031 = vsel %vm1997, %v1959, 0.0
        %v2032 = vsel %vm1998, %v1956, 0.0
        %v2033 = vsel %vm1998, %v1957, 0.0
        %v2034 = vsel %vm1999, %v1954, 0.0
        %v2035 = vsel %vm1999, %v1955, 0.0
        %v2036 = vsel %vm2000, %v1952, 0.0
        %v2037 = vsel %vm2000, %v1953, 0.0
        %v2038 = vsel %vm2001, %v1950, 0.0
        %v2039 = vsel %vm2001, %v1951, 0.0
        %v2040 = vsel %vm2002, %v1948, 0.0
        %v2041 = vsel %vm2002, %v1949, 0.0
        %v2042 = vsel %vm2003, %v1946, 0.0
        %v2043 = vsel %vm2003, %v1947, 0.0
        %v2044 = vsel %vm2004, %v1944, 0.0
        %v2045 = vsel %vm2004, %v1945, 0.0
        %v2046 = vsel %vm2005, %v1942, 0.0
        %v2047 = vsel %vm2005, %v1943, 0.0
        %v2048 = vsel %vm2006, %v1940, 0.0
        %v2049 = vsel %vm2006, %v1941, 0.0
        %v2050 = vsel %vm2007, %v1938, 0.0
        %v2051 = vsel %vm2007, %v1939, 0.0
        %v2052 = vsel %vm2008, %v1936, 0.0
        %v2053 = vsel %vm2008, %v1937, 0.0
        %v2054 = vsel %vm2009, %v1934, 0.0
        %v2055 = vsel %vm2009, %v1935, 0.0
        %v2056 = vsel %vm2010, %v1932, 0.0
        %v2057 = vsel %vm2010, %v1933, 0.0
        %v2058 = vsel %vm2011, %v1930, 0.0
        %v2059 = vsel %vm2011, %v1931, 0.0
        %v2060 = vsel %vm2012, %v1928, 0.0
        %v2061 = vsel %vm2012, %v1929, 0.0
        %v2062 = vsel %vm2013, %v1926, 0.0
        %v2063 = vsel %vm2013, %v1927, 0.0
        %v2064 = vsel %vm2014, %v1924, 0.0
        %v2065 = vsel %vm2014, %v1925, 0.0
        %v2066 = vsel %vm2015, %v1922, 0.0
        %v2067 = vsel %vm2015, %v1923, 0.0
        %v2068 = vsel %vm2016, %v1920, 0.0
        %v2069 = vsel %vm2016, %v1921, 0.0
        %v2070 = vsel %vm2017, %v1918, 0.0
        %v2071 = vsel %vm2017, %v1919, 0.0
        %v2072 = vsel %vm2018, %v1916, 0.0
        %v2073 = vsel %vm2018, %v1917, 0.0
        %v2074 = vsel %vm2019, %v1914, 0.0
        %v2075 = vsel %vm2019, %v1915, 0.0
        %v2076 = vsel %vm2020, %v1912, 0.0
        %v2077 = vsel %vm2020, %v1913, 0.0
        %v2078 = vsel %vm2021, %v1910, 0.0
        %v2079 = vsel %vm2021, %v1911, 0.0
        %v2080 = vsel %vm2022, %v1908, 0.0
        %v2081 = vsel %vm2022, %v1909, 0.0
        %v2082 = vsel %vm2023, %v1906, 0.0
        %v2083 = vsel %vm2023, %v1907, 0.0
        %v2084 = vsel %vm2024, %v1904, 0.0
        %v2085 = vsel %vm2024, %v1905, 0.0
        %v2086 = vsel %vm2025, %v1902, 0.0
        %v2087 = vsel %vm2025, %v1903, 0.0
        %v2088 = vsel %vm2026, %v1900, 0.0
        %v2089 = vsel %vm2026, %v1901, 0.0
        %v2090 = vsel %vm2027, %v1962, 0.0
        %v2091 = vsel %vm2027, %v1963, 0.0
        %v2092 = vlaneseq
        %v2093 = vshrl.u32 %v2092, 7
        %v2094 = vsub.s32 0, %v2093
        %v2095 = vrot.slane %v1029, %v2094
        %v2096 = vlaneseq
        %v2097 = vshrl.u32 %v2096, 7
        %v2098 = vsub.s32 0, %v2097
        %v2099 = vrot.slane %v1030, %v2098
        %v2100 = vmul.f32 %v1771, %v2095
        %v2101 = vmul.f32 %v1772, %v2099
        %v2102 = vmul.f32 %v1773, %v2095
        %v2103 = vmul.f32 %v1774, %v2099
        %v2104 = vmul.f32 %v1775, %v2095
        %v2105 = vmul.f32 %v1776, %v2099
        %v2106 = vmul.f32 %v1777, %v2095
        %v2107 = vmul.f32 %v1778, %v2099
        %v2108 = vmul.f32 %v1779, %v2095
        %v2109 = vmul.f32 %v1780, %v2099
        %v2110 = vmul.f32 %v1781, %v2095
        %v2111 = vmul.f32 %v1782, %v2099
        %v2112 = vmul.f32 %v1783, %v2095
        %v2113 = vmul.f32 %v1784, %v2099
        %v2114 = vmul.f32 %v1785, %v2095
        %v2115 = vmul.f32 %v1786, %v2099
        %v2116 = vmul.f32 %v1787, %v2095
        %v2117 = vmul.f32 %v1788, %v2099
        %v2118 = vmul.f32 %v1789, %v2095
        %v2119 = vmul.f32 %v1790, %v2099
        %v2120 = vmul.f32 %v1791, %v2095
        %v2121 = vmul.f32 %v1792, %v2099
        %v2122 = vmul.f32 %v1793, %v2095
        %v2123 = vmul.f32 %v1794, %v2099
        %v2124 = vmul.f32 %v1795, %v2095
        %v2125 = vmul.f32 %v1796, %v2099
        %v2126 = vmul.f32 %v1797, %v2095
        %v2127 = vmul.f32 %v1798, %v2099
        %v2128 = vmul.f32 %v1799, %v2095
        %v2129 = vmul.f32 %v1800, %v2099
        %v2130 = vmul.f32 %v1801, %v2095
        %v2131 = vmul.f32 %v1802, %v2099
        %v2132 = vmul.f32 %v1803, %v2095
        %v2133 = vmul.f32 %v1804, %v2099
        %v2134 = vmul.f32 %v1805, %v2095
        %v2135 = vmul.f32 %v1806, %v2099
        %v2136 = vmul.f32 %v1807, %v2095
        %v2137 = vmul.f32 %v1808, %v2099
        %v2138 = vmul.f32 %v1809, %v2095
        %v2139 = vmul.f32 %v1810, %v2099
        %v2140 = vmul.f32 %v1811, %v2095
        %v2141 = vmul.f32 %v1812, %v2099
        %v2142 = vmul.f32 %v1813, %v2095
        %v2143 = vmul.f32 %v1814, %v2099
        %v2144 = vmul.f32 %v1815, %v2095
        %v2145 = vmul.f32 %v1816, %v2099
        %v2146 = vmul.f32 %v1817, %v2095
        %v2147 = vmul.f32 %v1818, %v2099
        %v2148 = vmul.f32 %v1819, %v2095
        %v2149 = vmul.f32 %v1820, %v2099
        %v2150 = vmul.f32 %v1821, %v2095
        %v2151 = vmul.f32 %v1822, %v2099
        %v2152 = vmul.f32 %v1823, %v2095
        %v2153 = vmul.f32 %v1824, %v2099
        %v2154 = vmul.f32 %v1825, %v2095
        %v2155 = vmul.f32 %v1826, %v2099
        %v2156 = vmul.f32 %v1827, %v2095
        %v2157 = vmul.f32 %v1828, %v2099
        %v2158 = vmul.f32 %v1829, %v2095
        %v2159 = vmul.f32 %v1830, %v2099
        %v2160 = vmul.f32 %v1831, %v2095
        %v2161 = vmul.f32 %v1832, %v2099
        %v2162 = vmul.f32 %v1833, %v2095
        %v2163 = vmul.f32 %v1834, %v2099
        %v2164 = vlaneseq
        %v2165 = vshrl.u32 %v2164, 7
        %v2166 = vsub.s32 1, %v2165
        %v2167 = vrot.slane %v1029, %v2166
        %v2168 = vlaneseq
        %v2169 = vshrl.u32 %v2168, 7
        %v2170 = vsub.s32 1, %v2169
        %v2171 = vrot.slane %v1030, %v2170
        %v2172 = vmul.f32 %v1514, %v2167
        %v2173 = vmul.f32 %v1515, %v2171
        %v2174 = vmul.f32 %v1516, %v2167
        %v2175 = vmul.f32 %v1517, %v2171
        %v2176 = vmul.f32 %v1518, %v2167
        %v2177 = vmul.f32 %v1519, %v2171
        %v2178 = vmul.f32 %v1520, %v2167
        %v2179 = vmul.f32 %v1521, %v2171
        %v2180 = vmul.f32 %v1522, %v2167
        %v2181 = vmul.f32 %v1523, %v2171
        %v2182 = vmul.f32 %v1524, %v2167
        %v2183 = vmul.f32 %v1525, %v2171
        %v2184 = vmul.f32 %v1526, %v2167
        %v2185 = vmul.f32 %v1527, %v2171
        %v2186 = vmul.f32 %v1528, %v2167
        %v2187 = vmul.f32 %v1529, %v2171
        %v2188 = vmul.f32 %v1530, %v2167
        %v2189 = vmul.f32 %v1531, %v2171
        %v2190 = vmul.f32 %v1532, %v2167
        %v2191 = vmul.f32 %v1533, %v2171
        %v2192 = vmul.f32 %v1534, %v2167
        %v2193 = vmul.f32 %v1535, %v2171
        %v2194 = vmul.f32 %v1536, %v2167
        %v2195 = vmul.f32 %v1537, %v2171
        %v2196 = vmul.f32 %v1538, %v2167
        %v2197 = vmul.f32 %v1539, %v2171
        %v2198 = vmul.f32 %v1540, %v2167
        %v2199 = vmul.f32 %v1541, %v2171
        %v2200 = vmul.f32 %v1542, %v2167
        %v2201 = vmul.f32 %v1543, %v2171
        %v2202 = vmul.f32 %v1544, %v2167
        %v2203 = vmul.f32 %v1545, %v2171
        %v2204 = vmul.f32 %v1546, %v2167
        %v2205 = vmul.f32 %v1547, %v2171
        %v2206 = vmul.f32 %v1548, %v2167
        %v2207 = vmul.f32 %v1549, %v2171
        %v2208 = vmul.f32 %v1550, %v2167
        %v2209 = vmul.f32 %v1551, %v2171
        %v2210 = vmul.f32 %v1552, %v2167
        %v2211 = vmul.f32 %v1553, %v2171
        %v2212 = vmul.f32 %v1554, %v2167
        %v2213 = vmul.f32 %v1555, %v2171
        %v2214 = vmul.f32 %v1556, %v2167
        %v2215 = vmul.f32 %v1557, %v2171
        %v2216 = vmul.f32 %v1558, %v2167
        %v2217 = vmul.f32 %v1559, %v2171
        %v2218 = vmul.f32 %v1560, %v2167
        %v2219 = vmul.f32 %v1561, %v2171
        %v2220 = vmul.f32 %v1562, %v2167
        %v2221 = vmul.f32 %v1563, %v2171
        %v2222 = vmul.f32 %v1564, %v2167
        %v2223 = vmul.f32 %v1565, %v2171
        %v2224 = vmul.f32 %v1566, %v2167
        %v2225 = vmul.f32 %v1567, %v2171
        %v2226 = vmul.f32 %v1568, %v2167
        %v2227 = vmul.f32 %v1569, %v2171
        %v2228 = vmul.f32 %v1570, %v2167
        %v2229 = vmul.f32 %v1571, %v2171
        %v2230 = vmul.f32 %v1572, %v2167
        %v2231 = vmul.f32 %v1573, %v2171
        %v2232 = vmul.f32 %v1574, %v2167
        %v2233 = vmul.f32 %v1575, %v2171
        %v2234 = vmul.f32 %v1576, %v2167
        %v2235 = vmul.f32 %v1577, %v2171
        %v2236 = vadd.f32 %v2100, %v2172
        %v2237 = vadd.f32 %v2101, %v2173
        %v2238 = vadd.f32 %v2102, %v2174
        %v2239 = vadd.f32 %v2103, %v2175
        %v2240 = vadd.f32 %v2104, %v2176
        %v2241 = vadd.f32 %v2105, %v2177
        %v2242 = vadd.f32 %v2106, %v2178
        %v2243 = vadd.f32 %v2107, %v2179
        %v2244 = vadd.f32 %v2108, %v2180
        %v2245 = vadd.f32 %v2109, %v2181
        %v2246 = vadd.f32 %v2110, %v2182
        %v2247 = vadd.f32 %v2111, %v2183
        %v2248 = vadd.f32 %v2112, %v2184
        %v2249 = vadd.f32 %v2113, %v2185
        %v2250 = vadd.f32 %v2114, %v2186
        %v2251 = vadd.f32 %v2115, %v2187
        %v2252 = vadd.f32 %v2116, %v2188
        %v2253 = vadd.f32 %v2117, %v2189
        %v2254 = vadd.f32 %v2118, %v2190
        %v2255 = vadd.f32 %v2119, %v2191
        %v2256 = vadd.f32 %v2120, %v2192
        %v2257 = vadd.f32 %v2121, %v2193
        %v2258 = vadd.f32 %v2122, %v2194
        %v2259 = vadd.f32 %v2123, %v2195
        %v2260 = vadd.f32 %v2124, %v2196
        %v2261 = vadd.f32 %v2125, %v2197
        %v2262 = vadd.f32 %v2126, %v2198
        %v2263 = vadd.f32 %v2127, %v2199
        %v2264 = vadd.f32 %v2128, %v2200
        %v2265 = vadd.f32 %v2129, %v2201
        %v2266 = vadd.f32 %v2130, %v2202
        %v2267 = vadd.f32 %v2131, %v2203
        %v2268 = vadd.f32 %v2132, %v2204
        %v2269 = vadd.f32 %v2133, %v2205
        %v2270 = vadd.f32 %v2134, %v2206
        %v2271 = vadd.f32 %v2135, %v2207
        %v2272 = vadd.f32 %v2136, %v2208
        %v2273 = vadd.f32 %v2137, %v2209
        %v2274 = vadd.f32 %v2138, %v2210
        %v2275 = vadd.f32 %v2139, %v2211
        %v2276 = vadd.f32 %v2140, %v2212
        %v2277 = vadd.f32 %v2141, %v2213
        %v2278 = vadd.f32 %v2142, %v2214
        %v2279 = vadd.f32 %v2143, %v2215
        %v2280 = vadd.f32 %v2144, %v2216
        %v2281 = vadd.f32 %v2145, %v2217
        %v2282 = vadd.f32 %v2146, %v2218
        %v2283 = vadd.f32 %v2147, %v2219
        %v2284 = vadd.f32 %v2148, %v2220
        %v2285 = vadd.f32 %v2149, %v2221
        %v2286 = vadd.f32 %v2150, %v2222
        %v2287 = vadd.f32 %v2151, %v2223
        %v2288 = vadd.f32 %v2152, %v2224
        %v2289 = vadd.f32 %v2153, %v2225
        %v2290 = vadd.f32 %v2154, %v2226
        %v2291 = vadd.f32 %v2155, %v2227
        %v2292 = vadd.f32 %v2156, %v2228
        %v2293 = vadd.f32 %v2157, %v2229
        %v2294 = vadd.f32 %v2158, %v2230
        %v2295 = vadd.f32 %v2159, %v2231
        %v2296 = vadd.f32 %v2160, %v2232
        %v2297 = vadd.f32 %v2161, %v2233
        %v2298 = vadd.f32 %v2162, %v2234
        %v2299 = vadd.f32 %v2163, %v2235
        %v2300 = vlaneseq
        %v2301 = vshrl.u32 %v2300, 7
        %v2302 = vsub.s32 2, %v2301
        %v2303 = vrot.slane %v1029, %v2302
        %v2304 = vlaneseq
        %v2305 = vshrl.u32 %v2304, 7
        %v2306 = vsub.s32 2, %v2305
        %v2307 = vrot.slane %v1030, %v2306
        %v2308 = vmul.f32 %v2028, %v2303
        %v2309 = vmul.f32 %v2029, %v2307
        %v2310 = vmul.f32 %v2030, %v2303
        %v2311 = vmul.f32 %v2031, %v2307
        %v2312 = vmul.f32 %v2032, %v2303
        %v2313 = vmul.f32 %v2033, %v2307
        %v2314 = vmul.f32 %v2034, %v2303
        %v2315 = vmul.f32 %v2035, %v2307
        %v2316 = vmul.f32 %v2036, %v2303
        %v2317 = vmul.f32 %v2037, %v2307
        %v2318 = vmul.f32 %v2038, %v2303
        %v2319 = vmul.f32 %v2039, %v2307
        %v2320 = vmul.f32 %v2040, %v2303
        %v2321 = vmul.f32 %v2041, %v2307
        %v2322 = vmul.f32 %v2042, %v2303
        %v2323 = vmul.f32 %v2043, %v2307
        %v2324 = vmul.f32 %v2044, %v2303
        %v2325 = vmul.f32 %v2045, %v2307
        %v2326 = vmul.f32 %v2046, %v2303
        %v2327 = vmul.f32 %v2047, %v2307
        %v2328 = vmul.f32 %v2048, %v2303
        %v2329 = vmul.f32 %v2049, %v2307
        %v2330 = vmul.f32 %v2050, %v2303
        %v2331 = vmul.f32 %v2051, %v2307
        %v2332 = vmul.f32 %v2052, %v2303
        %v2333 = vmul.f32 %v2053, %v2307
        %v2334 = vmul.f32 %v2054, %v2303
        %v2335 = vmul.f32 %v2055, %v2307
        %v2336 = vmul.f32 %v2056, %v2303
        %v2337 = vmul.f32 %v2057, %v2307
        %v2338 = vmul.f32 %v2058, %v2303
        %v2339 = vmul.f32 %v2059, %v2307
        %v2340 = vmul.f32 %v2060, %v2303
        %v2341 = vmul.f32 %v2061, %v2307
        %v2342 = vmul.f32 %v2062, %v2303
        %v2343 = vmul.f32 %v2063, %v2307
        %v2344 = vmul.f32 %v2064, %v2303
        %v2345 = vmul.f32 %v2065, %v2307
        %v2346 = vmul.f32 %v2066, %v2303
        %v2347 = vmul.f32 %v2067, %v2307
        %v2348 = vmul.f32 %v2068, %v2303
        %v2349 = vmul.f32 %v2069, %v2307
        %v2350 = vmul.f32 %v2070, %v2303
        %v2351 = vmul.f32 %v2071, %v2307
        %v2352 = vmul.f32 %v2072, %v2303
        %v2353 = vmul.f32 %v2073, %v2307
        %v2354 = vmul.f32 %v2074, %v2303
        %v2355 = vmul.f32 %v2075, %v2307
        %v2356 = vmul.f32 %v2076, %v2303
        %v2357 = vmul.f32 %v2077, %v2307
        %v2358 = vmul.f32 %v2078, %v2303
        %v2359 = vmul.f32 %v2079, %v2307
        %v2360 = vmul.f32 %v2080, %v2303
        %v2361 = vmul.f32 %v2081, %v2307
        %v2362 = vmul.f32 %v2082, %v2303
        %v2363 = vmul.f32 %v2083, %v2307
        %v2364 = vmul.f32 %v2084, %v2303
        %v2365 = vmul.f32 %v2085, %v2307
        %v2366 = vmul.f32 %v2086, %v2303
        %v2367 = vmul.f32 %v2087, %v2307
        %v2368 = vmul.f32 %v2088, %v2303
        %v2369 = vmul.f32 %v2089, %v2307
        %v2370 = vmul.f32 %v2090, %v2303
        %v2371 = vmul.f32 %v2091, %v2307
        %v2372 = vadd.f32 %v2236, %v2308
        %v2373 = vadd.f32 %v2237, %v2309
        %v2374 = vadd.f32 %v2238, %v2310
        %v2375 = vadd.f32 %v2239, %v2311
        %v2376 = vadd.f32 %v2240, %v2312
        %v2377 = vadd.f32 %v2241, %v2313
        %v2378 = vadd.f32 %v2242, %v2314
        %v2379 = vadd.f32 %v2243, %v2315
        %v2380 = vadd.f32 %v2244, %v2316
        %v2381 = vadd.f32 %v2245, %v2317
        %v2382 = vadd.f32 %v2246, %v2318
        %v2383 = vadd.f32 %v2247, %v2319
        %v2384 = vadd.f32 %v2248, %v2320
        %v2385 = vadd.f32 %v2249, %v2321
        %v2386 = vadd.f32 %v2250, %v2322
        %v2387 = vadd.f32 %v2251, %v2323
        %v2388 = vadd.f32 %v2252, %v2324
        %v2389 = vadd.f32 %v2253, %v2325
        %v2390 = vadd.f32 %v2254, %v2326
        %v2391 = vadd.f32 %v2255, %v2327
        %v2392 = vadd.f32 %v2256, %v2328
        %v2393 = vadd.f32 %v2257, %v2329
        %v2394 = vadd.f32 %v2258, %v2330
        %v2395 = vadd.f32 %v2259, %v2331
        %v2396 = vadd.f32 %v2260, %v2332
        %v2397 = vadd.f32 %v2261, %v2333
        %v2398 = vadd.f32 %v2262, %v2334
        %v2399 = vadd.f32 %v2263, %v2335
        %v2400 = vadd.f32 %v2264, %v2336
        %v2401 = vadd.f32 %v2265, %v2337
        %v2402 = vadd.f32 %v2266, %v2338
        %v2403 = vadd.f32 %v2267, %v2339
        %v2404 = vadd.f32 %v2268, %v2340
        %v2405 = vadd.f32 %v2269, %v2341
        %v2406 = vadd.f32 %v2270, %v2342
        %v2407 = vadd.f32 %v2271, %v2343
        %v2408 = vadd.f32 %v2272, %v2344
        %v2409 = vadd.f32 %v2273, %v2345
        %v2410 = vadd.f32 %v2274, %v2346
        %v2411 = vadd.f32 %v2275, %v2347
        %v2412 = vadd.f32 %v2276, %v2348
        %v2413 = vadd.f32 %v2277, %v2349
        %v2414 = vadd.f32 %v2278, %v2350
        %v2415 = vadd.f32 %v2279, %v2351
        %v2416 = vadd.f32 %v2280, %v2352
        %v2417 = vadd.f32 %v2281, %v2353
        %v2418 = vadd.f32 %v2282, %v2354
        %v2419 = vadd.f32 %v2283, %v2355
        %v2420 = vadd.f32 %v2284, %v2356
        %v2421 = vadd.f32 %v2285, %v2357
        %v2422 = vadd.f32 %v2286, %v2358
        %v2423 = vadd.f32 %v2287, %v2359
        %v2424 = vadd.f32 %v2288, %v2360
        %v2425 = vadd.f32 %v2289, %v2361
        %v2426 = vadd.f32 %v2290, %v2362
        %v2427 = vadd.f32 %v2291, %v2363
        %v2428 = vadd.f32 %v2292, %v2364
        %v2429 = vadd.f32 %v2293, %v2365
        %v2430 = vadd.f32 %v2294, %v2366
        %v2431 = vadd.f32 %v2295, %v2367
        %v2432 = vadd.f32 %v2296, %v2368
        %v2433 = vadd.f32 %v2297, %v2369
        %v2434 = vadd.f32 %v2298, %v2370
        %v2435 = vadd.f32 %v2299, %v2371
        %v2436 = vld [vmem:[#allocation3 + $0x200] sm:$0xff]
        %v2437 = vld [vmem:[#allocation3 + $0x208] sm:$0xff]
        %v2438 = vld [vmem:[#allocation3 + $0x210] sm:$0xff]
        %v2439 = vld [vmem:[#allocation3 + $0x218] sm:$0xff]
        %v2440 = vrot.slane %v2436, 7
        %v2441 = vrot.slane %v2437, 7
        %v2442 = vrot.slane %v2438, 7
        %v2443 = vrot.slane %v2439, 7
        %v2444 = vsel %vm1642, %v2440, %v2442
        %v2445 = vsel %vm1642, %v2441, %v2443
        %v2446 = vsel %vm1642, %v1640, %v2440
        %v2447 = vsel %vm1642, %v1641, %v2441
        %v2448 = vsel %vm1642, %v2442, %v1582
        %v2449 = vsel %vm1642, %v2443, %v1583
        %v2450 = vsel %vm1739, %v2448, 0.0
        %v2451 = vsel %vm1739, %v2449, 0.0
        %v2452 = vsel %vm1740, %v1699, 0.0
        %v2453 = vsel %vm1740, %v1700, 0.0
        %v2454 = vsel %vm1741, %v1697, 0.0
        %v2455 = vsel %vm1741, %v1698, 0.0
        %v2456 = vsel %vm1742, %v1695, 0.0
        %v2457 = vsel %vm1742, %v1696, 0.0
        %v2458 = vsel %vm1743, %v1693, 0.0
        %v2459 = vsel %vm1743, %v1694, 0.0
        %v2460 = vsel %vm1744, %v1691, 0.0
        %v2461 = vsel %vm1744, %v1692, 0.0
        %v2462 = vsel %vm1745, %v1689, 0.0
        %v2463 = vsel %vm1745, %v1690, 0.0
        %v2464 = vsel %vm1746, %v1687, 0.0
        %v2465 = vsel %vm1746, %v1688, 0.0
        %v2466 = vsel %vm1747, %v1685, 0.0
        %v2467 = vsel %vm1747, %v1686, 0.0
        %v2468 = vsel %vm1748, %v1683, 0.0
        %v2469 = vsel %vm1748, %v1684, 0.0
        %v2470 = vsel %vm1749, %v1681, 0.0
        %v2471 = vsel %vm1749, %v1682, 0.0
        %v2472 = vsel %vm1750, %v1679, 0.0
        %v2473 = vsel %vm1750, %v1680, 0.0
        %v2474 = vsel %vm1751, %v1677, 0.0
        %v2475 = vsel %vm1751, %v1678, 0.0
        %v2476 = vsel %vm1752, %v1675, 0.0
        %v2477 = vsel %vm1752, %v1676, 0.0
        %v2478 = vsel %vm1753, %v1673, 0.0
        %v2479 = vsel %vm1753, %v1674, 0.0
        %v2480 = vsel %vm1754, %v1671, 0.0
        %v2481 = vsel %vm1754, %v1672, 0.0
        %v2482 = vsel %vm1755, %v1669, 0.0
        %v2483 = vsel %vm1755, %v1670, 0.0
        %v2484 = vsel %vm1756, %v1667, 0.0
        %v2485 = vsel %vm1756, %v1668, 0.0
        %v2486 = vsel %vm1757, %v1665, 0.0
        %v2487 = vsel %vm1757, %v1666, 0.0
        %v2488 = vsel %vm1758, %v1663, 0.0
        %v2489 = vsel %vm1758, %v1664, 0.0
        %v2490 = vsel %vm1759, %v1661, 0.0
        %v2491 = vsel %vm1759, %v1662, 0.0
        %v2492 = vsel %vm1760, %v1659, 0.0
        %v2493 = vsel %vm1760, %v1660, 0.0
        %v2494 = vsel %vm1761, %v1657, 0.0
        %v2495 = vsel %vm1761, %v1658, 0.0
        %v2496 = vsel %vm1762, %v1655, 0.0
        %v2497 = vsel %vm1762, %v1656, 0.0
        %v2498 = vsel %vm1763, %v1653, 0.0
        %v2499 = vsel %vm1763, %v1654, 0.0
        %v2500 = vsel %vm1764, %v1651, 0.0
        %v2501 = vsel %vm1764, %v1652, 0.0
        %v2502 = vsel %vm1765, %v1649, 0.0
        %v2503 = vsel %vm1765, %v1650, 0.0
        %v2504 = vsel %vm1766, %v1647, 0.0
        %v2505 = vsel %vm1766, %v1648, 0.0
        %v2506 = vsel %vm1767, %v1645, 0.0
        %v2507 = vsel %vm1767, %v1646, 0.0
        %v2508 = vsel %vm1768, %v1643, 0.0
        %v2509 = vsel %vm1768, %v1644, 0.0
        %v2510 = vsel %vm1769, %v2446, 0.0
        %v2511 = vsel %vm1769, %v2447, 0.0
        %v2512 = vsel %vm1770, %v2444, 0.0
        %v2513 = vsel %vm1770, %v2445, 0.0
        %v2514 = vrot.slane %v2436, 1
        %v2515 = vrot.slane %v2437, 1
        %v2516 = vrot.slane %v2438, 1
        %v2517 = vrot.slane %v2439, 1
        %v2518 = vsel %vm1899, %v2514, %v2516
        %v2519 = vsel %vm1899, %v2515, %v2517
        %v2520 = vsel %vm1899, %v1897, %v2514
        %v2521 = vsel %vm1899, %v1898, %v2515
        %v2522 = vsel %vm1899, %v2516, %v1839
        %v2523 = vsel %vm1899, %v2517, %v1840
        %v2524 = vsel %vm1996, %v1956, 0.0
        %v2525 = vsel %vm1996, %v1957, 0.0
        %v2526 = vsel %vm1997, %v1954, 0.0
        %v2527 = vsel %vm1997, %v1955, 0.0
        %v2528 = vsel %vm1998, %v1952, 0.0
        %v2529 = vsel %vm1998, %v1953, 0.0
        %v2530 = vsel %vm1999, %v1950, 0.0
        %v2531 = vsel %vm1999, %v1951, 0.0
        %v2532 = vsel %vm2000, %v1948, 0.0
        %v2533 = vsel %vm2000, %v1949, 0.0
        %v2534 = vsel %vm2001, %v1946, 0.0
        %v2535 = vsel %vm2001, %v1947, 0.0
        %v2536 = vsel %vm2002, %v1944, 0.0
        %v2537 = vsel %vm2002, %v1945, 0.0
        %v2538 = vsel %vm2003, %v1942, 0.0
        %v2539 = vsel %vm2003, %v1943, 0.0
        %v2540 = vsel %vm2004, %v1940, 0.0
        %v2541 = vsel %vm2004, %v1941, 0.0
        %v2542 = vsel %vm2005, %v1938, 0.0
        %v2543 = vsel %vm2005, %v1939, 0.0
        %v2544 = vsel %vm2006, %v1936, 0.0
        %v2545 = vsel %vm2006, %v1937, 0.0
        %v2546 = vsel %vm2007, %v1934, 0.0
        %v2547 = vsel %vm2007, %v1935, 0.0
        %v2548 = vsel %vm2008, %v1932, 0.0
        %v2549 = vsel %vm2008, %v1933, 0.0
        %v2550 = vsel %vm2009, %v1930, 0.0
        %v2551 = vsel %vm2009, %v1931, 0.0
        %v2552 = vsel %vm2010, %v1928, 0.0
        %v2553 = vsel %vm2010, %v1929, 0.0
        %v2554 = vsel %vm2011, %v1926, 0.0
        %v2555 = vsel %vm2011, %v1927, 0.0
        %v2556 = vsel %vm2012, %v1924, 0.0
        %v2557 = vsel %vm2012, %v1925, 0.0
        %v2558 = vsel %vm2013, %v1922, 0.0
        %v2559 = vsel %vm2013, %v1923, 0.0
        %v2560 = vsel %vm2014, %v1920, 0.0
        %v2561 = vsel %vm2014, %v1921, 0.0
        %v2562 = vsel %vm2015, %v1918, 0.0
        %v2563 = vsel %vm2015, %v1919, 0.0
        %v2564 = vsel %vm2016, %v1916, 0.0
        %v2565 = vsel %vm2016, %v1917, 0.0
        %v2566 = vsel %vm2017, %v1914, 0.0
        %v2567 = vsel %vm2017, %v1915, 0.0
        %v2568 = vsel %vm2018, %v1912, 0.0
        %v2569 = vsel %vm2018, %v1913, 0.0
        %v2570 = vsel %vm2019, %v1910, 0.0
        %v2571 = vsel %vm2019, %v1911, 0.0
        %v2572 = vsel %vm2020, %v1908, 0.0
        %v2573 = vsel %vm2020, %v1909, 0.0
        %v2574 = vsel %vm2021, %v1906, 0.0
        %v2575 = vsel %vm2021, %v1907, 0.0
        %v2576 = vsel %vm2022, %v1904, 0.0
        %v2577 = vsel %vm2022, %v1905, 0.0
        %v2578 = vsel %vm2023, %v1902, 0.0
        %v2579 = vsel %vm2023, %v1903, 0.0
        %v2580 = vsel %vm2024, %v1900, 0.0
        %v2581 = vsel %vm2024, %v1901, 0.0
        %v2582 = vsel %vm2025, %v2520, 0.0
        %v2583 = vsel %vm2025, %v2521, 0.0
        %v2584 = vsel %vm2026, %v2518, 0.0
        %v2585 = vsel %vm2026, %v2519, 0.0
        %v2586 = vsel %vm2027, %v2522, 0.0
        %v2587 = vsel %vm2027, %v2523, 0.0
        %v2588 = vlaneseq
        %v2589 = vshrl.u32 %v2588, 7
        %v2590 = vsub.s32 3, %v2589
        %v2591 = vrot.slane %v1029, %v2590
        %v2592 = vlaneseq
        %v2593 = vshrl.u32 %v2592, 7
        %v2594 = vsub.s32 3, %v2593
        %v2595 = vrot.slane %v1030, %v2594
        %v2596 = vmul.f32 %v2450, %v2591
        %v2597 = vmul.f32 %v2451, %v2595
        %v2598 = vmul.f32 %v2452, %v2591
        %v2599 = vmul.f32 %v2453, %v2595
        %v2600 = vmul.f32 %v2454, %v2591
        %v2601 = vmul.f32 %v2455, %v2595
        %v2602 = vmul.f32 %v2456, %v2591
        %v2603 = vmul.f32 %v2457, %v2595
        %v2604 = vmul.f32 %v2458, %v2591
        %v2605 = vmul.f32 %v2459, %v2595
        %v2606 = vmul.f32 %v2460, %v2591
        %v2607 = vmul.f32 %v2461, %v2595
        %v2608 = vmul.f32 %v2462, %v2591
        %v2609 = vmul.f32 %v2463, %v2595
        %v2610 = vmul.f32 %v2464, %v2591
        %v2611 = vmul.f32 %v2465, %v2595
        %v2612 = vmul.f32 %v2466, %v2591
        %v2613 = vmul.f32 %v2467, %v2595
        %v2614 = vmul.f32 %v2468, %v2591
        %v2615 = vmul.f32 %v2469, %v2595
        %v2616 = vmul.f32 %v2470, %v2591
        %v2617 = vmul.f32 %v2471, %v2595
        %v2618 = vmul.f32 %v2472, %v2591
        %v2619 = vmul.f32 %v2473, %v2595
        %v2620 = vmul.f32 %v2474, %v2591
        %v2621 = vmul.f32 %v2475, %v2595
        %v2622 = vmul.f32 %v2476, %v2591
        %v2623 = vmul.f32 %v2477, %v2595
        %v2624 = vmul.f32 %v2478, %v2591
        %v2625 = vmul.f32 %v2479, %v2595
        %v2626 = vmul.f32 %v2480, %v2591
        %v2627 = vmul.f32 %v2481, %v2595
        %v2628 = vmul.f32 %v2482, %v2591
        %v2629 = vmul.f32 %v2483, %v2595
        %v2630 = vmul.f32 %v2484, %v2591
        %v2631 = vmul.f32 %v2485, %v2595
        %v2632 = vmul.f32 %v2486, %v2591
        %v2633 = vmul.f32 %v2487, %v2595
        %v2634 = vmul.f32 %v2488, %v2591
        %v2635 = vmul.f32 %v2489, %v2595
        %v2636 = vmul.f32 %v2490, %v2591
        %v2637 = vmul.f32 %v2491, %v2595
        %v2638 = vmul.f32 %v2492, %v2591
        %v2639 = vmul.f32 %v2493, %v2595
        %v2640 = vmul.f32 %v2494, %v2591
        %v2641 = vmul.f32 %v2495, %v2595
        %v2642 = vmul.f32 %v2496, %v2591
        %v2643 = vmul.f32 %v2497, %v2595
        %v2644 = vmul.f32 %v2498, %v2591
        %v2645 = vmul.f32 %v2499, %v2595
        %v2646 = vmul.f32 %v2500, %v2591
        %v2647 = vmul.f32 %v2501, %v2595
        %v2648 = vmul.f32 %v2502, %v2591
        %v2649 = vmul.f32 %v2503, %v2595
        %v2650 = vmul.f32 %v2504, %v2591
        %v2651 = vmul.f32 %v2505, %v2595
        %v2652 = vmul.f32 %v2506, %v2591
        %v2653 = vmul.f32 %v2507, %v2595
        %v2654 = vmul.f32 %v2508, %v2591
        %v2655 = vmul.f32 %v2509, %v2595
        %v2656 = vmul.f32 %v2510, %v2591
        %v2657 = vmul.f32 %v2511, %v2595
        %v2658 = vmul.f32 %v2512, %v2591
        %v2659 = vmul.f32 %v2513, %v2595
        %v2660 = vlaneseq
        %v2661 = vshrl.u32 %v2660, 7
        %v2662 = vsub.s32 4, %v2661
        %v2663 = vrot.slane %v1029, %v2662
        %v2664 = vlaneseq
        %v2665 = vshrl.u32 %v2664, 7
        %v2666 = vsub.s32 4, %v2665
        %v2667 = vrot.slane %v1030, %v2666
        %v2668 = vmul.f32 %v1518, %v2663
        %v2669 = vmul.f32 %v1519, %v2667
        %v2670 = vmul.f32 %v1520, %v2663
        %v2671 = vmul.f32 %v1521, %v2667
        %v2672 = vmul.f32 %v1522, %v2663
        %v2673 = vmul.f32 %v1523, %v2667
        %v2674 = vmul.f32 %v1524, %v2663
        %v2675 = vmul.f32 %v1525, %v2667
        %v2676 = vmul.f32 %v1526, %v2663
        %v2677 = vmul.f32 %v1527, %v2667
        %v2678 = vmul.f32 %v1528, %v2663
        %v2679 = vmul.f32 %v1529, %v2667
        %v2680 = vmul.f32 %v1530, %v2663
        %v2681 = vmul.f32 %v1531, %v2667
        %v2682 = vmul.f32 %v1532, %v2663
        %v2683 = vmul.f32 %v1533, %v2667
        %v2684 = vmul.f32 %v1534, %v2663
        %v2685 = vmul.f32 %v1535, %v2667
        %v2686 = vmul.f32 %v1536, %v2663
        %v2687 = vmul.f32 %v1537, %v2667
        %v2688 = vmul.f32 %v1538, %v2663
        %v2689 = vmul.f32 %v1539, %v2667
        %v2690 = vmul.f32 %v1540, %v2663
        %v2691 = vmul.f32 %v1541, %v2667
        %v2692 = vmul.f32 %v1542, %v2663
        %v2693 = vmul.f32 %v1543, %v2667
        %v2694 = vmul.f32 %v1544, %v2663
        %v2695 = vmul.f32 %v1545, %v2667
        %v2696 = vmul.f32 %v1546, %v2663
        %v2697 = vmul.f32 %v1547, %v2667
        %v2698 = vmul.f32 %v1548, %v2663
        %v2699 = vmul.f32 %v1549, %v2667
        %v2700 = vmul.f32 %v1550, %v2663
        %v2701 = vmul.f32 %v1551, %v2667
        %v2702 = vmul.f32 %v1552, %v2663
        %v2703 = vmul.f32 %v1553, %v2667
        %v2704 = vmul.f32 %v1554, %v2663
        %v2705 = vmul.f32 %v1555, %v2667
        %v2706 = vmul.f32 %v1556, %v2663
        %v2707 = vmul.f32 %v1557, %v2667
        %v2708 = vmul.f32 %v1558, %v2663
        %v2709 = vmul.f32 %v1559, %v2667
        %v2710 = vmul.f32 %v1560, %v2663
        %v2711 = vmul.f32 %v1561, %v2667
        %v2712 = vmul.f32 %v1562, %v2663
        %v2713 = vmul.f32 %v1563, %v2667
        %v2714 = vmul.f32 %v1564, %v2663
        %v2715 = vmul.f32 %v1565, %v2667
        %v2716 = vmul.f32 %v1566, %v2663
        %v2717 = vmul.f32 %v1567, %v2667
        %v2718 = vmul.f32 %v1568, %v2663
        %v2719 = vmul.f32 %v1569, %v2667
        %v2720 = vmul.f32 %v1570, %v2663
        %v2721 = vmul.f32 %v1571, %v2667
        %v2722 = vmul.f32 %v1572, %v2663
        %v2723 = vmul.f32 %v1573, %v2667
        %v2724 = vmul.f32 %v1574, %v2663
        %v2725 = vmul.f32 %v1575, %v2667
        %v2726 = vmul.f32 %v1576, %v2663
        %v2727 = vmul.f32 %v1577, %v2667
        %v2728 = vmul.f32 %v2436, %v2663
        %v2729 = vmul.f32 %v2437, %v2667
        %v2730 = vmul.f32 %v2438, %v2663
        %v2731 = vmul.f32 %v2439, %v2667
        %v2732 = vadd.f32 %v2596, %v2668
        %v2733 = vadd.f32 %v2597, %v2669
        %v2734 = vadd.f32 %v2598, %v2670
        %v2735 = vadd.f32 %v2599, %v2671
        %v2736 = vadd.f32 %v2600, %v2672
        %v2737 = vadd.f32 %v2601, %v2673
        %v2738 = vadd.f32 %v2602, %v2674
        %v2739 = vadd.f32 %v2603, %v2675
        %v2740 = vadd.f32 %v2604, %v2676
        %v2741 = vadd.f32 %v2605, %v2677
        %v2742 = vadd.f32 %v2606, %v2678
        %v2743 = vadd.f32 %v2607, %v2679
        %v2744 = vadd.f32 %v2608, %v2680
        %v2745 = vadd.f32 %v2609, %v2681
        %v2746 = vadd.f32 %v2610, %v2682
        %v2747 = vadd.f32 %v2611, %v2683
        %v2748 = vadd.f32 %v2612, %v2684
        %v2749 = vadd.f32 %v2613, %v2685
        %v2750 = vadd.f32 %v2614, %v2686
        %v2751 = vadd.f32 %v2615, %v2687
        %v2752 = vadd.f32 %v2616, %v2688
        %v2753 = vadd.f32 %v2617, %v2689
        %v2754 = vadd.f32 %v2618, %v2690
        %v2755 = vadd.f32 %v2619, %v2691
        %v2756 = vadd.f32 %v2620, %v2692
        %v2757 = vadd.f32 %v2621, %v2693
        %v2758 = vadd.f32 %v2622, %v2694
        %v2759 = vadd.f32 %v2623, %v2695
        %v2760 = vadd.f32 %v2624, %v2696
        %v2761 = vadd.f32 %v2625, %v2697
        %v2762 = vadd.f32 %v2626, %v2698
        %v2763 = vadd.f32 %v2627, %v2699
        %v2764 = vadd.f32 %v2628, %v2700
        %v2765 = vadd.f32 %v2629, %v2701
        %v2766 = vadd.f32 %v2630, %v2702
        %v2767 = vadd.f32 %v2631, %v2703
        %v2768 = vadd.f32 %v2632, %v2704
        %v2769 = vadd.f32 %v2633, %v2705
        %v2770 = vadd.f32 %v2634, %v2706
        %v2771 = vadd.f32 %v2635, %v2707
        %v2772 = vadd.f32 %v2636, %v2708
        %v2773 = vadd.f32 %v2637, %v2709
        %v2774 = vadd.f32 %v2638, %v2710
        %v2775 = vadd.f32 %v2639, %v2711
        %v2776 = vadd.f32 %v2640, %v2712
        %v2777 = vadd.f32 %v2641, %v2713
        %v2778 = vadd.f32 %v2642, %v2714
        %v2779 = vadd.f32 %v2643, %v2715
        %v2780 = vadd.f32 %v2644, %v2716
        %v2781 = vadd.f32 %v2645, %v2717
        %v2782 = vadd.f32 %v2646, %v2718
        %v2783 = vadd.f32 %v2647, %v2719
        %v2784 = vadd.f32 %v2648, %v2720
        %v2785 = vadd.f32 %v2649, %v2721
        %v2786 = vadd.f32 %v2650, %v2722
        %v2787 = vadd.f32 %v2651, %v2723
        %v2788 = vadd.f32 %v2652, %v2724
        %v2789 = vadd.f32 %v2653, %v2725
        %v2790 = vadd.f32 %v2654, %v2726
        %v2791 = vadd.f32 %v2655, %v2727
        %v2792 = vadd.f32 %v2656, %v2728
        %v2793 = vadd.f32 %v2657, %v2729
        %v2794 = vadd.f32 %v2658, %v2730
        %v2795 = vadd.f32 %v2659, %v2731
        %v2796 = vlaneseq
        %v2797 = vshrl.u32 %v2796, 7
        %v2798 = vsub.s32 5, %v2797
        %v2799 = vrot.slane %v1029, %v2798
        %v2800 = vlaneseq
        %v2801 = vshrl.u32 %v2800, 7
        %v2802 = vsub.s32 5, %v2801
        %v2803 = vrot.slane %v1030, %v2802
        %v2804 = vmul.f32 %v2524, %v2799
        %v2805 = vmul.f32 %v2525, %v2803
        %v2806 = vmul.f32 %v2526, %v2799
        %v2807 = vmul.f32 %v2527, %v2803
        %v2808 = vmul.f32 %v2528, %v2799
        %v2809 = vmul.f32 %v2529, %v2803
        %v2810 = vmul.f32 %v2530, %v2799
        %v2811 = vmul.f32 %v2531, %v2803
        %v2812 = vmul.f32 %v2532, %v2799
        %v2813 = vmul.f32 %v2533, %v2803
        %v2814 = vmul.f32 %v2534, %v2799
        %v2815 = vmul.f32 %v2535, %v2803
        %v2816 = vmul.f32 %v2536, %v2799
        %v2817 = vmul.f32 %v2537, %v2803
        %v2818 = vmul.f32 %v2538, %v2799
        %v2819 = vmul.f32 %v2539, %v2803
        %v2820 = vmul.f32 %v2540, %v2799
        %v2821 = vmul.f32 %v2541, %v2803
        %v2822 = vmul.f32 %v2542, %v2799
        %v2823 = vmul.f32 %v2543, %v2803
        %v2824 = vmul.f32 %v2544, %v2799
        %v2825 = vmul.f32 %v2545, %v2803
        %v2826 = vmul.f32 %v2546, %v2799
        %v2827 = vmul.f32 %v2547, %v2803
        %v2828 = vmul.f32 %v2548, %v2799
        %v2829 = vmul.f32 %v2549, %v2803
        %v2830 = vmul.f32 %v2550, %v2799
        %v2831 = vmul.f32 %v2551, %v2803
        %v2832 = vmul.f32 %v2552, %v2799
        %v2833 = vmul.f32 %v2553, %v2803
        %v2834 = vmul.f32 %v2554, %v2799
        %v2835 = vmul.f32 %v2555, %v2803
        %v2836 = vmul.f32 %v2556, %v2799
        %v2837 = vmul.f32 %v2557, %v2803
        %v2838 = vmul.f32 %v2558, %v2799
        %v2839 = vmul.f32 %v2559, %v2803
        %v2840 = vmul.f32 %v2560, %v2799
        %v2841 = vmul.f32 %v2561, %v2803
        %v2842 = vmul.f32 %v2562, %v2799
        %v2843 = vmul.f32 %v2563, %v2803
        %v2844 = vmul.f32 %v2564, %v2799
        %v2845 = vmul.f32 %v2565, %v2803
        %v2846 = vmul.f32 %v2566, %v2799
        %v2847 = vmul.f32 %v2567, %v2803
        %v2848 = vmul.f32 %v2568, %v2799
        %v2849 = vmul.f32 %v2569, %v2803
        %v2850 = vmul.f32 %v2570, %v2799
        %v2851 = vmul.f32 %v2571, %v2803
        %v2852 = vmul.f32 %v2572, %v2799
        %v2853 = vmul.f32 %v2573, %v2803
        %v2854 = vmul.f32 %v2574, %v2799
        %v2855 = vmul.f32 %v2575, %v2803
        %v2856 = vmul.f32 %v2576, %v2799
        %v2857 = vmul.f32 %v2577, %v2803
        %v2858 = vmul.f32 %v2578, %v2799
        %v2859 = vmul.f32 %v2579, %v2803
        %v2860 = vmul.f32 %v2580, %v2799
        %v2861 = vmul.f32 %v2581, %v2803
        %v2862 = vmul.f32 %v2582, %v2799
        %v2863 = vmul.f32 %v2583, %v2803
        %v2864 = vmul.f32 %v2584, %v2799
        %v2865 = vmul.f32 %v2585, %v2803
        %v2866 = vmul.f32 %v2586, %v2799
        %v2867 = vmul.f32 %v2587, %v2803
        %v2868 = vadd.f32 %v2732, %v2804
        %v2869 = vadd.f32 %v2733, %v2805
        %v2870 = vadd.f32 %v2734, %v2806
        %v2871 = vadd.f32 %v2735, %v2807
        %v2872 = vadd.f32 %v2736, %v2808
        %v2873 = vadd.f32 %v2737, %v2809
        %v2874 = vadd.f32 %v2738, %v2810
        %v2875 = vadd.f32 %v2739, %v2811
        %v2876 = vadd.f32 %v2740, %v2812
        %v2877 = vadd.f32 %v2741, %v2813
        %v2878 = vadd.f32 %v2742, %v2814
        %v2879 = vadd.f32 %v2743, %v2815
        %v2880 = vadd.f32 %v2744, %v2816
        %v2881 = vadd.f32 %v2745, %v2817
        %v2882 = vadd.f32 %v2746, %v2818
        %v2883 = vadd.f32 %v2747, %v2819
        %v2884 = vadd.f32 %v2748, %v2820
        %v2885 = vadd.f32 %v2749, %v2821
        %v2886 = vadd.f32 %v2750, %v2822
        %v2887 = vadd.f32 %v2751, %v2823
        %v2888 = vadd.f32 %v2752, %v2824
        %v2889 = vadd.f32 %v2753, %v2825
        %v2890 = vadd.f32 %v2754, %v2826
        %v2891 = vadd.f32 %v2755, %v2827
        %v2892 = vadd.f32 %v2756, %v2828
        %v2893 = vadd.f32 %v2757, %v2829
        %v2894 = vadd.f32 %v2758, %v2830
        %v2895 = vadd.f32 %v2759, %v2831
        %v2896 = vadd.f32 %v2760, %v2832
        %v2897 = vadd.f32 %v2761, %v2833
        %v2898 = vadd.f32 %v2762, %v2834
        %v2899 = vadd.f32 %v2763, %v2835
        %v2900 = vadd.f32 %v2764, %v2836
        %v2901 = vadd.f32 %v2765, %v2837
        %v2902 = vadd.f32 %v2766, %v2838
        %v2903 = vadd.f32 %v2767, %v2839
        %v2904 = vadd.f32 %v2768, %v2840
        %v2905 = vadd.f32 %v2769, %v2841
        %v2906 = vadd.f32 %v2770, %v2842
        %v2907 = vadd.f32 %v2771, %v2843
        %v2908 = vadd.f32 %v2772, %v2844
        %v2909 = vadd.f32 %v2773, %v2845
        %v2910 = vadd.f32 %v2774, %v2846
        %v2911 = vadd.f32 %v2775, %v2847
        %v2912 = vadd.f32 %v2776, %v2848
        %v2913 = vadd.f32 %v2777, %v2849
        %v2914 = vadd.f32 %v2778, %v2850
        %v2915 = vadd.f32 %v2779, %v2851
        %v2916 = vadd.f32 %v2780, %v2852
        %v2917 = vadd.f32 %v2781, %v2853
        %v2918 = vadd.f32 %v2782, %v2854
        %v2919 = vadd.f32 %v2783, %v2855
        %v2920 = vadd.f32 %v2784, %v2856
        %v2921 = vadd.f32 %v2785, %v2857
        %v2922 = vadd.f32 %v2786, %v2858
        %v2923 = vadd.f32 %v2787, %v2859
        %v2924 = vadd.f32 %v2788, %v2860
        %v2925 = vadd.f32 %v2789, %v2861
        %v2926 = vadd.f32 %v2790, %v2862
        %v2927 = vadd.f32 %v2791, %v2863
        %v2928 = vadd.f32 %v2792, %v2864
        %v2929 = vadd.f32 %v2793, %v2865
        %v2930 = vadd.f32 %v2794, %v2866
        %v2931 = vadd.f32 %v2795, %v2867
        %v2932 = vadd.f32 %v2372, %v2868
        %v2933 = vadd.f32 %v2373, %v2869
        %v2934 = vadd.f32 %v2374, %v2870
        %v2935 = vadd.f32 %v2375, %v2871
        %v2936 = vadd.f32 %v2376, %v2872
        %v2937 = vadd.f32 %v2377, %v2873
        %v2938 = vadd.f32 %v2378, %v2874
        %v2939 = vadd.f32 %v2379, %v2875
        %v2940 = vadd.f32 %v2380, %v2876
        %v2941 = vadd.f32 %v2381, %v2877
        %v2942 = vadd.f32 %v2382, %v2878
        %v2943 = vadd.f32 %v2383, %v2879
        %v2944 = vadd.f32 %v2384, %v2880
        %v2945 = vadd.f32 %v2385, %v2881
        %v2946 = vadd.f32 %v2386, %v2882
        %v2947 = vadd.f32 %v2387, %v2883
        %v2948 = vadd.f32 %v2388, %v2884
        %v2949 = vadd.f32 %v2389, %v2885
        %v2950 = vadd.f32 %v2390, %v2886
        %v2951 = vadd.f32 %v2391, %v2887
        %v2952 = vadd.f32 %v2392, %v2888
        %v2953 = vadd.f32 %v2393, %v2889
        %v2954 = vadd.f32 %v2394, %v2890
        %v2955 = vadd.f32 %v2395, %v2891
        %v2956 = vadd.f32 %v2396, %v2892
        %v2957 = vadd.f32 %v2397, %v2893
        %v2958 = vadd.f32 %v2398, %v2894
        %v2959 = vadd.f32 %v2399, %v2895
        %v2960 = vadd.f32 %v2400, %v2896
        %v2961 = vadd.f32 %v2401, %v2897
        %v2962 = vadd.f32 %v2402, %v2898
        %v2963 = vadd.f32 %v2403, %v2899
        %v2964 = vadd.f32 %v2404, %v2900
        %v2965 = vadd.f32 %v2405, %v2901
        %v2966 = vadd.f32 %v2406, %v2902
        %v2967 = vadd.f32 %v2407, %v2903
        %v2968 = vadd.f32 %v2408, %v2904
        %v2969 = vadd.f32 %v2409, %v2905
        %v2970 = vadd.f32 %v2410, %v2906
        %v2971 = vadd.f32 %v2411, %v2907
        %v2972 = vadd.f32 %v2412, %v2908
        %v2973 = vadd.f32 %v2413, %v2909
        %v2974 = vadd.f32 %v2414, %v2910
        %v2975 = vadd.f32 %v2415, %v2911
        %v2976 = vadd.f32 %v2416, %v2912
        %v2977 = vadd.f32 %v2417, %v2913
        %v2978 = vadd.f32 %v2418, %v2914
        %v2979 = vadd.f32 %v2419, %v2915
        %v2980 = vadd.f32 %v2420, %v2916
        %v2981 = vadd.f32 %v2421, %v2917
        %v2982 = vadd.f32 %v2422, %v2918
        %v2983 = vadd.f32 %v2423, %v2919
        %v2984 = vadd.f32 %v2424, %v2920
        %v2985 = vadd.f32 %v2425, %v2921
        %v2986 = vadd.f32 %v2426, %v2922
        %v2987 = vadd.f32 %v2427, %v2923
        %v2988 = vadd.f32 %v2428, %v2924
        %v2989 = vadd.f32 %v2429, %v2925
        %v2990 = vadd.f32 %v2430, %v2926
        %v2991 = vadd.f32 %v2431, %v2927
        %v2992 = vadd.f32 %v2432, %v2928
        %v2993 = vadd.f32 %v2433, %v2929
        %v2994 = vadd.f32 %v2434, %v2930
        %v2995 = vadd.f32 %v2435, %v2931
        %v2996 = vld [vmem:[#allocation3 + $0x40] sm:$0xff]
        %v2997 = vld [vmem:[#allocation3 + $0x48] sm:$0xff]
        %v2998 = vld [vmem:[#allocation3 + $0x50] sm:$0xff]
        %v2999 = vld [vmem:[#allocation3 + $0x58] sm:$0xff]
        %v3000 = vld [vmem:[#allocation3 + $0x60] sm:$0xff]
        %v3001 = vld [vmem:[#allocation3 + $0x68] sm:$0xff]
        %v3002 = vld [vmem:[#allocation3 + $0x70] sm:$0xff]
        %v3003 = vld [vmem:[#allocation3 + $0x78] sm:$0xff]
        %v3004 = vld [vmem:[#allocation3 + $0x80] sm:$0xff]
        %v3005 = vld [vmem:[#allocation3 + $0x88] sm:$0xff]
        %v3006 = vld [vmem:[#allocation3 + $0x90] sm:$0xff]
        %v3007 = vld [vmem:[#allocation3 + $0x98] sm:$0xff]
        %v3008 = vld [vmem:[#allocation3 + $0xa0] sm:$0xff]
        %v3009 = vld [vmem:[#allocation3 + $0xa8] sm:$0xff]
        %v3010 = vld [vmem:[#allocation3 + $0xb0] sm:$0xff]
        %v3011 = vld [vmem:[#allocation3 + $0xb8] sm:$0xff]
        %v3012 = vld [vmem:[#allocation3 + $0xc0] sm:$0xff]
        %v3013 = vld [vmem:[#allocation3 + $0xc8] sm:$0xff]
        %v3014 = vld [vmem:[#allocation3 + $0xd0] sm:$0xff]
        %v3015 = vld [vmem:[#allocation3 + $0xd8] sm:$0xff]
        %v3016 = vld [vmem:[#allocation3 + $0xe0] sm:$0xff]
        %v3017 = vld [vmem:[#allocation3 + $0xe8] sm:$0xff]
        %v3018 = vld [vmem:[#allocation3 + $0xf0] sm:$0xff]
        %v3019 = vld [vmem:[#allocation3 + $0xf8] sm:$0xff]
        %v3020 = vld [vmem:[#allocation3 + $0x100] sm:$0xff]
        %v3021 = vld [vmem:[#allocation3 + $0x108] sm:$0xff]
        %v3022 = vld [vmem:[#allocation3 + $0x110] sm:$0xff]
        %v3023 = vld [vmem:[#allocation3 + $0x118] sm:$0xff]
        %v3024 = vld [vmem:[#allocation3 + $0x120] sm:$0xff]
        %v3025 = vld [vmem:[#allocation3 + $0x128] sm:$0xff]
        %v3026 = vld [vmem:[#allocation3 + $0x130] sm:$0xff]
        %v3027 = vld [vmem:[#allocation3 + $0x138] sm:$0xff]
        %v3028 = vld [vmem:[#allocation3 + $0x140] sm:$0xff]
        %v3029 = vld [vmem:[#allocation3 + $0x148] sm:$0xff]
        %v3030 = vld [vmem:[#allocation3 + $0x150] sm:$0xff]
        %v3031 = vld [vmem:[#allocation3 + $0x158] sm:$0xff]
        %v3032 = vld [vmem:[#allocation3 + $0x160] sm:$0xff]
        %v3033 = vld [vmem:[#allocation3 + $0x168] sm:$0xff]
        %v3034 = vld [vmem:[#allocation3 + $0x170] sm:$0xff]
        %v3035 = vld [vmem:[#allocation3 + $0x178] sm:$0xff]
        %v3036 = vld [vmem:[#allocation3 + $0x180] sm:$0xff]
        %v3037 = vld [vmem:[#allocation3 + $0x188] sm:$0xff]
        %v3038 = vld [vmem:[#allocation3 + $0x190] sm:$0xff]
        %v3039 = vld [vmem:[#allocation3 + $0x198] sm:$0xff]
        %v3040 = vld [vmem:[#allocation3 + $0x1a0] sm:$0xff]
        %v3041 = vld [vmem:[#allocation3 + $0x1a8] sm:$0xff]
        %v3042 = vld [vmem:[#allocation3 + $0x1b0] sm:$0xff]
        %v3043 = vld [vmem:[#allocation3 + $0x1b8] sm:$0xff]
        %v3044 = vld [vmem:[#allocation3 + $0x1c0] sm:$0xff]
        %v3045 = vld [vmem:[#allocation3 + $0x1c8] sm:$0xff]
        %v3046 = vld [vmem:[#allocation3 + $0x1d0] sm:$0xff]
        %v3047 = vld [vmem:[#allocation3 + $0x1d8] sm:$0xff]
        %v3048 = vld [vmem:[#allocation3 + $0x1e0] sm:$0xff]
        %v3049 = vld [vmem:[#allocation3 + $0x1e8] sm:$0xff]
        %v3050 = vld [vmem:[#allocation3 + $0x1f0] sm:$0xff]
        %v3051 = vld [vmem:[#allocation3 + $0x1f8] sm:$0xff]
        %v3052 = vld [vmem:[#allocation3 + $0x200] sm:$0xff]
        %v3053 = vld [vmem:[#allocation3 + $0x208] sm:$0xff]
        %v3054 = vld [vmem:[#allocation3 + $0x210] sm:$0xff]
        %v3055 = vld [vmem:[#allocation3 + $0x218] sm:$0xff]
        %v3056 = vld [vmem:[#allocation3 + $0x220] sm:$0xff]
        %v3057 = vld [vmem:[#allocation3 + $0x228] sm:$0xff]
        %v3058 = vld [vmem:[#allocation3 + $0x230] sm:$0xff]
        %v3059 = vld [vmem:[#allocation3 + $0x238] sm:$0xff]
        %v3060 = vrot.slane %v2996, 7
        %v3061 = vrot.slane %v2997, 7
        %v3062 = vrot.slane %v2998, 7
        %v3063 = vrot.slane %v2999, 7
        %v3064 = vrot.slane %v3000, 7
        %v3065 = vrot.slane %v3001, 7
        %v3066 = vrot.slane %v3002, 7
        %v3067 = vrot.slane %v3003, 7
        %v3068 = vrot.slane %v3004, 7
        %v3069 = vrot.slane %v3005, 7
        %v3070 = vrot.slane %v3006, 7
        %v3071 = vrot.slane %v3007, 7
        %v3072 = vrot.slane %v3008, 7
        %v3073 = vrot.slane %v3009, 7
        %v3074 = vrot.slane %v3010, 7
        %v3075 = vrot.slane %v3011, 7
        %v3076 = vrot.slane %v3012, 7
        %v3077 = vrot.slane %v3013, 7
        %v3078 = vrot.slane %v3014, 7
        %v3079 = vrot.slane %v3015, 7
        %v3080 = vrot.slane %v3016, 7
        %v3081 = vrot.slane %v3017, 7
        %v3082 = vrot.slane %v3018, 7
        %v3083 = vrot.slane %v3019, 7
        %v3084 = vrot.slane %v3020, 7
        %v3085 = vrot.slane %v3021, 7
        %v3086 = vrot.slane %v3022, 7
        %v3087 = vrot.slane %v3023, 7
        %v3088 = vrot.slane %v3024, 7
        %v3089 = vrot.slane %v3025, 7
        %v3090 = vrot.slane %v3026, 7
        %v3091 = vrot.slane %v3027, 7
        %v3092 = vrot.slane %v3028, 7
        %v3093 = vrot.slane %v3029, 7
        %v3094 = vrot.slane %v3030, 7
        %v3095 = vrot.slane %v3031, 7
        %v3096 = vrot.slane %v3032, 7
        %v3097 = vrot.slane %v3033, 7
        %v3098 = vrot.slane %v3034, 7
        %v3099 = vrot.slane %v3035, 7
        %v3100 = vrot.slane %v3036, 7
        %v3101 = vrot.slane %v3037, 7
        %v3102 = vrot.slane %v3038, 7
        %v3103 = vrot.slane %v3039, 7
        %v3104 = vrot.slane %v3040, 7
        %v3105 = vrot.slane %v3041, 7
        %v3106 = vrot.slane %v3042, 7
        %v3107 = vrot.slane %v3043, 7
        %v3108 = vrot.slane %v3044, 7
        %v3109 = vrot.slane %v3045, 7
        %v3110 = vrot.slane %v3046, 7
        %v3111 = vrot.slane %v3047, 7
        %v3112 = vrot.slane %v3048, 7
        %v3113 = vrot.slane %v3049, 7
        %v3114 = vrot.slane %v3050, 7
        %v3115 = vrot.slane %v3051, 7
        %v3116 = vrot.slane %v3052, 7
        %v3117 = vrot.slane %v3053, 7
        %v3118 = vrot.slane %v3054, 7
        %v3119 = vrot.slane %v3055, 7
        %v3120 = vrot.slane %v3056, 7
        %v3121 = vrot.slane %v3057, 7
        %v3122 = vrot.slane %v3058, 7
        %v3123 = vrot.slane %v3059, 7
        %v3124 = vsel %vm1642, %v3120, %v3122
        %v3125 = vsel %vm1642, %v3121, %v3123
        %v3126 = vsel %vm1642, %v3118, %v3120
        %v3127 = vsel %vm1642, %v3119, %v3121
        %v3128 = vsel %vm1642, %v3116, %v3118
        %v3129 = vsel %vm1642, %v3117, %v3119
        %v3130 = vsel %vm1642, %v3114, %v3116
        %v3131 = vsel %vm1642, %v3115, %v3117
        %v3132 = vsel %vm1642, %v3112, %v3114
        %v3133 = vsel %vm1642, %v3113, %v3115
        %v3134 = vsel %vm1642, %v3110, %v3112
        %v3135 = vsel %vm1642, %v3111, %v3113
        %v3136 = vsel %vm1642, %v3108, %v3110
        %v3137 = vsel %vm1642, %v3109, %v3111
        %v3138 = vsel %vm1642, %v3106, %v3108
        %v3139 = vsel %vm1642, %v3107, %v3109
        %v3140 = vsel %vm1642, %v3104, %v3106
        %v3141 = vsel %vm1642, %v3105, %v3107
        %v3142 = vsel %vm1642, %v3102, %v3104
        %v3143 = vsel %vm1642, %v3103, %v3105
        %v3144 = vsel %vm1642, %v3100, %v3102
        %v3145 = vsel %vm1642, %v3101, %v3103
        %v3146 = vsel %vm1642, %v3098, %v3100
        %v3147 = vsel %vm1642, %v3099, %v3101
        %v3148 = vsel %vm1642, %v3096, %v3098
        %v3149 = vsel %vm1642, %v3097, %v3099
        %v3150 = vsel %vm1642, %v3094, %v3096
        %v3151 = vsel %vm1642, %v3095, %v3097
        %v3152 = vsel %vm1642, %v3092, %v3094
        %v3153 = vsel %vm1642, %v3093, %v3095
        %v3154 = vsel %vm1642, %v3090, %v3092
        %v3155 = vsel %vm1642, %v3091, %v3093
        %v3156 = vsel %vm1642, %v3088, %v3090
        %v3157 = vsel %vm1642, %v3089, %v3091
        %v3158 = vsel %vm1642, %v3086, %v3088
        %v3159 = vsel %vm1642, %v3087, %v3089
        %v3160 = vsel %vm1642, %v3084, %v3086
        %v3161 = vsel %vm1642, %v3085, %v3087
        %v3162 = vsel %vm1642, %v3082, %v3084
        %v3163 = vsel %vm1642, %v3083, %v3085
        %v3164 = vsel %vm1642, %v3080, %v3082
        %v3165 = vsel %vm1642, %v3081, %v3083
        %v3166 = vsel %vm1642, %v3078, %v3080
        %v3167 = vsel %vm1642, %v3079, %v3081
        %v3168 = vsel %vm1642, %v3076, %v3078
        %v3169 = vsel %vm1642, %v3077, %v3079
        %v3170 = vsel %vm1642, %v3074, %v3076
        %v3171 = vsel %vm1642, %v3075, %v3077
        %v3172 = vsel %vm1642, %v3072, %v3074
        %v3173 = vsel %vm1642, %v3073, %v3075
        %v3174 = vsel %vm1642, %v3070, %v3072
        %v3175 = vsel %vm1642, %v3071, %v3073
        %v3176 = vsel %vm1642, %v3068, %v3070
        %v3177 = vsel %vm1642, %v3069, %v3071
        %v3178 = vsel %vm1642, %v3066, %v3068
        %v3179 = vsel %vm1642, %v3067, %v3069
        %v3180 = vsel %vm1642, %v3064, %v3066
        %v3181 = vsel %vm1642, %v3065, %v3067
        %v3182 = vsel %vm1642, %v3062, %v3064
        %v3183 = vsel %vm1642, %v3063, %v3065
        %v3184 = vsel %vm1642, %v3060, %v3062
        %v3185 = vsel %vm1642, %v3061, %v3063
        %v3186 = vsel %vm1642, %v3122, %v3060
        %v3187 = vsel %vm1642, %v3123, %v3061
        %v3188 = vsel %vm1739, %v3186, 0.0
        %v3189 = vsel %vm1739, %v3187, 0.0
        %v3190 = vsel %vm1740, %v3184, 0.0
        %v3191 = vsel %vm1740, %v3185, 0.0
        %v3192 = vsel %vm1741, %v3182, 0.0
        %v3193 = vsel %vm1741, %v3183, 0.0
        %v3194 = vsel %vm1742, %v3180, 0.0
        %v3195 = vsel %vm1742, %v3181, 0.0
        %v3196 = vsel %vm1743, %v3178, 0.0
        %v3197 = vsel %vm1743, %v3179, 0.0
        %v3198 = vsel %vm1744, %v3176, 0.0
        %v3199 = vsel %vm1744, %v3177, 0.0
        %v3200 = vsel %vm1745, %v3174, 0.0
        %v3201 = vsel %vm1745, %v3175, 0.0
        %v3202 = vsel %vm1746, %v3172, 0.0
        %v3203 = vsel %vm1746, %v3173, 0.0
        %v3204 = vsel %vm1747, %v3170, 0.0
        %v3205 = vsel %vm1747, %v3171, 0.0
        %v3206 = vsel %vm1748, %v3168, 0.0
        %v3207 = vsel %vm1748, %v3169, 0.0
        %v3208 = vsel %vm1749, %v3166, 0.0
        %v3209 = vsel %vm1749, %v3167, 0.0
        %v3210 = vsel %vm1750, %v3164, 0.0
        %v3211 = vsel %vm1750, %v3165, 0.0
        %v3212 = vsel %vm1751, %v3162, 0.0
        %v3213 = vsel %vm1751, %v3163, 0.0
        %v3214 = vsel %vm1752, %v3160, 0.0
        %v3215 = vsel %vm1752, %v3161, 0.0
        %v3216 = vsel %vm1753, %v3158, 0.0
        %v3217 = vsel %vm1753, %v3159, 0.0
        %v3218 = vsel %vm1754, %v3156, 0.0
        %v3219 = vsel %vm1754, %v3157, 0.0
        %v3220 = vsel %vm1755, %v3154, 0.0
        %v3221 = vsel %vm1755, %v3155, 0.0
        %v3222 = vsel %vm1756, %v3152, 0.0
        %v3223 = vsel %vm1756, %v3153, 0.0
        %v3224 = vsel %vm1757, %v3150, 0.0
        %v3225 = vsel %vm1757, %v3151, 0.0
        %v3226 = vsel %vm1758, %v3148, 0.0
        %v3227 = vsel %vm1758, %v3149, 0.0
        %v3228 = vsel %vm1759, %v3146, 0.0
        %v3229 = vsel %vm1759, %v3147, 0.0
        %v3230 = vsel %vm1760, %v3144, 0.0
        %v3231 = vsel %vm1760, %v3145, 0.0
        %v3232 = vsel %vm1761, %v3142, 0.0
        %v3233 = vsel %vm1761, %v3143, 0.0
        %v3234 = vsel %vm1762, %v3140, 0.0
        %v3235 = vsel %vm1762, %v3141, 0.0
        %v3236 = vsel %vm1763, %v3138, 0.0
        %v3237 = vsel %vm1763, %v3139, 0.0
        %v3238 = vsel %vm1764, %v3136, 0.0
        %v3239 = vsel %vm1764, %v3137, 0.0
        %v3240 = vsel %vm1765, %v3134, 0.0
        %v3241 = vsel %vm1765, %v3135, 0.0
        %v3242 = vsel %vm1766, %v3132, 0.0
        %v3243 = vsel %vm1766, %v3133, 0.0
        %v3244 = vsel %vm1767, %v3130, 0.0
        %v3245 = vsel %vm1767, %v3131, 0.0
        %v3246 = vsel %vm1768, %v3128, 0.0
        %v3247 = vsel %vm1768, %v3129, 0.0
        %v3248 = vsel %vm1769, %v3126, 0.0
        %v3249 = vsel %vm1769, %v3127, 0.0
        %v3250 = vsel %vm1770, %v3124, 0.0
        %v3251 = vsel %vm1770, %v3125, 0.0
        %v3252 = vrot.slane %v2996, 1
        %v3253 = vrot.slane %v2997, 1
        %v3254 = vrot.slane %v2998, 1
        %v3255 = vrot.slane %v2999, 1
        %v3256 = vrot.slane %v3000, 1
        %v3257 = vrot.slane %v3001, 1
        %v3258 = vrot.slane %v3002, 1
        %v3259 = vrot.slane %v3003, 1
        %v3260 = vrot.slane %v3004, 1
        %v3261 = vrot.slane %v3005, 1
        %v3262 = vrot.slane %v3006, 1
        %v3263 = vrot.slane %v3007, 1
        %v3264 = vrot.slane %v3008, 1
        %v3265 = vrot.slane %v3009, 1
        %v3266 = vrot.slane %v3010, 1
        %v3267 = vrot.slane %v3011, 1
        %v3268 = vrot.slane %v3012, 1
        %v3269 = vrot.slane %v3013, 1
        %v3270 = vrot.slane %v3014, 1
        %v3271 = vrot.slane %v3015, 1
        %v3272 = vrot.slane %v3016, 1
        %v3273 = vrot.slane %v3017, 1
        %v3274 = vrot.slane %v3018, 1
        %v3275 = vrot.slane %v3019, 1
        %v3276 = vrot.slane %v3020, 1
        %v3277 = vrot.slane %v3021, 1
        %v3278 = vrot.slane %v3022, 1
        %v3279 = vrot.slane %v3023, 1
        %v3280 = vrot.slane %v3024, 1
        %v3281 = vrot.slane %v3025, 1
        %v3282 = vrot.slane %v3026, 1
        %v3283 = vrot.slane %v3027, 1
        %v3284 = vrot.slane %v3028, 1
        %v3285 = vrot.slane %v3029, 1
        %v3286 = vrot.slane %v3030, 1
        %v3287 = vrot.slane %v3031, 1
        %v3288 = vrot.slane %v3032, 1
        %v3289 = vrot.slane %v3033, 1
        %v3290 = vrot.slane %v3034, 1
        %v3291 = vrot.slane %v3035, 1
        %v3292 = vrot.slane %v3036, 1
        %v3293 = vrot.slane %v3037, 1
        %v3294 = vrot.slane %v3038, 1
        %v3295 = vrot.slane %v3039, 1
        %v3296 = vrot.slane %v3040, 1
        %v3297 = vrot.slane %v3041, 1
        %v3298 = vrot.slane %v3042, 1
        %v3299 = vrot.slane %v3043, 1
        %v3300 = vrot.slane %v3044, 1
        %v3301 = vrot.slane %v3045, 1
        %v3302 = vrot.slane %v3046, 1
        %v3303 = vrot.slane %v3047, 1
        %v3304 = vrot.slane %v3048, 1
        %v3305 = vrot.slane %v3049, 1
        %v3306 = vrot.slane %v3050, 1
        %v3307 = vrot.slane %v3051, 1
        %v3308 = vrot.slane %v3052, 1
        %v3309 = vrot.slane %v3053, 1
        %v3310 = vrot.slane %v3054, 1
        %v3311 = vrot.slane %v3055, 1
        %v3312 = vrot.slane %v3056, 1
        %v3313 = vrot.slane %v3057, 1
        %v3314 = vrot.slane %v3058, 1
        %v3315 = vrot.slane %v3059, 1
        %v3316 = vsel %vm1899, %v3312, %v3314
        %v3317 = vsel %vm1899, %v3313, %v3315
        %v3318 = vsel %vm1899, %v3310, %v3312
        %v3319 = vsel %vm1899, %v3311, %v3313
        %v3320 = vsel %vm1899, %v3308, %v3310
        %v3321 = vsel %vm1899, %v3309, %v3311
        %v3322 = vsel %vm1899, %v3306, %v3308
        %v3323 = vsel %vm1899, %v3307, %v3309
        %v3324 = vsel %vm1899, %v3304, %v3306
        %v3325 = vsel %vm1899, %v3305, %v3307
        %v3326 = vsel %vm1899, %v3302, %v3304
        %v3327 = vsel %vm1899, %v3303, %v3305
        %v3328 = vsel %vm1899, %v3300, %v3302
        %v3329 = vsel %vm1899, %v3301, %v3303
        %v3330 = vsel %vm1899, %v3298, %v3300
        %v3331 = vsel %vm1899, %v3299, %v3301
        %v3332 = vsel %vm1899, %v3296, %v3298
        %v3333 = vsel %vm1899, %v3297, %v3299
        %v3334 = vsel %vm1899, %v3294, %v3296
        %v3335 = vsel %vm1899, %v3295, %v3297
        %v3336 = vsel %vm1899, %v3292, %v3294
        %v3337 = vsel %vm1899, %v3293, %v3295
        %v3338 = vsel %vm1899, %v3290, %v3292
        %v3339 = vsel %vm1899, %v3291, %v3293
        %v3340 = vsel %vm1899, %v3288, %v3290
        %v3341 = vsel %vm1899, %v3289, %v3291
        %v3342 = vsel %vm1899, %v3286, %v3288
        %v3343 = vsel %vm1899, %v3287, %v3289
        %v3344 = vsel %vm1899, %v3284, %v3286
        %v3345 = vsel %vm1899, %v3285, %v3287
        %v3346 = vsel %vm1899, %v3282, %v3284
        %v3347 = vsel %vm1899, %v3283, %v3285
        %v3348 = vsel %vm1899, %v3280, %v3282
        %v3349 = vsel %vm1899, %v3281, %v3283
        %v3350 = vsel %vm1899, %v3278, %v3280
        %v3351 = vsel %vm1899, %v3279, %v3281
        %v3352 = vsel %vm1899, %v3276, %v3278
        %v3353 = vsel %vm1899, %v3277, %v3279
        %v3354 = vsel %vm1899, %v3274, %v3276
        %v3355 = vsel %vm1899, %v3275, %v3277
        %v3356 = vsel %vm1899, %v3272, %v3274
        %v3357 = vsel %vm1899, %v3273, %v3275
        %v3358 = vsel %vm1899, %v3270, %v3272
        %v3359 = vsel %vm1899, %v3271, %v3273
        %v3360 = vsel %vm1899, %v3268, %v3270
        %v3361 = vsel %vm1899, %v3269, %v3271
        %v3362 = vsel %vm1899, %v3266, %v3268
        %v3363 = vsel %vm1899, %v3267, %v3269
        %v3364 = vsel %vm1899, %v3264, %v3266
        %v3365 = vsel %vm1899, %v3265, %v3267
        %v3366 = vsel %vm1899, %v3262, %v3264
        %v3367 = vsel %vm1899, %v3263, %v3265
        %v3368 = vsel %vm1899, %v3260, %v3262
        %v3369 = vsel %vm1899, %v3261, %v3263
        %v3370 = vsel %vm1899, %v3258, %v3260
        %v3371 = vsel %vm1899, %v3259, %v3261
        %v3372 = vsel %vm1899, %v3256, %v3258
        %v3373 = vsel %vm1899, %v3257, %v3259
        %v3374 = vsel %vm1899, %v3254, %v3256
        %v3375 = vsel %vm1899, %v3255, %v3257
        %v3376 = vsel %vm1899, %v3252, %v3254
        %v3377 = vsel %vm1899, %v3253, %v3255
        %v3378 = vsel %vm1899, %v3314, %v3252
        %v3379 = vsel %vm1899, %v3315, %v3253
        %v3380 = vsel %vm1996, %v3376, 0.0
        %v3381 = vsel %vm1996, %v3377, 0.0
        %v3382 = vsel %vm1997, %v3374, 0.0
        %v3383 = vsel %vm1997, %v3375, 0.0
        %v3384 = vsel %vm1998, %v3372, 0.0
        %v3385 = vsel %vm1998, %v3373, 0.0
        %v3386 = vsel %vm1999, %v3370, 0.0
        %v3387 = vsel %vm1999, %v3371, 0.0
        %v3388 = vsel %vm2000, %v3368, 0.0
        %v3389 = vsel %vm2000, %v3369, 0.0
        %v3390 = vsel %vm2001, %v3366, 0.0
        %v3391 = vsel %vm2001, %v3367, 0.0
        %v3392 = vsel %vm2002, %v3364, 0.0
        %v3393 = vsel %vm2002, %v3365, 0.0
        %v3394 = vsel %vm2003, %v3362, 0.0
        %v3395 = vsel %vm2003, %v3363, 0.0
        %v3396 = vsel %vm2004, %v3360, 0.0
        %v3397 = vsel %vm2004, %v3361, 0.0
        %v3398 = vsel %vm2005, %v3358, 0.0
        %v3399 = vsel %vm2005, %v3359, 0.0
        %v3400 = vsel %vm2006, %v3356, 0.0
        %v3401 = vsel %vm2006, %v3357, 0.0
        %v3402 = vsel %vm2007, %v3354, 0.0
        %v3403 = vsel %vm2007, %v3355, 0.0
        %v3404 = vsel %vm2008, %v3352, 0.0
        %v3405 = vsel %vm2008, %v3353, 0.0
        %v3406 = vsel %vm2009, %v3350, 0.0
        %v3407 = vsel %vm2009, %v3351, 0.0
        %v3408 = vsel %vm2010, %v3348, 0.0
        %v3409 = vsel %vm2010, %v3349, 0.0
        %v3410 = vsel %vm2011, %v3346, 0.0
        %v3411 = vsel %vm2011, %v3347, 0.0
        %v3412 = vsel %vm2012, %v3344, 0.0
        %v3413 = vsel %vm2012, %v3345, 0.0
        %v3414 = vsel %vm2013, %v3342, 0.0
        %v3415 = vsel %vm2013, %v3343, 0.0
        %v3416 = vsel %vm2014, %v3340, 0.0
        %v3417 = vsel %vm2014, %v3341, 0.0
        %v3418 = vsel %vm2015, %v3338, 0.0
        %v3419 = vsel %vm2015, %v3339, 0.0
        %v3420 = vsel %vm2016, %v3336, 0.0
        %v3421 = vsel %vm2016, %v3337, 0.0
        %v3422 = vsel %vm2017, %v3334, 0.0
        %v3423 = vsel %vm2017, %v3335, 0.0
        %v3424 = vsel %vm2018, %v3332, 0.0
        %v3425 = vsel %vm2018, %v3333, 0.0
        %v3426 = vsel %vm2019, %v3330, 0.0
        %v3427 = vsel %vm2019, %v3331, 0.0
        %v3428 = vsel %vm2020, %v3328, 0.0
        %v3429 = vsel %vm2020, %v3329, 0.0
        %v3430 = vsel %vm2021, %v3326, 0.0
        %v3431 = vsel %vm2021, %v3327, 0.0
        %v3432 = vsel %vm2022, %v3324, 0.0
        %v3433 = vsel %vm2022, %v3325, 0.0
        %v3434 = vsel %vm2023, %v3322, 0.0
        %v3435 = vsel %vm2023, %v3323, 0.0
        %v3436 = vsel %vm2024, %v3320, 0.0
        %v3437 = vsel %vm2024, %v3321, 0.0
        %v3438 = vsel %vm2025, %v3318, 0.0
        %v3439 = vsel %vm2025, %v3319, 0.0
        %v3440 = vsel %vm2026, %v3316, 0.0
        %v3441 = vsel %vm2026, %v3317, 0.0
        %v3442 = vsel %vm2027, %v3378, 0.0
        %v3443 = vsel %vm2027, %v3379, 0.0
        %v3444 = vlaneseq
        %v3445 = vshrl.u32 %v3444, 7
        %v3446 = vsub.s32 6, %v3445
        %v3447 = vrot.slane %v1029, %v3446
        %v3448 = vlaneseq
        %v3449 = vshrl.u32 %v3448, 7
        %v3450 = vsub.s32 6, %v3449
        %v3451 = vrot.slane %v1030, %v3450
        %v3452 = vmul.f32 %v3188, %v3447
        %v3453 = vmul.f32 %v3189, %v3451
        %v3454 = vmul.f32 %v3190, %v3447
        %v3455 = vmul.f32 %v3191, %v3451
        %v3456 = vmul.f32 %v3192, %v3447
        %v3457 = vmul.f32 %v3193, %v3451
        %v3458 = vmul.f32 %v3194, %v3447
        %v3459 = vmul.f32 %v3195, %v3451
        %v3460 = vmul.f32 %v3196, %v3447
        %v3461 = vmul.f32 %v3197, %v3451
        %v3462 = vmul.f32 %v3198, %v3447
        %v3463 = vmul.f32 %v3199, %v3451
        %v3464 = vmul.f32 %v3200, %v3447
        %v3465 = vmul.f32 %v3201, %v3451
        %v3466 = vmul.f32 %v3202, %v3447
        %v3467 = vmul.f32 %v3203, %v3451
        %v3468 = vmul.f32 %v3204, %v3447
        %v3469 = vmul.f32 %v3205, %v3451
        %v3470 = vmul.f32 %v3206, %v3447
        %v3471 = vmul.f32 %v3207, %v3451
        %v3472 = vmul.f32 %v3208, %v3447
        %v3473 = vmul.f32 %v3209, %v3451
        %v3474 = vmul.f32 %v3210, %v3447
        %v3475 = vmul.f32 %v3211, %v3451
        %v3476 = vmul.f32 %v3212, %v3447
        %v3477 = vmul.f32 %v3213, %v3451
        %v3478 = vmul.f32 %v3214, %v3447
        %v3479 = vmul.f32 %v3215, %v3451
        %v3480 = vmul.f32 %v3216, %v3447
        %v3481 = vmul.f32 %v3217, %v3451
        %v3482 = vmul.f32 %v3218, %v3447
        %v3483 = vmul.f32 %v3219, %v3451
        %v3484 = vmul.f32 %v3220, %v3447
        %v3485 = vmul.f32 %v3221, %v3451
        %v3486 = vmul.f32 %v3222, %v3447
        %v3487 = vmul.f32 %v3223, %v3451
        %v3488 = vmul.f32 %v3224, %v3447
        %v3489 = vmul.f32 %v3225, %v3451
        %v3490 = vmul.f32 %v3226, %v3447
        %v3491 = vmul.f32 %v3227, %v3451
        %v3492 = vmul.f32 %v3228, %v3447
        %v3493 = vmul.f32 %v3229, %v3451
        %v3494 = vmul.f32 %v3230, %v3447
        %v3495 = vmul.f32 %v3231, %v3451
        %v3496 = vmul.f32 %v3232, %v3447
        %v3497 = vmul.f32 %v3233, %v3451
        %v3498 = vmul.f32 %v3234, %v3447
        %v3499 = vmul.f32 %v3235, %v3451
        %v3500 = vmul.f32 %v3236, %v3447
        %v3501 = vmul.f32 %v3237, %v3451
        %v3502 = vmul.f32 %v3238, %v3447
        %v3503 = vmul.f32 %v3239, %v3451
        %v3504 = vmul.f32 %v3240, %v3447
        %v3505 = vmul.f32 %v3241, %v3451
        %v3506 = vmul.f32 %v3242, %v3447
        %v3507 = vmul.f32 %v3243, %v3451
        %v3508 = vmul.f32 %v3244, %v3447
        %v3509 = vmul.f32 %v3245, %v3451
        %v3510 = vmul.f32 %v3246, %v3447
        %v3511 = vmul.f32 %v3247, %v3451
        %v3512 = vmul.f32 %v3248, %v3447
        %v3513 = vmul.f32 %v3249, %v3451
        %v3514 = vmul.f32 %v3250, %v3447
        %v3515 = vmul.f32 %v3251, %v3451
        %v3516 = vlaneseq
        %v3517 = vshrl.u32 %v3516, 7
        %v3518 = vsub.s32 7, %v3517
        %v3519 = vrot.slane %v1029, %v3518
        %v3520 = vlaneseq
        %v3521 = vshrl.u32 %v3520, 7
        %v3522 = vsub.s32 7, %v3521
        %v3523 = vrot.slane %v1030, %v3522
        %v3524 = vmul.f32 %v2996, %v3519
        %v3525 = vmul.f32 %v2997, %v3523
        %v3526 = vmul.f32 %v2998, %v3519
        %v3527 = vmul.f32 %v2999, %v3523
        %v3528 = vmul.f32 %v3000, %v3519
        %v3529 = vmul.f32 %v3001, %v3523
        %v3530 = vmul.f32 %v3002, %v3519
        %v3531 = vmul.f32 %v3003, %v3523
        %v3532 = vmul.f32 %v3004, %v3519
        %v3533 = vmul.f32 %v3005, %v3523
        %v3534 = vmul.f32 %v3006, %v3519
        %v3535 = vmul.f32 %v3007, %v3523
        %v3536 = vmul.f32 %v3008, %v3519
        %v3537 = vmul.f32 %v3009, %v3523
        %v3538 = vmul.f32 %v3010, %v3519
        %v3539 = vmul.f32 %v3011, %v3523
        %v3540 = vmul.f32 %v3012, %v3519
        %v3541 = vmul.f32 %v3013, %v3523
        %v3542 = vmul.f32 %v3014, %v3519
        %v3543 = vmul.f32 %v3015, %v3523
        %v3544 = vmul.f32 %v3016, %v3519
        %v3545 = vmul.f32 %v3017, %v3523
        %v3546 = vmul.f32 %v3018, %v3519
        %v3547 = vmul.f32 %v3019, %v3523
        %v3548 = vmul.f32 %v3020, %v3519
        %v3549 = vmul.f32 %v3021, %v3523
        %v3550 = vmul.f32 %v3022, %v3519
        %v3551 = vmul.f32 %v3023, %v3523
        %v3552 = vmul.f32 %v3024, %v3519
        %v3553 = vmul.f32 %v3025, %v3523
        %v3554 = vmul.f32 %v3026, %v3519
        %v3555 = vmul.f32 %v3027, %v3523
        %v3556 = vmul.f32 %v3028, %v3519
        %v3557 = vmul.f32 %v3029, %v3523
        %v3558 = vmul.f32 %v3030, %v3519
        %v3559 = vmul.f32 %v3031, %v3523
        %v3560 = vmul.f32 %v3032, %v3519
        %v3561 = vmul.f32 %v3033, %v3523
        %v3562 = vmul.f32 %v3034, %v3519
        %v3563 = vmul.f32 %v3035, %v3523
        %v3564 = vmul.f32 %v3036, %v3519
        %v3565 = vmul.f32 %v3037, %v3523
        %v3566 = vmul.f32 %v3038, %v3519
        %v3567 = vmul.f32 %v3039, %v3523
        %v3568 = vmul.f32 %v3040, %v3519
        %v3569 = vmul.f32 %v3041, %v3523
        %v3570 = vmul.f32 %v3042, %v3519
        %v3571 = vmul.f32 %v3043, %v3523
        %v3572 = vmul.f32 %v3044, %v3519
        %v3573 = vmul.f32 %v3045, %v3523
        %v3574 = vmul.f32 %v3046, %v3519
        %v3575 = vmul.f32 %v3047, %v3523
        %v3576 = vmul.f32 %v3048, %v3519
        %v3577 = vmul.f32 %v3049, %v3523
        %v3578 = vmul.f32 %v3050, %v3519
        %v3579 = vmul.f32 %v3051, %v3523
        %v3580 = vmul.f32 %v3052, %v3519
        %v3581 = vmul.f32 %v3053, %v3523
        %v3582 = vmul.f32 %v3054, %v3519
        %v3583 = vmul.f32 %v3055, %v3523
        %v3584 = vmul.f32 %v3056, %v3519
        %v3585 = vmul.f32 %v3057, %v3523
        %v3586 = vmul.f32 %v3058, %v3519
        %v3587 = vmul.f32 %v3059, %v3523
        %v3588 = vadd.f32 %v3452, %v3524
        %v3589 = vadd.f32 %v3453, %v3525
        %v3590 = vadd.f32 %v3454, %v3526
        %v3591 = vadd.f32 %v3455, %v3527
        %v3592 = vadd.f32 %v3456, %v3528
        %v3593 = vadd.f32 %v3457, %v3529
        %v3594 = vadd.f32 %v3458, %v3530
        %v3595 = vadd.f32 %v3459, %v3531
        %v3596 = vadd.f32 %v3460, %v3532
        %v3597 = vadd.f32 %v3461, %v3533
        %v3598 = vadd.f32 %v3462, %v3534
        %v3599 = vadd.f32 %v3463, %v3535
        %v3600 = vadd.f32 %v3464, %v3536
        %v3601 = vadd.f32 %v3465, %v3537
        %v3602 = vadd.f32 %v3466, %v3538
        %v3603 = vadd.f32 %v3467, %v3539
        %v3604 = vadd.f32 %v3468, %v3540
        %v3605 = vadd.f32 %v3469, %v3541
        %v3606 = vadd.f32 %v3470, %v3542
        %v3607 = vadd.f32 %v3471, %v3543
        %v3608 = vadd.f32 %v3472, %v3544
        %v3609 = vadd.f32 %v3473, %v3545
        %v3610 = vadd.f32 %v3474, %v3546
        %v3611 = vadd.f32 %v3475, %v3547
        %v3612 = vadd.f32 %v3476, %v3548
        %v3613 = vadd.f32 %v3477, %v3549
        %v3614 = vadd.f32 %v3478, %v3550
        %v3615 = vadd.f32 %v3479, %v3551
        %v3616 = vadd.f32 %v3480, %v3552
        %v3617 = vadd.f32 %v3481, %v3553
        %v3618 = vadd.f32 %v3482, %v3554
        %v3619 = vadd.f32 %v3483, %v3555
        %v3620 = vadd.f32 %v3484, %v3556
        %v3621 = vadd.f32 %v3485, %v3557
        %v3622 = vadd.f32 %v3486, %v3558
        %v3623 = vadd.f32 %v3487, %v3559
        %v3624 = vadd.f32 %v3488, %v3560
        %v3625 = vadd.f32 %v3489, %v3561
        %v3626 = vadd.f32 %v3490, %v3562
        %v3627 = vadd.f32 %v3491, %v3563
        %v3628 = vadd.f32 %v3492, %v3564
        %v3629 = vadd.f32 %v3493, %v3565
        %v3630 = vadd.f32 %v3494, %v3566
        %v3631 = vadd.f32 %v3495, %v3567
        %v3632 = vadd.f32 %v3496, %v3568
        %v3633 = vadd.f32 %v3497, %v3569
        %v3634 = vadd.f32 %v3498, %v3570
        %v3635 = vadd.f32 %v3499, %v3571
        %v3636 = vadd.f32 %v3500, %v3572
        %v3637 = vadd.f32 %v3501, %v3573
        %v3638 = vadd.f32 %v3502, %v3574
        %v3639 = vadd.f32 %v3503, %v3575
        %v3640 = vadd.f32 %v3504, %v3576
        %v3641 = vadd.f32 %v3505, %v3577
        %v3642 = vadd.f32 %v3506, %v3578
        %v3643 = vadd.f32 %v3507, %v3579
        %v3644 = vadd.f32 %v3508, %v3580
        %v3645 = vadd.f32 %v3509, %v3581
        %v3646 = vadd.f32 %v3510, %v3582
        %v3647 = vadd.f32 %v3511, %v3583
        %v3648 = vadd.f32 %v3512, %v3584
        %v3649 = vadd.f32 %v3513, %v3585
        %v3650 = vadd.f32 %v3514, %v3586
        %v3651 = vadd.f32 %v3515, %v3587
        %v3652 = vlaneseq
        %v3653 = vshrl.u32 %v3652, 7
        %v3654 = vsub.s32 0, %v3653
        %v3655 = vrot.slane %v1031, %v3654
        %v3656 = vlaneseq
        %v3657 = vshrl.u32 %v3656, 7
        %v3658 = vsub.s32 0, %v3657
        %v3659 = vrot.slane %v1032, %v3658
        %v3660 = vmul.f32 %v3380, %v3655
        %v3661 = vmul.f32 %v3381, %v3659
        %v3662 = vmul.f32 %v3382, %v3655
        %v3663 = vmul.f32 %v3383, %v3659
        %v3664 = vmul.f32 %v3384, %v3655
        %v3665 = vmul.f32 %v3385, %v3659
        %v3666 = vmul.f32 %v3386, %v3655
        %v3667 = vmul.f32 %v3387, %v3659
        %v3668 = vmul.f32 %v3388, %v3655
        %v3669 = vmul.f32 %v3389, %v3659
        %v3670 = vmul.f32 %v3390, %v3655
        %v3671 = vmul.f32 %v3391, %v3659
        %v3672 = vmul.f32 %v3392, %v3655
        %v3673 = vmul.f32 %v3393, %v3659
        %v3674 = vmul.f32 %v3394, %v3655
        %v3675 = vmul.f32 %v3395, %v3659
        %v3676 = vmul.f32 %v3396, %v3655
        %v3677 = vmul.f32 %v3397, %v3659
        %v3678 = vmul.f32 %v3398, %v3655
        %v3679 = vmul.f32 %v3399, %v3659
        %v3680 = vmul.f32 %v3400, %v3655
        %v3681 = vmul.f32 %v3401, %v3659
        %v3682 = vmul.f32 %v3402, %v3655
        %v3683 = vmul.f32 %v3403, %v3659
        %v3684 = vmul.f32 %v3404, %v3655
        %v3685 = vmul.f32 %v3405, %v3659
        %v3686 = vmul.f32 %v3406, %v3655
        %v3687 = vmul.f32 %v3407, %v3659
        %v3688 = vmul.f32 %v3408, %v3655
        %v3689 = vmul.f32 %v3409, %v3659
        %v3690 = vmul.f32 %v3410, %v3655
        %v3691 = vmul.f32 %v3411, %v3659
        %v3692 = vmul.f32 %v3412, %v3655
        %v3693 = vmul.f32 %v3413, %v3659
        %v3694 = vmul.f32 %v3414, %v3655
        %v3695 = vmul.f32 %v3415, %v3659
        %v3696 = vmul.f32 %v3416, %v3655
        %v3697 = vmul.f32 %v3417, %v3659
        %v3698 = vmul.f32 %v3418, %v3655
        %v3699 = vmul.f32 %v3419, %v3659
        %v3700 = vmul.f32 %v3420, %v3655
        %v3701 = vmul.f32 %v3421, %v3659
        %v3702 = vmul.f32 %v3422, %v3655
        %v3703 = vmul.f32 %v3423, %v3659
        %v3704 = vmul.f32 %v3424, %v3655
        %v3705 = vmul.f32 %v3425, %v3659
        %v3706 = vmul.f32 %v3426, %v3655
        %v3707 = vmul.f32 %v3427, %v3659
        %v3708 = vmul.f32 %v3428, %v3655
        %v3709 = vmul.f32 %v3429, %v3659
        %v3710 = vmul.f32 %v3430, %v3655
        %v3711 = vmul.f32 %v3431, %v3659
        %v3712 = vmul.f32 %v3432, %v3655
        %v3713 = vmul.f32 %v3433, %v3659
        %v3714 = vmul.f32 %v3434, %v3655
        %v3715 = vmul.f32 %v3435, %v3659
        %v3716 = vmul.f32 %v3436, %v3655
        %v3717 = vmul.f32 %v3437, %v3659
        %v3718 = vmul.f32 %v3438, %v3655
        %v3719 = vmul.f32 %v3439, %v3659
        %v3720 = vmul.f32 %v3440, %v3655
        %v3721 = vmul.f32 %v3441, %v3659
        %v3722 = vmul.f32 %v3442, %v3655
        %v3723 = vmul.f32 %v3443, %v3659
        %v3724 = vadd.f32 %v3588, %v3660
        %v3725 = vadd.f32 %v3589, %v3661
        %v3726 = vadd.f32 %v3590, %v3662
        %v3727 = vadd.f32 %v3591, %v3663
        %v3728 = vadd.f32 %v3592, %v3664
        %v3729 = vadd.f32 %v3593, %v3665
        %v3730 = vadd.f32 %v3594, %v3666
        %v3731 = vadd.f32 %v3595, %v3667
        %v3732 = vadd.f32 %v3596, %v3668
        %v3733 = vadd.f32 %v3597, %v3669
        %v3734 = vadd.f32 %v3598, %v3670
        %v3735 = vadd.f32 %v3599, %v3671
        %v3736 = vadd.f32 %v3600, %v3672
        %v3737 = vadd.f32 %v3601, %v3673
        %v3738 = vadd.f32 %v3602, %v3674
        %v3739 = vadd.f32 %v3603, %v3675
        %v3740 = vadd.f32 %v3604, %v3676
        %v3741 = vadd.f32 %v3605, %v3677
        %v3742 = vadd.f32 %v3606, %v3678
        %v3743 = vadd.f32 %v3607, %v3679
        %v3744 = vadd.f32 %v3608, %v3680
        %v3745 = vadd.f32 %v3609, %v3681
        %v3746 = vadd.f32 %v3610, %v3682
        %v3747 = vadd.f32 %v3611, %v3683
        %v3748 = vadd.f32 %v3612, %v3684
        %v3749 = vadd.f32 %v3613, %v3685
        %v3750 = vadd.f32 %v3614, %v3686
        %v3751 = vadd.f32 %v3615, %v3687
        %v3752 = vadd.f32 %v3616, %v3688
        %v3753 = vadd.f32 %v3617, %v3689
        %v3754 = vadd.f32 %v3618, %v3690
        %v3755 = vadd.f32 %v3619, %v3691
        %v3756 = vadd.f32 %v3620, %v3692
        %v3757 = vadd.f32 %v3621, %v3693
        %v3758 = vadd.f32 %v3622, %v3694
        %v3759 = vadd.f32 %v3623, %v3695
        %v3760 = vadd.f32 %v3624, %v3696
        %v3761 = vadd.f32 %v3625, %v3697
        %v3762 = vadd.f32 %v3626, %v3698
        %v3763 = vadd.f32 %v3627, %v3699
        %v3764 = vadd.f32 %v3628, %v3700
        %v3765 = vadd.f32 %v3629, %v3701
        %v3766 = vadd.f32 %v3630, %v3702
        %v3767 = vadd.f32 %v3631, %v3703
        %v3768 = vadd.f32 %v3632, %v3704
        %v3769 = vadd.f32 %v3633, %v3705
        %v3770 = vadd.f32 %v3634, %v3706
        %v3771 = vadd.f32 %v3635, %v3707
        %v3772 = vadd.f32 %v3636, %v3708
        %v3773 = vadd.f32 %v3637, %v3709
        %v3774 = vadd.f32 %v3638, %v3710
        %v3775 = vadd.f32 %v3639, %v3711
        %v3776 = vadd.f32 %v3640, %v3712
        %v3777 = vadd.f32 %v3641, %v3713
        %v3778 = vadd.f32 %v3642, %v3714
        %v3779 = vadd.f32 %v3643, %v3715
        %v3780 = vadd.f32 %v3644, %v3716
        %v3781 = vadd.f32 %v3645, %v3717
        %v3782 = vadd.f32 %v3646, %v3718
        %v3783 = vadd.f32 %v3647, %v3719
        %v3784 = vadd.f32 %v3648, %v3720
        %v3785 = vadd.f32 %v3649, %v3721
        %v3786 = vadd.f32 %v3650, %v3722
        %v3787 = vadd.f32 %v3651, %v3723
        %v3788 = vadd.f32 %v2932, %v3724
        %v3789 = vadd.f32 %v2933, %v3725
        %v3790 = vadd.f32 %v2934, %v3726
        %v3791 = vadd.f32 %v2935, %v3727
        %v3792 = vadd.f32 %v2936, %v3728
        %v3793 = vadd.f32 %v2937, %v3729
        %v3794 = vadd.f32 %v2938, %v3730
        %v3795 = vadd.f32 %v2939, %v3731
        %v3796 = vadd.f32 %v2940, %v3732
        %v3797 = vadd.f32 %v2941, %v3733
        %v3798 = vadd.f32 %v2942, %v3734
        %v3799 = vadd.f32 %v2943, %v3735
        %v3800 = vadd.f32 %v2944, %v3736
        %v3801 = vadd.f32 %v2945, %v3737
        %v3802 = vadd.f32 %v2946, %v3738
        %v3803 = vadd.f32 %v2947, %v3739
        %v3804 = vadd.f32 %v2948, %v3740
        %v3805 = vadd.f32 %v2949, %v3741
        %v3806 = vadd.f32 %v2950, %v3742
        %v3807 = vadd.f32 %v2951, %v3743
        %v3808 = vadd.f32 %v2952, %v3744
        %v3809 = vadd.f32 %v2953, %v3745
        %v3810 = vadd.f32 %v2954, %v3746
        %v3811 = vadd.f32 %v2955, %v3747
        %v3812 = vadd.f32 %v2956, %v3748
        %v3813 = vadd.f32 %v2957, %v3749
        %v3814 = vadd.f32 %v2958, %v3750
        %v3815 = vadd.f32 %v2959, %v3751
        %v3816 = vadd.f32 %v2960, %v3752
        %v3817 = vadd.f32 %v2961, %v3753
        %v3818 = vadd.f32 %v2962, %v3754
        %v3819 = vadd.f32 %v2963, %v3755
        %v3820 = vadd.f32 %v2964, %v3756
        %v3821 = vadd.f32 %v2965, %v3757
        %v3822 = vadd.f32 %v2966, %v3758
        %v3823 = vadd.f32 %v2967, %v3759
        %v3824 = vadd.f32 %v2968, %v3760
        %v3825 = vadd.f32 %v2969, %v3761
        %v3826 = vadd.f32 %v2970, %v3762
        %v3827 = vadd.f32 %v2971, %v3763
        %v3828 = vadd.f32 %v2972, %v3764
        %v3829 = vadd.f32 %v2973, %v3765
        %v3830 = vadd.f32 %v2974, %v3766
        %v3831 = vadd.f32 %v2975, %v3767
        %v3832 = vadd.f32 %v2976, %v3768
        %v3833 = vadd.f32 %v2977, %v3769
        %v3834 = vadd.f32 %v2978, %v3770
        %v3835 = vadd.f32 %v2979, %v3771
        %v3836 = vadd.f32 %v2980, %v3772
        %v3837 = vadd.f32 %v2981, %v3773
        %v3838 = vadd.f32 %v2982, %v3774
        %v3839 = vadd.f32 %v2983, %v3775
        %v3840 = vadd.f32 %v2984, %v3776
        %v3841 = vadd.f32 %v2985, %v3777
        %v3842 = vadd.f32 %v2986, %v3778
        %v3843 = vadd.f32 %v2987, %v3779
        %v3844 = vadd.f32 %v2988, %v3780
        %v3845 = vadd.f32 %v2989, %v3781
        %v3846 = vadd.f32 %v2990, %v3782
        %v3847 = vadd.f32 %v2991, %v3783
        %v3848 = vadd.f32 %v2992, %v3784
        %v3849 = vadd.f32 %v2993, %v3785
        %v3850 = vadd.f32 %v2994, %v3786
        %v3851 = vadd.f32 %v2995, %v3787
        %v3852 = vld [vmem:[%s5] sm:$0x3]
        %v3854 = vlaneseq
        %v3855 = vshrl.u32 %v3854, 7
        %v3856 = vsub.s32 0, %v3855
        %v3857 = vrot.slane %v3852, %v3856
        %v3858 = vlaneseq
        %v3859 = vshrl.u32 %v3858, 7
        %v3860 = vsub.s32 1, %v3859
        %v3861 = vrot.slane %v3852, %v3860
        %v3864 = vadd.f32 %v3788, %v3857
        %v3865 = vadd.f32 %v3789, %v3861
        %v3866 = vadd.f32 %v3790, %v3857
        %v3867 = vadd.f32 %v3791, %v3861
        %v3868 = vadd.f32 %v3792, %v3857
        %v3869 = vadd.f32 %v3793, %v3861
        %v3870 = vadd.f32 %v3794, %v3857
        %v3871 = vadd.f32 %v3795, %v3861
        %v3872 = vadd.f32 %v3796, %v3857
        %v3873 = vadd.f32 %v3797, %v3861
        %v3874 = vadd.f32 %v3798, %v3857
        %v3875 = vadd.f32 %v3799, %v3861
        %v3876 = vadd.f32 %v3800, %v3857
        %v3877 = vadd.f32 %v3801, %v3861
        %v3878 = vadd.f32 %v3802, %v3857
        %v3879 = vadd.f32 %v3803, %v3861
        %v3880 = vadd.f32 %v3804, %v3857
        %v3881 = vadd.f32 %v3805, %v3861
        %v3882 = vadd.f32 %v3806, %v3857
        %v3883 = vadd.f32 %v3807, %v3861
        %v3884 = vadd.f32 %v3808, %v3857
        %v3885 = vadd.f32 %v3809, %v3861
        %v3886 = vadd.f32 %v3810, %v3857
        %v3887 = vadd.f32 %v3811, %v3861
        %v3888 = vadd.f32 %v3812, %v3857
        %v3889 = vadd.f32 %v3813, %v3861
        %v3890 = vadd.f32 %v3814, %v3857
        %v3891 = vadd.f32 %v3815, %v3861
        %v3892 = vadd.f32 %v3816, %v3857
        %v3893 = vadd.f32 %v3817, %v3861
        %v3894 = vadd.f32 %v3818, %v3857
        %v3895 = vadd.f32 %v3819, %v3861
        %v3896 = vadd.f32 %v3820, %v3857
        %v3897 = vadd.f32 %v3821, %v3861
        %v3898 = vadd.f32 %v3822, %v3857
        %v3899 = vadd.f32 %v3823, %v3861
        %v3900 = vadd.f32 %v3824, %v3857
        %v3901 = vadd.f32 %v3825, %v3861
        %v3902 = vadd.f32 %v3826, %v3857
        %v3903 = vadd.f32 %v3827, %v3861
        %v3904 = vadd.f32 %v3828, %v3857
        %v3905 = vadd.f32 %v3829, %v3861
        %v3906 = vadd.f32 %v3830, %v3857
        %v3907 = vadd.f32 %v3831, %v3861
        %v3908 = vadd.f32 %v3832, %v3857
        %v3909 = vadd.f32 %v3833, %v3861
        %v3910 = vadd.f32 %v3834, %v3857
        %v3911 = vadd.f32 %v3835, %v3861
        %v3912 = vadd.f32 %v3836, %v3857
        %v3913 = vadd.f32 %v3837, %v3861
        %v3914 = vadd.f32 %v3838, %v3857
        %v3915 = vadd.f32 %v3839, %v3861
        %v3916 = vadd.f32 %v3840, %v3857
        %v3917 = vadd.f32 %v3841, %v3861
        %v3918 = vadd.f32 %v3842, %v3857
        %v3919 = vadd.f32 %v3843, %v3861
        %v3920 = vadd.f32 %v3844, %v3857
        %v3921 = vadd.f32 %v3845, %v3861
        %v3922 = vadd.f32 %v3846, %v3857
        %v3923 = vadd.f32 %v3847, %v3861
        %v3924 = vadd.f32 %v3848, %v3857
        %v3925 = vadd.f32 %v3849, %v3861
        %v3926 = vadd.f32 %v3850, %v3857
        %v3927 = vadd.f32 %v3851, %v3861
        %v3928 = vmul.f32 %v3864, 0.5
        %v3929 = vmul.f32 %v3865, 0.5
        %v3930 = vmul.f32 %v3866, 0.5
        %v3931 = vmul.f32 %v3867, 0.5
        %v3932 = vmul.f32 %v3868, 0.5
        %v3933 = vmul.f32 %v3869, 0.5
        %v3934 = vmul.f32 %v3870, 0.5
        %v3935 = vmul.f32 %v3871, 0.5
        %v3936 = vmul.f32 %v3872, 0.5
        %v3937 = vmul.f32 %v3873, 0.5
        %v3938 = vmul.f32 %v3874, 0.5
        %v3939 = vmul.f32 %v3875, 0.5
        %v3940 = vmul.f32 %v3876, 0.5
        %v3941 = vmul.f32 %v3877, 0.5
        %v3942 = vmul.f32 %v3878, 0.5
        %v3943 = vmul.f32 %v3879, 0.5
        %v3944 = vmul.f32 %v3880, 0.5
        %v3945 = vmul.f32 %v3881, 0.5
        %v3946 = vmul.f32 %v3882, 0.5
        %v3947 = vmul.f32 %v3883, 0.5
        %v3948 = vmul.f32 %v3884, 0.5
        %v3949 = vmul.f32 %v3885, 0.5
        %v3950 = vmul.f32 %v3886, 0.5
        %v3951 = vmul.f32 %v3887, 0.5
        %v3952 = vmul.f32 %v3888, 0.5
        %v3953 = vmul.f32 %v3889, 0.5
        %v3954 = vmul.f32 %v3890, 0.5
        %v3955 = vmul.f32 %v3891, 0.5
        %v3956 = vmul.f32 %v3892, 0.5
        %v3957 = vmul.f32 %v3893, 0.5
        %v3958 = vmul.f32 %v3894, 0.5
        %v3959 = vmul.f32 %v3895, 0.5
        %v3960 = vmul.f32 %v3896, 0.5
        %v3961 = vmul.f32 %v3897, 0.5
        %v3962 = vmul.f32 %v3898, 0.5
        %v3963 = vmul.f32 %v3899, 0.5
        %v3964 = vmul.f32 %v3900, 0.5
        %v3965 = vmul.f32 %v3901, 0.5
        %v3966 = vmul.f32 %v3902, 0.5
        %v3967 = vmul.f32 %v3903, 0.5
        %v3968 = vmul.f32 %v3904, 0.5
        %v3969 = vmul.f32 %v3905, 0.5
        %v3970 = vmul.f32 %v3906, 0.5
        %v3971 = vmul.f32 %v3907, 0.5
        %v3972 = vmul.f32 %v3908, 0.5
        %v3973 = vmul.f32 %v3909, 0.5
        %v3974 = vmul.f32 %v3910, 0.5
        %v3975 = vmul.f32 %v3911, 0.5
        %v3976 = vmul.f32 %v3912, 0.5
        %v3977 = vmul.f32 %v3913, 0.5
        %v3978 = vmul.f32 %v3914, 0.5
        %v3979 = vmul.f32 %v3915, 0.5
        %v3980 = vmul.f32 %v3916, 0.5
        %v3981 = vmul.f32 %v3917, 0.5
        %v3982 = vmul.f32 %v3918, 0.5
        %v3983 = vmul.f32 %v3919, 0.5
        %v3984 = vmul.f32 %v3920, 0.5
        %v3985 = vmul.f32 %v3921, 0.5
        %v3986 = vmul.f32 %v3922, 0.5
        %v3987 = vmul.f32 %v3923, 0.5
        %v3988 = vmul.f32 %v3924, 0.5
        %v3989 = vmul.f32 %v3925, 0.5
        %v3990 = vmul.f32 %v3926, 0.5
        %v3991 = vmul.f32 %v3927, 0.5
        %v3992 = vmul.f32 %v3864, 0.70710677
        %v3993 = vmul.f32 %v3865, 0.70710677
        %v3994 = vmul.f32 %v3866, 0.70710677
        %v3995 = vmul.f32 %v3867, 0.70710677
        %v3996 = vmul.f32 %v3868, 0.70710677
        %v3997 = vmul.f32 %v3869, 0.70710677
        %v3998 = vmul.f32 %v3870, 0.70710677
        %v3999 = vmul.f32 %v3871, 0.70710677
        %v4000 = vmul.f32 %v3872, 0.70710677
        %v4001 = vmul.f32 %v3873, 0.70710677
        %v4002 = vmul.f32 %v3874, 0.70710677
        %v4003 = vmul.f32 %v3875, 0.70710677
        %v4004 = vmul.f32 %v3876, 0.70710677
        %v4005 = vmul.f32 %v3877, 0.70710677
        %v4006 = vmul.f32 %v3878, 0.70710677
        %v4007 = vmul.f32 %v3879, 0.70710677
        %v4008 = vmul.f32 %v3880, 0.70710677
        %v4009 = vmul.f32 %v3881, 0.70710677
        %v4010 = vmul.f32 %v3882, 0.70710677
        %v4011 = vmul.f32 %v3883, 0.70710677
        %v4012 = vmul.f32 %v3884, 0.70710677
        %v4013 = vmul.f32 %v3885, 0.70710677
        %v4014 = vmul.f32 %v3886, 0.70710677
        %v4015 = vmul.f32 %v3887, 0.70710677
        %v4016 = vmul.f32 %v3888, 0.70710677
        %v4017 = vmul.f32 %v3889, 0.70710677
        %v4018 = vmul.f32 %v3890, 0.70710677
        %v4019 = vmul.f32 %v3891, 0.70710677
        %v4020 = vmul.f32 %v3892, 0.70710677
        %v4021 = vmul.f32 %v3893, 0.70710677
        %v4022 = vmul.f32 %v3894, 0.70710677
        %v4023 = vmul.f32 %v3895, 0.70710677
        %v4024 = vmul.f32 %v3896, 0.70710677
        %v4025 = vmul.f32 %v3897, 0.70710677
        %v4026 = vmul.f32 %v3898, 0.70710677
        %v4027 = vmul.f32 %v3899, 0.70710677
        %v4028 = vmul.f32 %v3900, 0.70710677
        %v4029 = vmul.f32 %v3901, 0.70710677
        %v4030 = vmul.f32 %v3902, 0.70710677
        %v4031 = vmul.f32 %v3903, 0.70710677
        %v4032 = vmul.f32 %v3904, 0.70710677
        %v4033 = vmul.f32 %v3905, 0.70710677
        %v4034 = vmul.f32 %v3906, 0.70710677
        %v4035 = vmul.f32 %v3907, 0.70710677
        %v4036 = vmul.f32 %v3908, 0.70710677
        %v4037 = vmul.f32 %v3909, 0.70710677
        %v4038 = vmul.f32 %v3910, 0.70710677
        %v4039 = vmul.f32 %v3911, 0.70710677
        %v4040 = vmul.f32 %v3912, 0.70710677
        %v4041 = vmul.f32 %v3913, 0.70710677
        %v4042 = vmul.f32 %v3914, 0.70710677
        %v4043 = vmul.f32 %v3915, 0.70710677
        %v4044 = vmul.f32 %v3916, 0.70710677
        %v4045 = vmul.f32 %v3917, 0.70710677
        %v4046 = vmul.f32 %v3918, 0.70710677
        %v4047 = vmul.f32 %v3919, 0.70710677
        %v4048 = vmul.f32 %v3920, 0.70710677
        %v4049 = vmul.f32 %v3921, 0.70710677
        %v4050 = vmul.f32 %v3922, 0.70710677
        %v4051 = vmul.f32 %v3923, 0.70710677
        %v4052 = vmul.f32 %v3924, 0.70710677
        %v4053 = vmul.f32 %v3925, 0.70710677
        %v4054 = vmul.f32 %v3926, 0.70710677
        %v4055 = vmul.f32 %v3927, 0.70710677
        %v4056 = verf.f32.pop %v3992
        %v4057 = verf.f32.pop %v3993
        %v4058 = verf.f32.pop %v3994
        %v4059 = verf.f32.pop %v3995
        %v4060 = verf.f32.pop %v3996
        %v4061 = verf.f32.pop %v3997
        %v4062 = verf.f32.pop %v3998
        %v4063 = verf.f32.pop %v3999
        %v4064 = verf.f32.pop %v4000
        %v4065 = verf.f32.pop %v4001
        %v4066 = verf.f32.pop %v4002
        %v4067 = verf.f32.pop %v4003
        %v4068 = verf.f32.pop %v4004
        %v4069 = verf.f32.pop %v4005
        %v4070 = verf.f32.pop %v4006
        %v4071 = verf.f32.pop %v4007
        %v4072 = verf.f32.pop %v4008
        %v4073 = verf.f32.pop %v4009
        %v4074 = verf.f32.pop %v4010
        %v4075 = verf.f32.pop %v4011
        %v4076 = verf.f32.pop %v4012
        %v4077 = verf.f32.pop %v4013
        %v4078 = verf.f32.pop %v4014
        %v4079 = verf.f32.pop %v4015
        %v4080 = verf.f32.pop %v4016
        %v4081 = verf.f32.pop %v4017
        %v4082 = verf.f32.pop %v4018
        %v4083 = verf.f32.pop %v4019
        %v4084 = verf.f32.pop %v4020
        %v4085 = verf.f32.pop %v4021
        %v4086 = verf.f32.pop %v4022
        %v4087 = verf.f32.pop %v4023
        %v4088 = verf.f32.pop %v4024
        %v4089 = verf.f32.pop %v4025
        %v4090 = verf.f32.pop %v4026
        %v4091 = verf.f32.pop %v4027
        %v4092 = verf.f32.pop %v4028
        %v4093 = verf.f32.pop %v4029
        %v4094 = verf.f32.pop %v4030
        %v4095 = verf.f32.pop %v4031
        %v4096 = verf.f32.pop %v4032
        %v4097 = verf.f32.pop %v4033
        %v4098 = verf.f32.pop %v4034
        %v4099 = verf.f32.pop %v4035
        %v4100 = verf.f32.pop %v4036
        %v4101 = verf.f32.pop %v4037
        %v4102 = verf.f32.pop %v4038
        %v4103 = verf.f32.pop %v4039
        %v4104 = verf.f32.pop %v4040
        %v4105 = verf.f32.pop %v4041
        %v4106 = verf.f32.pop %v4042
        %v4107 = verf.f32.pop %v4043
        %v4108 = verf.f32.pop %v4044
        %v4109 = verf.f32.pop %v4045
        %v4110 = verf.f32.pop %v4046
        %v4111 = verf.f32.pop %v4047
        %v4112 = verf.f32.pop %v4048
        %v4113 = verf.f32.pop %v4049
        %v4114 = verf.f32.pop %v4050
        %v4115 = verf.f32.pop %v4051
        %v4116 = verf.f32.pop %v4052
        %v4117 = verf.f32.pop %v4053
        %v4118 = verf.f32.pop %v4054
        %v4119 = verf.f32.pop %v4055
        %v4120 = vadd.f32 %v4056, 1.0
        %v4121 = vadd.f32 %v4057, 1.0
        %v4122 = vadd.f32 %v4058, 1.0
        %v4123 = vadd.f32 %v4059, 1.0
        %v4124 = vadd.f32 %v4060, 1.0
        %v4125 = vadd.f32 %v4061, 1.0
        %v4126 = vadd.f32 %v4062, 1.0
        %v4127 = vadd.f32 %v4063, 1.0
        %v4128 = vadd.f32 %v4064, 1.0
        %v4129 = vadd.f32 %v4065, 1.0
        %v4130 = vadd.f32 %v4066, 1.0
        %v4131 = vadd.f32 %v4067, 1.0
        %v4132 = vadd.f32 %v4068, 1.0
        %v4133 = vadd.f32 %v4069, 1.0
        %v4134 = vadd.f32 %v4070, 1.0
        %v4135 = vadd.f32 %v4071, 1.0
        %v4136 = vadd.f32 %v4072, 1.0
        %v4137 = vadd.f32 %v4073, 1.0
        %v4138 = vadd.f32 %v4074, 1.0
        %v4139 = vadd.f32 %v4075, 1.0
        %v4140 = vadd.f32 %v4076, 1.0
        %v4141 = vadd.f32 %v4077, 1.0
        %v4142 = vadd.f32 %v4078, 1.0
        %v4143 = vadd.f32 %v4079, 1.0
        %v4144 = vadd.f32 %v4080, 1.0
        %v4145 = vadd.f32 %v4081, 1.0
        %v4146 = vadd.f32 %v4082, 1.0
        %v4147 = vadd.f32 %v4083, 1.0
        %v4148 = vadd.f32 %v4084, 1.0
        %v4149 = vadd.f32 %v4085, 1.0
        %v4150 = vadd.f32 %v4086, 1.0
        %v4151 = vadd.f32 %v4087, 1.0
        %v4152 = vadd.f32 %v4088, 1.0
        %v4153 = vadd.f32 %v4089, 1.0
        %v4154 = vadd.f32 %v4090, 1.0
        %v4155 = vadd.f32 %v4091, 1.0
        %v4156 = vadd.f32 %v4092, 1.0
        %v4157 = vadd.f32 %v4093, 1.0
        %v4158 = vadd.f32 %v4094, 1.0
        %v4159 = vadd.f32 %v4095, 1.0
        %v4160 = vadd.f32 %v4096, 1.0
        %v4161 = vadd.f32 %v4097, 1.0
        %v4162 = vadd.f32 %v4098, 1.0
        %v4163 = vadd.f32 %v4099, 1.0
        %v4164 = vadd.f32 %v4100, 1.0
        %v4165 = vadd.f32 %v4101, 1.0
        %v4166 = vadd.f32 %v4102, 1.0
        %v4167 = vadd.f32 %v4103, 1.0
        %v4168 = vadd.f32 %v4104, 1.0
        %v4169 = vadd.f32 %v4105, 1.0
        %v4170 = vadd.f32 %v4106, 1.0
        %v4171 = vadd.f32 %v4107, 1.0
        %v4172 = vadd.f32 %v4108, 1.0
        %v4173 = vadd.f32 %v4109, 1.0
        %v4174 = vadd.f32 %v4110, 1.0
        %v4175 = vadd.f32 %v4111, 1.0
        %v4176 = vadd.f32 %v4112, 1.0
        %v4177 = vadd.f32 %v4113, 1.0
        %v4178 = vadd.f32 %v4114, 1.0
        %v4179 = vadd.f32 %v4115, 1.0
        %v4180 = vadd.f32 %v4116, 1.0
        %v4181 = vadd.f32 %v4117, 1.0
        %v4182 = vadd.f32 %v4118, 1.0
        %v4183 = vadd.f32 %v4119, 1.0
        %v4184 = vmul.f32 %v3928, %v4120
        %v4185 = vmul.f32 %v3929, %v4121
        %v4186 = vmul.f32 %v3930, %v4122
        %v4187 = vmul.f32 %v3931, %v4123
        %v4188 = vmul.f32 %v3932, %v4124
        %v4189 = vmul.f32 %v3933, %v4125
        %v4190 = vmul.f32 %v3934, %v4126
        %v4191 = vmul.f32 %v3935, %v4127
        %v4192 = vmul.f32 %v3936, %v4128
        %v4193 = vmul.f32 %v3937, %v4129
        %v4194 = vmul.f32 %v3938, %v4130
        %v4195 = vmul.f32 %v3939, %v4131
        %v4196 = vmul.f32 %v3940, %v4132
        %v4197 = vmul.f32 %v3941, %v4133
        %v4198 = vmul.f32 %v3942, %v4134
        %v4199 = vmul.f32 %v3943, %v4135
        %v4200 = vmul.f32 %v3944, %v4136
        %v4201 = vmul.f32 %v3945, %v4137
        %v4202 = vmul.f32 %v3946, %v4138
        %v4203 = vmul.f32 %v3947, %v4139
        %v4204 = vmul.f32 %v3948, %v4140
        %v4205 = vmul.f32 %v3949, %v4141
        %v4206 = vmul.f32 %v3950, %v4142
        %v4207 = vmul.f32 %v3951, %v4143
        %v4208 = vmul.f32 %v3952, %v4144
        %v4209 = vmul.f32 %v3953, %v4145
        %v4210 = vmul.f32 %v3954, %v4146
        %v4211 = vmul.f32 %v3955, %v4147
        %v4212 = vmul.f32 %v3956, %v4148
        %v4213 = vmul.f32 %v3957, %v4149
        %v4214 = vmul.f32 %v3958, %v4150
        %v4215 = vmul.f32 %v3959, %v4151
        %v4216 = vmul.f32 %v3960, %v4152
        %v4217 = vmul.f32 %v3961, %v4153
        %v4218 = vmul.f32 %v3962, %v4154
        %v4219 = vmul.f32 %v3963, %v4155
        %v4220 = vmul.f32 %v3964, %v4156
        %v4221 = vmul.f32 %v3965, %v4157
        %v4222 = vmul.f32 %v3966, %v4158
        %v4223 = vmul.f32 %v3967, %v4159
        %v4224 = vmul.f32 %v3968, %v4160
        %v4225 = vmul.f32 %v3969, %v4161
        %v4226 = vmul.f32 %v3970, %v4162
        %v4227 = vmul.f32 %v3971, %v4163
        %v4228 = vmul.f32 %v3972, %v4164
        %v4229 = vmul.f32 %v3973, %v4165
        %v4230 = vmul.f32 %v3974, %v4166
        %v4231 = vmul.f32 %v3975, %v4167
        %v4232 = vmul.f32 %v3976, %v4168
        %v4233 = vmul.f32 %v3977, %v4169
        %v4234 = vmul.f32 %v3978, %v4170
        %v4235 = vmul.f32 %v3979, %v4171
        %v4236 = vmul.f32 %v3980, %v4172
        %v4237 = vmul.f32 %v3981, %v4173
        %v4238 = vmul.f32 %v3982, %v4174
        %v4239 = vmul.f32 %v3983, %v4175
        %v4240 = vmul.f32 %v3984, %v4176
        %v4241 = vmul.f32 %v3985, %v4177
        %v4242 = vmul.f32 %v3986, %v4178
        %v4243 = vmul.f32 %v3987, %v4179
        %v4244 = vmul.f32 %v3988, %v4180
        %v4245 = vmul.f32 %v3989, %v4181
        %v4246 = vmul.f32 %v3990, %v4182
        %v4247 = vmul.f32 %v3991, %v4183
        %v4248 = vpack.c.bf16 %v4186, %v4184
        %v4249 = vpack.c.bf16 %v4187, %v4185
        %v4250 = vpack.c.bf16 %v4190, %v4188
        %v4251 = vpack.c.bf16 %v4191, %v4189
        %v4252 = vpack.c.bf16 %v4194, %v4192
        %v4253 = vpack.c.bf16 %v4195, %v4193
        %v4254 = vpack.c.bf16 %v4198, %v4196
        %v4255 = vpack.c.bf16 %v4199, %v4197
        %v4256 = vpack.c.bf16 %v4202, %v4200
        %v4257 = vpack.c.bf16 %v4203, %v4201
        %v4258 = vpack.c.bf16 %v4206, %v4204
        %v4259 = vpack.c.bf16 %v4207, %v4205
        %v4260 = vpack.c.bf16 %v4210, %v4208
        %v4261 = vpack.c.bf16 %v4211, %v4209
        %v4262 = vpack.c.bf16 %v4214, %v4212
        %v4263 = vpack.c.bf16 %v4215, %v4213
        %v4264 = vpack.c.bf16 %v4218, %v4216
        %v4265 = vpack.c.bf16 %v4219, %v4217
        %v4266 = vpack.c.bf16 %v4222, %v4220
        %v4267 = vpack.c.bf16 %v4223, %v4221
        %v4268 = vpack.c.bf16 %v4226, %v4224
        %v4269 = vpack.c.bf16 %v4227, %v4225
        %v4270 = vpack.c.bf16 %v4230, %v4228
        %v4271 = vpack.c.bf16 %v4231, %v4229
        %v4272 = vpack.c.bf16 %v4234, %v4232
        %v4273 = vpack.c.bf16 %v4235, %v4233
        %v4274 = vpack.c.bf16 %v4238, %v4236
        %v4275 = vpack.c.bf16 %v4239, %v4237
        %v4276 = vpack.c.bf16 %v4242, %v4240
        %v4277 = vpack.c.bf16 %v4243, %v4241
        %v4278 = vpack.c.bf16 %v4246, %v4244
        %v4279 = vpack.c.bf16 %v4247, %v4245
        %v4280 = vld [vmem:[#allocation11] sm:$0xf]
        %v4281 = vld [vmem:[#allocation11 + $0x4] sm:$0xf]
        %v4282 = vld [vmem:[#allocation11 + $0x8] sm:$0xf]
        %v4283 = vld [vmem:[#allocation11 + $0xc] sm:$0xf]
        %v4284 = vld [vmem:[#allocation11 + $0x10] sm:$0xf]
        %v4285 = vld [vmem:[#allocation11 + $0x14] sm:$0xf]
        %v4286 = vld [vmem:[#allocation11 + $0x18] sm:$0xf]
        %v4287 = vld [vmem:[#allocation11 + $0x1c] sm:$0xf]
        %v4288 = vld [vmem:[#allocation11 + $0x20] sm:$0xf]
        %v4289 = vld [vmem:[#allocation11 + $0x24] sm:$0xf]
        %v4290 = vld [vmem:[#allocation11 + $0x28] sm:$0xf]
        %v4291 = vld [vmem:[#allocation11 + $0x2c] sm:$0xf]
        %v4292 = vld [vmem:[#allocation11 + $0x30] sm:$0xf]
        %v4293 = vld [vmem:[#allocation11 + $0x34] sm:$0xf]
        %v4294 = vld [vmem:[#allocation11 + $0x38] sm:$0xf]
        %v4295 = vld [vmem:[#allocation11 + $0x3c] sm:$0xf]
        %v4296 = vld [vmem:[#allocation11 + $0x40] sm:$0xf]
        %v4297 = vld [vmem:[#allocation11 + $0x44] sm:$0xf]
        %v4298 = vld [vmem:[#allocation11 + $0x48] sm:$0xf]
        %v4299 = vld [vmem:[#allocation11 + $0x4c] sm:$0xf]
        %v4300 = vld [vmem:[#allocation11 + $0x50] sm:$0xf]
        %v4301 = vld [vmem:[#allocation11 + $0x54] sm:$0xf]
        %v4302 = vld [vmem:[#allocation11 + $0x58] sm:$0xf]
        %v4303 = vld [vmem:[#allocation11 + $0x5c] sm:$0xf]
        %v4304 = vld [vmem:[#allocation11 + $0x60] sm:$0xf]
        %v4305 = vld [vmem:[#allocation11 + $0x64] sm:$0xf]
        %v4306 = vld [vmem:[#allocation11 + $0x68] sm:$0xf]
        %v4307 = vld [vmem:[#allocation11 + $0x6c] sm:$0xf]
        %v4308 = vld [vmem:[#allocation11 + $0x70] sm:$0xf]
        %v4309 = vld [vmem:[#allocation11 + $0x74] sm:$0xf]
        %v4310 = vld [vmem:[#allocation11 + $0x78] sm:$0xf]
        %v4311 = vld [vmem:[#allocation11 + $0x7c] sm:$0xf]
        %v4312 = vld [vmem:[%s7] sm:$0x1]
        %v4314 = vlaneseq
        %v4315 = vshrl.u32 %v4314, 7
        %v4316 = vsub.s32 0, %v4315
        %v4317 = vrot.slane %v4312, %v4316
        %v4351 = vunpack.c.l.b16 %v4280
        %v4352 = vunpack.c.l.b16 %v4281
        %v4353 = vunpack.c.l.b16 %v4282
        %v4354 = vunpack.c.l.b16 %v4283
        %v4355 = vunpack.c.l.b16 %v4284
        %v4356 = vunpack.c.l.b16 %v4285
        %v4357 = vunpack.c.l.b16 %v4286
        %v4358 = vunpack.c.l.b16 %v4287
        %v4359 = vunpack.c.l.b16 %v4288
        %v4360 = vunpack.c.l.b16 %v4289
        %v4361 = vunpack.c.l.b16 %v4290
        %v4362 = vunpack.c.l.b16 %v4291
        %v4363 = vunpack.c.l.b16 %v4292
        %v4364 = vunpack.c.l.b16 %v4293
        %v4365 = vunpack.c.l.b16 %v4294
        %v4366 = vunpack.c.l.b16 %v4295
        %v4367 = vunpack.c.l.b16 %v4296
        %v4368 = vunpack.c.l.b16 %v4297
        %v4369 = vunpack.c.l.b16 %v4298
        %v4370 = vunpack.c.l.b16 %v4299
        %v4371 = vunpack.c.l.b16 %v4300
        %v4372 = vunpack.c.l.b16 %v4301
        %v4373 = vunpack.c.l.b16 %v4302
        %v4374 = vunpack.c.l.b16 %v4303
        %v4375 = vunpack.c.l.b16 %v4304
        %v4376 = vunpack.c.l.b16 %v4305
        %v4377 = vunpack.c.l.b16 %v4306
        %v4378 = vunpack.c.l.b16 %v4307
        %v4379 = vunpack.c.l.b16 %v4308
        %v4380 = vunpack.c.l.b16 %v4309
        %v4381 = vunpack.c.l.b16 %v4310
        %v4382 = vunpack.c.l.b16 %v4311
        %v4383 = vpack.c.b16 %v4352, %v4351
        %v4384 = vpack.c.b16 %v4354, %v4353
        %v4385 = vpack.c.b16 %v4356, %v4355
        %v4386 = vpack.c.b16 %v4358, %v4357
        %v4387 = vpack.c.b16 %v4360, %v4359
        %v4388 = vpack.c.b16 %v4362, %v4361
        %v4389 = vpack.c.b16 %v4364, %v4363
        %v4390 = vpack.c.b16 %v4366, %v4365
        %v4391 = vpack.c.b16 %v4368, %v4367
        %v4392 = vpack.c.b16 %v4370, %v4369
        %v4393 = vpack.c.b16 %v4372, %v4371
        %v4394 = vpack.c.b16 %v4374, %v4373
        %v4395 = vpack.c.b16 %v4376, %v4375
        %v4396 = vpack.c.b16 %v4378, %v4377
        %v4397 = vpack.c.b16 %v4380, %v4379
        %v4398 = vpack.c.b16 %v4382, %v4381
        %4415 = vmatprep.subr.bf16.mxu0 0
        %4416 = vmatpush1.bf16.msra.mxu0 %v4383
        %4417 = vmatprep.subr.bf16.mxu0 0
        %4418 = vmatpush1.bf16.msra.mxu0 %v4384
        %4419 = vmatprep.subr.bf16.mxu0 0
        %4420 = vmatpush1.bf16.msra.mxu0 %v4385
        %4421 = vmatprep.subr.bf16.mxu0 0
        %4422 = vmatpush1.bf16.msra.mxu0 %v4386
        %4423 = vmatprep.subr.bf16.mxu0 0
        %4424 = vmatpush1.bf16.msra.mxu0 %v4387
        %4425 = vmatprep.subr.bf16.mxu0 0
        %4426 = vmatpush1.bf16.msra.mxu0 %v4388
        %4427 = vmatprep.subr.bf16.mxu0 0
        %4428 = vmatpush1.bf16.msra.mxu0 %v4389
        %4429 = vmatprep.subr.bf16.mxu0 0
        %4430 = vmatpush1.bf16.msra.mxu0 %v4390
        %4431 = vmatprep.subr.bf16.mxu0 0
        %4432 = vmatpush1.bf16.msra.mxu0 %v4391
        %4433 = vmatprep.subr.bf16.mxu0 0
        %4434 = vmatpush1.bf16.msra.mxu0 %v4392
        %4435 = vmatprep.subr.bf16.mxu0 0
        %4436 = vmatpush1.bf16.msra.mxu0 %v4393
        %4437 = vmatprep.subr.bf16.mxu0 0
        %4438 = vmatpush1.bf16.msra.mxu0 %v4394
        %4439 = vmatprep.subr.bf16.mxu0 0
        %4440 = vmatpush1.bf16.msra.mxu0 %v4395
        %4441 = vmatprep.subr.bf16.mxu0 0
        %4442 = vmatpush1.bf16.msra.mxu0 %v4396
        %4443 = vmatprep.subr.bf16.mxu0 0
        %4444 = vmatpush1.bf16.msra.mxu0 %v4397
        %4445 = vmatprep.subr.bf16.mxu0 0
        %4446 = vmatpush1.bf16.msra.mxu0 %v4398
        %4447 = vmatprep.mubr.bf16.mxu0 %v4249
        %4448 = vmatmul.mubr.bf16.gmra.mrb[0].mxu0 %v4248
        %v4449 = vpop.f32.mrb[0].mxu0
        %v4450 = vadd.f32 %v4317, %v4449
        %v4451 = vpop.f32.mrb[0].mxu0
        %v4452 = vpop.f32.mrb[0].mxu0
        %v4453 = vadd.f32 %v4317, %v4452
        %v4454 = vpop.f32.mrb[0].mxu0
        %4455 = vmatprep.mubr.bf16.mxu0 %v4251
        %4456 = vmatmul.mubr.bf16.gmra.mrb[0].mxu0 %v4250
        %v4457 = vpop.f32.mrb[0].mxu0
        %v4458 = vadd.f32 %v4317, %v4457
        %v4459 = vpop.f32.mrb[0].mxu0
        %v4460 = vpop.f32.mrb[0].mxu0
        %v4461 = vadd.f32 %v4317, %v4460
        %v4462 = vpop.f32.mrb[0].mxu0
        %4463 = vmatprep.mubr.bf16.mxu0 %v4253
        %4464 = vmatmul.mubr.bf16.gmra.mrb[0].mxu0 %v4252
        %v4465 = vpop.f32.mrb[0].mxu0
        %v4466 = vadd.f32 %v4317, %v4465
        %v4467 = vpop.f32.mrb[0].mxu0
        %v4468 = vpop.f32.mrb[0].mxu0
        %v4469 = vadd.f32 %v4317, %v4468
        %v4470 = vpop.f32.mrb[0].mxu0
        %4471 = vmatprep.mubr.bf16.mxu0 %v4255
        %4472 = vmatmul.mubr.bf16.gmra.mrb[0].mxu0 %v4254
        %v4473 = vpop.f32.mrb[0].mxu0
        %v4474 = vadd.f32 %v4317, %v4473
        %v4475 = vpop.f32.mrb[0].mxu0
        %v4476 = vpop.f32.mrb[0].mxu0
        %v4477 = vadd.f32 %v4317, %v4476
        %v4478 = vpop.f32.mrb[0].mxu0
        %4479 = vmatprep.mubr.bf16.mxu0 %v4257
        %4480 = vmatmul.mubr.bf16.gmra.mrb[0].mxu0 %v4256
        %v4481 = vpop.f32.mrb[0].mxu0
        %v4482 = vadd.f32 %v4317, %v4481
        %v4483 = vpop.f32.mrb[0].mxu0
        %v4484 = vpop.f32.mrb[0].mxu0
        %v4485 = vadd.f32 %v4317, %v4484
        %v4486 = vpop.f32.mrb[0].mxu0
        %4487 = vmatprep.mubr.bf16.mxu0 %v4259
        %4488 = vmatmul.mubr.bf16.gmra.mrb[0].mxu0 %v4258
        %v4489 = vpop.f32.mrb[0].mxu0
        %v4490 = vadd.f32 %v4317, %v4489
        %v4491 = vpop.f32.mrb[0].mxu0
        %v4492 = vpop.f32.mrb[0].mxu0
        %v4493 = vadd.f32 %v4317, %v4492
        %v4494 = vpop.f32.mrb[0].mxu0
        %4495 = vmatprep.mubr.bf16.mxu0 %v4261
        %4496 = vmatmul.mubr.bf16.gmra.mrb[0].mxu0 %v4260
        %v4497 = vpop.f32.mrb[0].mxu0
        %v4498 = vadd.f32 %v4317, %v4497
        %v4499 = vpop.f32.mrb[0].mxu0
        %v4500 = vpop.f32.mrb[0].mxu0
        %v4501 = vadd.f32 %v4317, %v4500
        %v4502 = vpop.f32.mrb[0].mxu0
        %4503 = vmatprep.mubr.bf16.mxu0 %v4263
        %4504 = vmatmul.mubr.bf16.gmra.mrb[0].mxu0 %v4262
        %v4505 = vpop.f32.mrb[0].mxu0
        %v4506 = vadd.f32 %v4317, %v4505
        %v4507 = vpop.f32.mrb[0].mxu0
        %v4508 = vpop.f32.mrb[0].mxu0
        %v4509 = vadd.f32 %v4317, %v4508
        %v4510 = vpop.f32.mrb[0].mxu0
        %4511 = vmatprep.mubr.bf16.mxu0 %v4265
        %4512 = vmatmul.mubr.bf16.gmra.mrb[0].mxu0 %v4264
        %v4513 = vpop.f32.mrb[0].mxu0
        %v4514 = vadd.f32 %v4317, %v4513
        %v4515 = vpop.f32.mrb[0].mxu0
        %v4516 = vpop.f32.mrb[0].mxu0
        %v4517 = vadd.f32 %v4317, %v4516
        %v4518 = vpop.f32.mrb[0].mxu0
        %4519 = vmatprep.mubr.bf16.mxu0 %v4267
        %4520 = vmatmul.mubr.bf16.gmra.mrb[0].mxu0 %v4266
        %v4521 = vpop.f32.mrb[0].mxu0
        %v4522 = vadd.f32 %v4317, %v4521
        %v4523 = vpop.f32.mrb[0].mxu0
        %v4524 = vpop.f32.mrb[0].mxu0
        %v4525 = vadd.f32 %v4317, %v4524
        %v4526 = vpop.f32.mrb[0].mxu0
        %4527 = vmatprep.mubr.bf16.mxu0 %v4269
        %4528 = vmatmul.mubr.bf16.gmra.mrb[0].mxu0 %v4268
        %v4529 = vpop.f32.mrb[0].mxu0
        %v4530 = vadd.f32 %v4317, %v4529
        %v4531 = vpop.f32.mrb[0].mxu0
        %v4532 = vpop.f32.mrb[0].mxu0
        %v4533 = vadd.f32 %v4317, %v4532
        %v4534 = vpop.f32.mrb[0].mxu0
        %4535 = vmatprep.mubr.bf16.mxu0 %v4271
        %4536 = vmatmul.mubr.bf16.gmra.mrb[0].mxu0 %v4270
        %v4537 = vpop.f32.mrb[0].mxu0
        %v4538 = vadd.f32 %v4317, %v4537
        %v4539 = vpop.f32.mrb[0].mxu0
        %v4540 = vpop.f32.mrb[0].mxu0
        %v4541 = vadd.f32 %v4317, %v4540
        %v4542 = vpop.f32.mrb[0].mxu0
        %4543 = vmatprep.mubr.bf16.mxu0 %v4273
        %4544 = vmatmul.mubr.bf16.gmra.mrb[0].mxu0 %v4272
        %v4545 = vpop.f32.mrb[0].mxu0
        %v4546 = vadd.f32 %v4317, %v4545
        %v4547 = vpop.f32.mrb[0].mxu0
        %v4548 = vpop.f32.mrb[0].mxu0
        %v4549 = vadd.f32 %v4317, %v4548
        %v4550 = vpop.f32.mrb[0].mxu0
        %4551 = vmatprep.mubr.bf16.mxu0 %v4275
        %4552 = vmatmul.mubr.bf16.gmra.mrb[0].mxu0 %v4274
        %v4553 = vpop.f32.mrb[0].mxu0
        %v4554 = vadd.f32 %v4317, %v4553
        %v4555 = vpop.f32.mrb[0].mxu0
        %v4556 = vpop.f32.mrb[0].mxu0
        %v4557 = vadd.f32 %v4317, %v4556
        %v4558 = vpop.f32.mrb[0].mxu0
        %4559 = vmatprep.mubr.bf16.mxu0 %v4277
        %4560 = vmatmul.mubr.bf16.gmra.mrb[0].mxu0 %v4276
        %v4561 = vpop.f32.mrb[0].mxu0
        %v4562 = vadd.f32 %v4317, %v4561
        %v4563 = vpop.f32.mrb[0].mxu0
        %v4564 = vpop.f32.mrb[0].mxu0
        %v4565 = vadd.f32 %v4317, %v4564
        %v4566 = vpop.f32.mrb[0].mxu0
        %4567 = vmatprep.mubr.bf16.mxu0 %v4279
        %4568 = vmatmul.mubr.bf16.gmra.mrb[0].mxu0 %v4278
        %v4569 = vpop.f32.mrb[0].mxu0
        %v4570 = vadd.f32 %v4317, %v4569
        %v4571 = vpop.f32.mrb[0].mxu0
        %v4572 = vpop.f32.mrb[0].mxu0
        %v4573 = vadd.f32 %v4317, %v4572
        %v4574 = vpop.f32.mrb[0].mxu0
        %4575 = vdwg.mxu0
        %4576 = vst [vmem:[%s359] sm:$0xff] %v4450
        %4577 = vst [vmem:[%s359 + $0x8] sm:$0xff] %v4453
        %4578 = vst [vmem:[%s359 + $0x10] sm:$0xff] %v4458
        %4579 = vst [vmem:[%s359 + $0x18] sm:$0xff] %v4461
        %4580 = vst [vmem:[%s359 + $0x20] sm:$0xff] %v4466
        %4581 = vst [vmem:[%s359 + $0x28] sm:$0xff] %v4469
        %4582 = vst [vmem:[%s359 + $0x30] sm:$0xff] %v4474
        %4583 = vst [vmem:[%s359 + $0x38] sm:$0xff] %v4477
        %4584 = vst [vmem:[%s359 + $0x40] sm:$0xff] %v4482
        %4585 = vst [vmem:[%s359 + $0x48] sm:$0xff] %v4485
        %4586 = vst [vmem:[%s359 + $0x50] sm:$0xff] %v4490
        %4587 = vst [vmem:[%s359 + $0x58] sm:$0xff] %v4493
        %4588 = vst [vmem:[%s359 + $0x60] sm:$0xff] %v4498
        %4589 = vst [vmem:[%s359 + $0x68] sm:$0xff] %v4501
        %4590 = vst [vmem:[%s359 + $0x70] sm:$0xff] %v4506
        %4591 = vst [vmem:[%s359 + $0x78] sm:$0xff] %v4509
        %4592 = vst [vmem:[%s359 + $0x80] sm:$0xff] %v4514
        %4593 = vst [vmem:[%s359 + $0x88] sm:$0xff] %v4517
        %4594 = vst [vmem:[%s359 + $0x90] sm:$0xff] %v4522
        %4595 = vst [vmem:[%s359 + $0x98] sm:$0xff] %v4525
        %4596 = vst [vmem:[%s359 + $0xa0] sm:$0xff] %v4530
        %4597 = vst [vmem:[%s359 + $0xa8] sm:$0xff] %v4533
        %4598 = vst [vmem:[%s359 + $0xb0] sm:$0xff] %v4538
        %4599 = vst [vmem:[%s359 + $0xb8] sm:$0xff] %v4541
        %4600 = vst [vmem:[%s359 + $0xc0] sm:$0xff] %v4546
        %4601 = vst [vmem:[%s359 + $0xc8] sm:$0xff] %v4549
        %4602 = vst [vmem:[%s359 + $0xd0] sm:$0xff] %v4554
        %4603 = vst [vmem:[%s359 + $0xd8] sm:$0xff] %v4557
        %4604 = vst [vmem:[%s359 + $0xe0] sm:$0xff] %v4562
        %4605 = vst [vmem:[%s359 + $0xe8] sm:$0xff] %v4565
        %4606 = vst [vmem:[%s359 + $0xf0] sm:$0xff] %v4570
        %4607 = vst [vmem:[%s359 + $0xf8] sm:$0xff] %v4573
        %s4608 = sand.u32 %s203, 1
        %s4609 = scalar_lea.sflag [#allocation7], %s4608
        %s4610 = sand.u32 %s203, 1
        %s4611 = smul.addr %s4610, 256
        %s4612 = scalar_lea.vmem [#allocation13], %s4611
        // Predicated region
        $region97: #{tpu_custom_call.1} parent=47 // pred_check
          %p4613 = pneg %p213
        $region98: #{tpu_custom_call.1} parent=47 // pred_check_branch
          %4615 = sbr.rel (%p4613) target = $region100
        $region99: #{tpu_custom_call.1} parent=47 // pred_region
          %s4616 = smul.u32 32, %s32
          %s4618 = ssub.s32 4096, 4096
          %4619 = vsyncadd %s4609, %s4618
          %s4620 = smul.addr %s31, 32
          %s4621 = sadd.s32 %s4616, %s4620
          %s4622 = smul.addr %s4621, 128
          %s4623 = scalar_lea.hbm %s8, %s4622
          %s4624 = sshll.u32 %s4612, 4
          %s4625 = int_to_ptr.vmem [resolvable:$true] %s4624
          %4630 = dma.vmem_to_hbm [thread:$0]  %s4625, 4096, %s4623, %s4609, 128, 128, 8
        $region100: #{tpu_custom_call.1} parent=47 // pred_fallthru
          _
      $region48: #{tpu_custom_call.1} parent=5 // pred_fallthru
        _
      %p4631 = scmp.le.s32.totalorder 2, %s22
      // Predicated region
      $region101: #{tpu_custom_call.1} parent=5 // pred_check
        %p4632 = pneg %p4631
      $region102: #{tpu_custom_call.1} parent=5 // pred_check_branch
        %4634 = sbr.rel (%p4632) target = $region104
      $region103: #{tpu_custom_call.1} parent=5 // pred_region
        %s4635 = ssub.s32 %s22, 2
        // Predicated region
        $region105: #{tpu_custom_call.1} parent=103 // pred_check
          %p4636 = pneg %p219
        $region106: #{tpu_custom_call.1} parent=103 // pred_check_branch
          %4638 = sbr.rel (%p4636) target = $region108
        $region107: #{tpu_custom_call.1} parent=103 // pred_region
          %s4639 = sand.u32 %s204, 1
          %s4640 = scalar_lea.sflag [#allocation7], %s4639
          %s4641 = sand.u32 %s204, 1
          %s4642 = smul.addr %s4641, 256
          %s4643 = scalar_lea.vmem [#allocation13], %s4642
          %4644 = dma.done %s4640, 4096
        $region108: #{tpu_custom_call.1} parent=103 // pred_fallthru
          _
      $region104: #{tpu_custom_call.1} parent=5 // pred_fallthru
        _
    $region6: #{tpu_custom_call.1} parent=1 // loop_footer
      %s26 = sadd.s32 1, %s22
    $region7: #{tpu_custom_call.1} parent=1 // loop_footer_branch
      %21 = sbr.rel target = $region3
    $region8: #{tpu_custom_call.1} parent=1 // loop_exit
      _
    %4645 = vsyncpa [#allocation6], 1
    %s4646 = scalar_lea.sflag [#allocation6], 1
    %4647 = vsyncpa %s4646, 1
    %4648 = vsyncpa [#allocation9], 1
    %4649 = vsyncpa [#allocation12], 1
    %4650 = vsyncpa [#allocation7], 1
    %s4651 = scalar_lea.sflag [#allocation7], 1
    %4652 = vsyncpa %s4651, 1
  %4653 = vsyncmov [#allocation4]
  %s4654 = vpop.sfrf %4653
  %p4655 = scmp.eq.s32.totalorder %s4654, 0
  %p4656 = pneg %p4655
  %4658 = shalt.err (%p4656)
  %s4659 = scalar_lea.sflag [#allocation4], 1
  %4660 = vsyncmov %s4659
  %s4661 = vpop.sfrf %4660
  %p4662 = scmp.eq.s32.totalorder %s4661, 0
  %p4663 = pneg %p4662
  %4665 = shalt.err (%p4663)

</llo_original>
